<compile_context>
chip_gen: v7x
topology: tpu7x:2x2x1
jax: 0.10.0
libtpu: 0.0.40
codegen_flags: <defaults>
</compile_context>

<pallas_src>
import math
import functools

import jax
import jax.numpy as jnp
from jax.experimental import pallas as pl
from jax.experimental.pallas import tpu as pltpu


def _round_up(x, m):
    return ((x + m - 1) // m) * m


# --------------------------------------------------------------------------
# Pallas kernels
# --------------------------------------------------------------------------
def encoder_stack_kernel(x_ref, wqkv_ref, wo_ref, w1_ref, w2_ref,
                         dvec_ref, c1_ref, o_ref, *, d_real):
    """Applies one post-norm TransformerEncoderLayer (nhead=1, relu FFN) per
    grid step along the t ("arbitrary") axis, keeping the full [Sb, N, Dp]
    activation slab resident in the output VMEM block across all sub-layers.

    dvec_ref rows: 0=bq 1=bk 2=bv 3=bo 4=gamma1 5=beta1 6=c2 7=gamma2 8=beta2.
    """
    t = pl.program_id(1)

    @pl.when(t == 0)
    def _load_input():
        o_ref[...] = x_ref[...]

    Sb, N, Dp = o_ref.shape
    inv_d = 1.0 / d_real
    scale = 1.0 / math.sqrt(d_real)
    eps = 1e-5

    x = o_ref[...].reshape(Sb * N, Dp)                 # f32 resident activations
    xb = x.astype(jnp.bfloat16)

    # --- fused Q/K/V projection: one MXU matmul, slice lane-aligned blocks ---
    qkv = jnp.dot(xb, wqkv_ref[...], preferred_element_type=jnp.float32)
    q = (qkv[:, 0 * Dp:1 * Dp] + dvec_ref[0]).reshape(Sb, N, Dp)
    k = (qkv[:, 1 * Dp:2 * Dp] + dvec_ref[1]).reshape(Sb, N, Dp)
    v = (qkv[:, 2 * Dp:3 * Dp] + dvec_ref[2]).reshape(Sb, N, Dp)

    # --- single-head self-attention over the node axis, batched over S ---
    sc = jnp.einsum("sqd,skd->sqk",
                    q.astype(jnp.bfloat16), k.astype(jnp.bfloat16),
                    preferred_element_type=jnp.float32) * scale
    sc = sc - jnp.max(sc, axis=-1, keepdims=True)
    e = jnp.exp(sc)
    p = e * pl.reciprocal(jnp.sum(e, axis=-1, keepdims=True), approx=True)
    ctx = jnp.einsum("sqk,skd->sqd",
                     p.astype(jnp.bfloat16), v.astype(jnp.bfloat16),
                     preferred_element_type=jnp.float32).reshape(Sb * N, Dp)
    attn = jnp.dot(ctx.astype(jnp.bfloat16), wo_ref[...],
                   preferred_element_type=jnp.float32) + dvec_ref[3]

    # --- residual + LayerNorm1 (stats over real D; padded lanes are zero) ---
    h = x + attn
    mu = jnp.sum(h, axis=-1, keepdims=True) * inv_d
    var = jnp.maximum(jnp.sum(h * h, axis=-1, keepdims=True) * inv_d - mu * mu, 0.0)
    h = (h - mu) * jax.lax.rsqrt(var + eps) * dvec_ref[4] + dvec_ref[5]

    # --- feed-forward (relu) ---
    f = jnp.maximum(jnp.dot(h.astype(jnp.bfloat16), w1_ref[...],
                            preferred_element_type=jnp.float32) + c1_ref[0], 0.0)
    f = jnp.dot(f.astype(jnp.bfloat16), w2_ref[...],
                preferred_element_type=jnp.float32) + dvec_ref[6]

    # --- residual + LayerNorm2 ---
    y = h + f
    mu = jnp.sum(y, axis=-1, keepdims=True) * inv_d
    var = jnp.maximum(jnp.sum(y * y, axis=-1, keepdims=True) * inv_d - mu * mu, 0.0)
    y = (y - mu) * jax.lax.rsqrt(var + eps) * dvec_ref[7] + dvec_ref[8]

    o_ref[...] = y.reshape(Sb, N, Dp).astype(o_ref.dtype)


def logits_kernel(h_ref, w_ref, b_ref, o_ref):
    """One lane-dense vocab tile of the SampledSoftmax eval path:
    logits = h @ W_ss^T + b_ss (bf16 operands, f32 accumulation)."""
    o_ref[...] = (jnp.dot(h_ref[...], w_ref[...],
                          preferred_element_type=jnp.float32) + b_ref[...])


# --------------------------------------------------------------------------
# Wrappers around pallas_call
# --------------------------------------------------------------------------
def encoder_stack_pallas(x, wqkv, wo, w1, w2, dvecs, c1, *, d_real, s_block=None):
    """x: [S, N, Dp] float32 (Dp multiple of 128). Applies all T stacked
    sub-layers of one U2GNN layer in a single pallas_call."""
    S, N, Dp = x.shape
    T = wqkv.shape[0]
    FFp = w1.shape[2]
    Sb = S if s_block is None else s_block
    assert S % Sb == 0

    kern = functools.partial(encoder_stack_kernel, d_real=float(d_real))
    return pl.pallas_call(
        kern,
        out_shape=jax.ShapeDtypeStruct((S, N, Dp), jnp.float32),
        grid=(S // Sb, T),
        in_specs=[
            pl.BlockSpec((Sb, N, Dp), lambda s, t: (s, 0, 0)),          # activations
            pl.BlockSpec((None, Dp, 3 * Dp), lambda s, t: (t, 0, 0)),   # fused QKV
            pl.BlockSpec((None, Dp, Dp), lambda s, t: (t, 0, 0)),       # out proj
            pl.BlockSpec((None, Dp, FFp), lambda s, t: (t, 0, 0)),      # ffn W1
            pl.BlockSpec((None, FFp, Dp), lambda s, t: (t, 0, 0)),      # ffn W2
            pl.BlockSpec((None, 16, Dp), lambda s, t: (t, 0, 0)),       # packed D-vecs
            pl.BlockSpec((None, 1, FFp), lambda s, t: (t, 0, 0)),       # ffn bias1
        ],
        # Output block index constant along t -> slab stays resident in VMEM
        # across all sub-layers (written back to HBM once per s-block).
        out_specs=pl.BlockSpec((Sb, N, Dp), lambda s, t: (s, 0, 0)),
        compiler_params=pltpu.CompilerParams(
            dimension_semantics=("parallel", "arbitrary")),
        # NOTE(v7x): at production D/ff sizes, re-derive Sb from the 64 MiB
        # VMEM ceiling and set vmem_limit_bytes explicitly; not needed here.
    )(x, wqkv, wo, w1, w2, dvecs, c1)


def logits_pallas(h_bf16, w_t_bf16, b_p):
    """h_bf16: [N, Hp] bf16; w_t_bf16: [Hp, Vp] bf16; b_p: [1, Vp] f32.
    Vocab axis tiled lane-dense (multiple of 128) and marked parallel."""
    N, Hp = h_bf16.shape
    Vp = w_t_bf16.shape[1]
    if Vp % 512 == 0:
        tv = 512
    elif Vp % 256 == 0:
        tv = 256
    else:
        tv = 128
    return pl.pallas_call(
        logits_kernel,
        out_shape=jax.ShapeDtypeStruct((N, Vp), jnp.float32),
        grid=(Vp // tv,),
        in_specs=[pl.BlockSpec((N, Hp), lambda v: (0, 0)),
                  pl.BlockSpec((Hp, tv), lambda v: (0, v)),
                  pl.BlockSpec((1, tv), lambda v: (0, v))],
        out_specs=pl.BlockSpec((N, tv), lambda v: (0, v)),
        compiler_params=pltpu.CompilerParams(dimension_semantics=("parallel",)),
    )(h_bf16, w_t_bf16, b_p)


# --------------------------------------------------------------------------
# Parameter init (deterministic, synthetic) — mirrors module __init__ shapes,
# then packs/pads/stacks them into the kernel-friendly layout.
# --------------------------------------------------------------------------
def init_params(key, vocab_size, D, ff, num_self_att_layers, num_u2gnn_layers):
    Dp = _round_up(D, 128)
    FFp = _round_up(ff, 128)
    Vp = _round_up(vocab_size, 128)
    L, T = num_u2gnn_layers, num_self_att_layers

    params = {"enc": []}
    for _ in range(L):
        wqkv_l, wo_l, w1_l, w2_l, dv_l, c1_l = [], [], [], [], [], []
        for _ in range(T):
            key, k_in, k_ib, k_o, k_w1, k_b1, k_w2, k_b2 = jax.random.split(key, 8)
            in_proj_w = jax.random.normal(k_in, (3 * D, D), jnp.float32) / math.sqrt(D)
            in_proj_b = jax.random.normal(k_ib, (3 * D,), jnp.float32) * 0.02
            wo = jax.random.normal(k_o, (D, D), jnp.float32) / math.sqrt(D)
            w1 = jax.random.normal(k_w1, (ff, D), jnp.float32) / math.sqrt(D)
            b1 = jax.random.normal(k_b1, (ff,), jnp.float32) * 0.02
            w2 = jax.random.normal(k_w2, (D, ff), jnp.float32) / math.sqrt(ff)
            b2 = jax.random.normal(k_b2, (D,), jnp.float32) * 0.02

            # Fused QKV weight, each of q/k/v occupying its own Dp-wide block.
            wqkv_p = jnp.zeros((Dp, 3 * Dp), jnp.float32)
            for j in range(3):
                wqkv_p = wqkv_p.at[:D, j * Dp:j * Dp + D].set(
                    in_proj_w[j * D:(j + 1) * D].T)
            wo_p = jnp.zeros((Dp, Dp), jnp.float32).at[:D, :D].set(wo.T)
            w1_p = jnp.zeros((Dp, FFp), jnp.float32).at[:D, :ff].set(w1.T)
            w2_p = jnp.zeros((FFp, Dp), jnp.float32).at[:ff, :D].set(w2.T)

            # Packed D-sized vectors (padded lanes stay zero -> padding inert).
            dv = jnp.zeros((16, Dp), jnp.float32)
            dv = dv.at[0, :D].set(in_proj_b[0:D])            # bq
            dv = dv.at[1, :D].set(in_proj_b[D:2 * D])        # bk
            dv = dv.at[2, :D].set(in_proj_b[2 * D:3 * D])    # bv
            # row 3: out-proj bias (zero init)
            dv = dv.at[4, :D].set(1.0)                       # gamma1
            # row 5: beta1 (zero)
            dv = dv.at[6, :D].set(b2)                        # linear2 bias
            dv = dv.at[7, :D].set(1.0)                       # gamma2
            # row 8: beta2 (zero)
            c1_p = jnp.zeros((1, FFp), jnp.float32).at[0, :ff].set(b1)

            wqkv_l.append(wqkv_p); wo_l.append(wo_p); w1_l.append(w1_p)
            w2_l.append(w2_p); dv_l.append(dv); c1_l.append(c1_p)

        params["enc"].append({
            "wqkv": jnp.stack(wqkv_l).astype(jnp.bfloat16),   # [T, Dp, 3Dp]
            "wo": jnp.stack(wo_l).astype(jnp.bfloat16),       # [T, Dp, Dp]
            "w1": jnp.stack(w1_l).astype(jnp.bfloat16),       # [T, Dp, FFp]
            "w2": jnp.stack(w2_l).astype(jnp.bfloat16),       # [T, FFp, Dp]
            "dvecs": jnp.stack(dv_l),                         # [T, 16, Dp] f32
            "c1": jnp.stack(c1_l),                            # [T, 1, FFp] f32
        })

    # SampledSoftmax (eval full-softmax path), laid out for the padded h.
    nhid = D * L
    key, k_ssw, k_ssb = jax.random.split(key, 3)
    ss_w = jax.random.normal(k_ssw, (vocab_size, nhid), jnp.float32) / math.sqrt(nhid)
    ss_b = jax.random.normal(k_ssb, (vocab_size,), jnp.float32) * 0.02
    ss_w_t = jnp.zeros((L * Dp, Vp), jnp.float32)
    for l in range(L):
        ss_w_t = ss_w_t.at[l * Dp:l * Dp + D, :vocab_size].set(
            ss_w[:, l * D:(l + 1) * D].T)
    params["ss_w_t"] = ss_w_t.astype(jnp.bfloat16)            # [L*Dp, Vp] bf16
    params["ss_b"] = jnp.zeros((1, Vp), jnp.float32).at[0, :vocab_size].set(ss_b)
    return params


# --------------------------------------------------------------------------
# Forward pass (glue in plain JAX, hot path in Pallas)
# --------------------------------------------------------------------------
def u2gnn_forward(X_concat, input_x, input_y, params,
                  num_u2gnn_layers, num_self_att_layers):
    del input_y  # TODO(synk): training-mode SampledSoftmax (LogUniform negative
    #             sampling) has no clean Pallas equivalent; eval full-logits path used.
    del num_self_att_layers  # baked into the stacked weight shapes
    N, D = X_concat.shape
    V = N                                           # vocab == #nodes (re-embedding)
    Dp = params["enc"][0]["wqkv"].shape[1]

    Xp = jnp.zeros((N, Dp), jnp.float32).at[:, :D].set(X_concat)
    idx = input_x.T                                 # [S, N]
    x = jnp.take(Xp, idx, axis=0)                   # [S, N, Dp]

    outs = []
    for l in range(num_u2gnn_layers):
        p = params["enc"][l]
        x = encoder_stack_pallas(x, p["wqkv"], p["wo"], p["w1"], p["w2"],
                                 p["dvecs"], p["c1"], d_real=D)
        # torch.split(..., 1, dim=1)[0].squeeze(1)  ==  column s=0  -> [N, Dp]
        out_Tr = x[0]
        outs.append(out_Tr)
        if l + 1 < num_u2gnn_layers:
            # TODO(synk): could be fused into the next pallas_call via scalar-prefetch
            # row gather; left as a tiny XLA gather on the [N, Dp] slab.
            x = jnp.take(out_Tr, idx, axis=0)

    h = jnp.concatenate(outs, axis=1)               # [N, L*Dp] (padded layout)
    # self.dropouts: eval mode -> identity
    logits_p = logits_pallas(h.astype(jnp.bfloat16), params["ss_w_t"], params["ss_b"])
    return logits_p[:, :V]


# --------------------------------------------------------------------------
if __name__ == "__main__":
    # Small, module-consistent shapes.
    vocab_size = 16          # == number of nodes (required by the re-embedding step)
    feature_dim_size = 32
    ff_hidden_size = 64
    sampled_num = 4          # unused in the eval (full-softmax) path
    num_self_att_layers = 2
    num_U2GNN_layers = 2
    seq_len = 8              # neighbors sampled per node (+ self)

    key = jax.random.PRNGKey(0)
    k_x, k_idx, k_y, k_params = jax.random.split(key, 4)

    X_concat = jax.random.normal(k_x, (vocab_size, feature_dim_size), jnp.float32)
    input_x = jax.random.randint(k_idx, (vocab_size, seq_len), 0, vocab_size, jnp.int32)
    input_y = jax.random.randint(k_y, (vocab_size,), 0, vocab_size, jnp.int32)

    params = init_params(k_params, vocab_size, feature_dim_size, ff_hidden_size,
                         num_self_att_layers, num_U2GNN_layers)

    fwd = jax.jit(functools.partial(u2gnn_forward,
                                    num_u2gnn_layers=num_U2GNN_layers,
                                    num_self_att_layers=num_self_att_layers))
    logits = fwd(X_concat, input_x, input_y, params)
    logits = jax.block_until_ready(logits)
    assert logits.shape == (vocab_size, vocab_size)
    assert bool(jnp.all(jnp.isfinite(logits)))
    print("KERNEL_OK")
</pallas_src>

<mosaic_0001>
module attributes {stable_mosaic.version = 11 : i64} {
  func.func @encoder_stack_kernel(%arg0: i32, %arg1: i32, %arg2: memref<8x16x128xf32, #tpu.memory_space<vmem>>, %arg3: memref<1x128x384xbf16, #tpu.memory_space<vmem>>, %arg4: memref<1x128x128xbf16, #tpu.memory_space<vmem>>, %arg5: memref<1x128x128xbf16, #tpu.memory_space<vmem>>, %arg6: memref<1x128x128xbf16, #tpu.memory_space<vmem>>, %arg7: memref<1x16x128xf32, #tpu.memory_space<vmem>>, %arg8: memref<1x1x128xf32, #tpu.memory_space<vmem>>, %arg9: memref<8x16x128xf32, #tpu.memory_space<vmem>>) attributes {dimension_semantics = [#tpu.dimension_semantics<parallel>, #tpu.dimension_semantics<arbitrary>], iteration_bounds = array<i64: 1, 2>, scalar_prefetch = 0 : i64, scratch_operands = 0 : i64, tpu.core_type = #tpu.core_type<tc>, window_params = [{transform_indices = @transform_0, window_bounds = array<i64: 8, 16, 128>}, {transform_indices = @transform_1, window_bounds = array<i64: 1, 128, 384>}, {transform_indices = @transform_2, window_bounds = array<i64: 1, 128, 128>}, {transform_indices = @transform_3, window_bounds = array<i64: 1, 128, 128>}, {transform_indices = @transform_4, window_bounds = array<i64: 1, 128, 128>}, {transform_indices = @transform_5, window_bounds = array<i64: 1, 16, 128>}, {transform_indices = @transform_6, window_bounds = array<i64: 1, 1, 128>}, {transform_indices = @transform_7, window_bounds = array<i64: 8, 16, 128>}]} {
    %c0_i32 = arith.constant 0 : i32
    %0 = arith.cmpi eq, %arg1, %c0_i32 : i32
    %1 = arith.extui %0 : i1 to i32
    %c0_i32_0 = arith.constant 0 : i32
    %2 = arith.cmpi ne, %1, %c0_i32_0 : i32
    scf.if %2 {
      %c0_61 = arith.constant 0 : index
      %c0_62 = arith.constant 0 : index
      %c0_63 = arith.constant 0 : index
      %142 = vector.load %arg2[%c0_61, %c0_62, %c0_63] : memref<8x16x128xf32, #tpu.memory_space<vmem>>, vector<8x16x128xf32>
      %c0_64 = arith.constant 0 : index
      %c0_65 = arith.constant 0 : index
      %c0_66 = arith.constant 0 : index
      %143 = vector.load %arg9[%c0_64, %c0_65, %c0_66] : memref<8x16x128xf32, #tpu.memory_space<vmem>>, vector<8x16x128xf32>
      tpu.vector_store %arg9[%c0_64, %c0_65, %c0_66], %142 {strides = array<i32>} : memref<8x16x128xf32, #tpu.memory_space<vmem>>, vector<8x16x128xf32>,
    } else {
    }
    %c0 = arith.constant 0 : index
    %c0_1 = arith.constant 0 : index
    %c0_2 = arith.constant 0 : index
    %3 = vector.load %arg9[%c0, %c0_1, %c0_2] : memref<8x16x128xf32, #tpu.memory_space<vmem>>, vector<8x16x128xf32>
    %4 = vector.shape_cast %3 : vector<8x16x128xf32> to vector<128x128xf32>
    %5 = arith.truncf %4 : vector<128x128xf32> to vector<128x128xbf16>
    %c0_3 = arith.constant 0 : index
    %c0_4 = arith.constant 0 : index
    %c0_5 = arith.constant 0 : index
    %6 = vector.load %arg3[%c0_3, %c0_4, %c0_5] : memref<1x128x384xbf16, #tpu.memory_space<vmem>>, vector<1x128x384xbf16>
    %7 = vector.shape_cast %6 : vector<1x128x384xbf16> to vector<128x384xbf16>
    %cst = arith.constant dense<0.000000e+00> : vector<128x384xf32>
    %8 = tpu.matmul %5, %7, %cst {dimension_numbers = #tpu.dot_dimension_numbers<[1], [0], [0], [1], [0, 0, 1, 1], [], []>} : vector<128x128xbf16>, vector<128x384xbf16>, vector<128x384xf32> -> vector<128x384xf32>
    %9 = vector.extract_strided_slice %8 {offsets = [0, 0], sizes = [128, 128], strides = [1, 1]} : vector<128x384xf32> to vector<128x128xf32>
    %c0_6 = arith.constant 0 : index
    %c0_7 = arith.constant 0 : index
    %c0_8 = arith.constant 0 : index
    %10 = vector.load %arg7[%c0_6, %c0_7, %c0_8] : memref<1x16x128xf32, #tpu.memory_space<vmem>>, vector<1x1x128xf32>
    %11 = vector.shape_cast %10 : vector<1x1x128xf32> to vector<128xf32>
    %12 = vector.shape_cast %11 : vector<128xf32> to vector<1x128xf32>
    %13 = vector.broadcast %12 : vector<1x128xf32> to vector<128x128xf32>
    %14 = arith.addf %9, %13 : vector<128x128xf32>
    %15 = vector.shape_cast %14 : vector<128x128xf32> to vector<8x16x128xf32>
    %16 = vector.extract_strided_slice %8 {offsets = [0, 128], sizes = [128, 128], strides = [1, 1]} : vector<128x384xf32> to vector<128x128xf32>
    %c0_9 = arith.constant 0 : index
    %c1 = arith.constant 1 : index
    %c0_10 = arith.constant 0 : index
    %17 = vector.load %arg7[%c0_9, %c1, %c0_10] : memref<1x16x128xf32, #tpu.memory_space<vmem>>, vector<1x1x128xf32>
    %18 = vector.shape_cast %17 : vector<1x1x128xf32> to vector<128xf32>
    %19 = vector.shape_cast %18 : vector<128xf32> to vector<1x128xf32>
    %20 = vector.broadcast %19 : vector<1x128xf32> to vector<128x128xf32>
    %21 = arith.addf %16, %20 : vector<128x128xf32>
    %22 = vector.shape_cast %21 : vector<128x128xf32> to vector<8x16x128xf32>
    %23 = vector.extract_strided_slice %8 {offsets = [0, 256], sizes = [128, 128], strides = [1, 1]} : vector<128x384xf32> to vector<128x128xf32>
    %c0_11 = arith.constant 0 : index
    %c2 = arith.constant 2 : index
    %c0_12 = arith.constant 0 : index
    %24 = vector.load %arg7[%c0_11, %c2, %c0_12] : memref<1x16x128xf32, #tpu.memory_space<vmem>>, vector<1x1x128xf32>
    %25 = vector.shape_cast %24 : vector<1x1x128xf32> to vector<128xf32>
    %26 = vector.shape_cast %25 : vector<128xf32> to vector<1x128xf32>
    %27 = vector.broadcast %26 : vector<1x128xf32> to vector<128x128xf32>
    %28 = arith.addf %23, %27 : vector<128x128xf32>
    %29 = vector.shape_cast %28 : vector<128x128xf32> to vector<8x16x128xf32>
    %30 = arith.truncf %15 : vector<8x16x128xf32> to vector<8x16x128xbf16>
    %31 = arith.truncf %22 : vector<8x16x128xf32> to vector<8x16x128xbf16>
    "tpu.trace_start"() <{level = 10 : i32, message = "sqd,skd->sqk"}> : () -> ()
    %cst_13 = arith.constant dense<0.000000e+00> : vector<8x16x16xf32>
    %32 = tpu.matmul %30, %31, %cst_13 {dimension_numbers = #tpu.dot_dimension_numbers<[2], [2], [1], [1], [0, 0, 0, 1, 1, 1], [0], [0]>} : vector<8x16x128xbf16>, vector<8x16x128xbf16>, vector<8x16x16xf32> -> vector<8x16x16xf32>
    "tpu.trace_stop"() : () -> ()
    %cst_14 = arith.constant 0.176776692 : f32
    %33 = vector.broadcast %cst_14 : f32 to vector<8x16x16xf32>
    %34 = arith.mulf %32, %33 : vector<8x16x16xf32>
    %cst_15 = arith.constant dense<0xFF800000> : vector<8x16xf32>
    %35 = vector.multi_reduction <maximumf>, %34, %cst_15 [2] : vector<8x16x16xf32> to vector<8x16xf32>
    %36 = vector.shape_cast %35 : vector<8x16xf32> to vector<8x16x1xf32>
    %37 = vector.broadcast %36 : vector<8x16x1xf32> to vector<8x16x16xf32>
    %38 = arith.subf %34, %37 : vector<8x16x16xf32>
    %39 = math.exp %38 : vector<8x16x16xf32>
    %cst_16 = arith.constant dense<0.000000e+00> : vector<8x16xf32>
    %40 = vector.multi_reduction <add>, %39, %cst_16 [2] : vector<8x16x16xf32> to vector<8x16xf32>
    %41 = vector.shape_cast %40 : vector<8x16xf32> to vector<8x16x1xf32>
    %42 = tpu.reciprocal %41 {approx = true} : vector<8x16x1xf32> -> vector<8x16x1xf32>
    %43 = vector.broadcast %42 : vector<8x16x1xf32> to vector<8x16x16xf32>
    %44 = arith.mulf %39, %43 : vector<8x16x16xf32>
    %45 = arith.truncf %44 : vector<8x16x16xf32> to vector<8x16x16xbf16>
    %46 = arith.truncf %29 : vector<8x16x128xf32> to vector<8x16x128xbf16>
    "tpu.trace_start"() <{level = 10 : i32, message = "sqk,skd->sqd"}> : () -> ()
    %cst_17 = arith.constant dense<0.000000e+00> : vector<8x16x128xf32>
    %47 = tpu.matmul %45, %46, %cst_17 {dimension_numbers = #tpu.dot_dimension_numbers<[2], [1], [1], [2], [0, 0, 0, 1, 1, 2], [0], [0]>} : vector<8x16x16xbf16>, vector<8x16x128xbf16>, vector<8x16x128xf32> -> vector<8x16x128xf32>
    "tpu.trace_stop"() : () -> ()
    %48 = vector.shape_cast %47 : vector<8x16x128xf32> to vector<128x128xf32>
    %49 = arith.truncf %48 : vector<128x128xf32> to vector<128x128xbf16>
    %c0_18 = arith.constant 0 : index
    %c0_19 = arith.constant 0 : index
    %c0_20 = arith.constant 0 : index
    %50 = vector.load %arg4[%c0_18, %c0_19, %c0_20] : memref<1x128x128xbf16, #tpu.memory_space<vmem>>, vector<1x128x128xbf16>
    %51 = vector.shape_cast %50 : vector<1x128x128xbf16> to vector<128x128xbf16>
    %cst_21 = arith.constant dense<0.000000e+00> : vector<128x128xf32>
    %52 = tpu.matmul %49, %51, %cst_21 {dimension_numbers = #tpu.dot_dimension_numbers<[1], [0], [0], [1], [0, 0, 1, 1], [], []>} : vector<128x128xbf16>, vector<128x128xbf16>, vector<128x128xf32> -> vector<128x128xf32>
    %c0_22 = arith.constant 0 : index
    %c3 = arith.constant 3 : index
    %c0_23 = arith.constant 0 : index
    %53 = vector.load %arg7[%c0_22, %c3, %c0_23] : memref<1x16x128xf32, #tpu.memory_space<vmem>>, vector<1x1x128xf32>
    %54 = vector.shape_cast %53 : vector<1x1x128xf32> to vector<128xf32>
    %55 = vector.shape_cast %54 : vector<128xf32> to vector<1x128xf32>
    %56 = vector.broadcast %55 : vector<1x128xf32> to vector<128x128xf32>
    %57 = arith.addf %52, %56 : vector<128x128xf32>
    %58 = arith.addf %4, %57 : vector<128x128xf32>
    %cst_24 = arith.constant dense<0.000000e+00> : vector<128xf32>
    %59 = vector.multi_reduction <add>, %58, %cst_24 [1] : vector<128x128xf32> to vector<128xf32>
    %60 = vector.shape_cast %59 : vector<128xf32> to vector<128x1xf32>
    %cst_25 = arith.constant 3.125000e-02 : f32
    %61 = vector.broadcast %cst_25 : f32 to vector<128x1xf32>
    %62 = arith.mulf %60, %61 : vector<128x1xf32>
    %63 = arith.mulf %58, %58 : vector<128x128xf32>
    %cst_26 = arith.constant dense<0.000000e+00> : vector<128xf32>
    %64 = vector.multi_reduction <add>, %63, %cst_26 [1] : vector<128x128xf32> to vector<128xf32>
    %65 = vector.shape_cast %64 : vector<128xf32> to vector<128x1xf32>
    %cst_27 = arith.constant 3.125000e-02 : f32
    %66 = vector.broadcast %cst_27 : f32 to vector<128x1xf32>
    %67 = arith.mulf %65, %66 : vector<128x1xf32>
    %68 = arith.mulf %62, %62 : vector<128x1xf32>
    %69 = arith.subf %67, %68 : vector<128x1xf32>
    %cst_28 = arith.constant 0.000000e+00 : f32
    %70 = vector.broadcast %cst_28 : f32 to vector<128x1xf32>
    %71 = arith.maximumf %69, %70 : vector<128x1xf32>
    %72 = vector.broadcast %62 : vector<128x1xf32> to vector<128x128xf32>
    %73 = arith.subf %58, %72 : vector<128x128xf32>
    %cst_29 = arith.constant 9.99999974E-6 : f32
    %74 = vector.broadcast %cst_29 : f32 to vector<128x1xf32>
    %75 = arith.addf %71, %74 : vector<128x1xf32>
    %76 = math.rsqrt %75 : vector<128x1xf32>
    %77 = vector.broadcast %76 : vector<128x1xf32> to vector<128x128xf32>
    %78 = arith.mulf %73, %77 : vector<128x128xf32>
    %c0_30 = arith.constant 0 : index
    %c4 = arith.constant 4 : index
    %c0_31 = arith.constant 0 : index
    %79 = vector.load %arg7[%c0_30, %c4, %c0_31] : memref<1x16x128xf32, #tpu.memory_space<vmem>>, vector<1x1x128xf32>
    %80 = vector.shape_cast %79 : vector<1x1x128xf32> to vector<128xf32>
    %81 = vector.shape_cast %80 : vector<128xf32> to vector<1x128xf32>
    %82 = vector.broadcast %81 : vector<1x128xf32> to vector<128x128xf32>
    %83 = arith.mulf %78, %82 : vector<128x128xf32>
    %c0_32 = arith.constant 0 : index
    %c5 = arith.constant 5 : index
    %c0_33 = arith.constant 0 : index
    %84 = vector.load %arg7[%c0_32, %c5, %c0_33] : memref<1x16x128xf32, #tpu.memory_space<vmem>>, vector<1x1x128xf32>
    %85 = vector.shape_cast %84 : vector<1x1x128xf32> to vector<128xf32>
    %86 = vector.shape_cast %85 : vector<128xf32> to vector<1x128xf32>
    %87 = vector.broadcast %86 : vector<1x128xf32> to vector<128x128xf32>
    %88 = arith.addf %83, %87 : vector<128x128xf32>
    %89 = arith.truncf %88 : vector<128x128xf32> to vector<128x128xbf16>
    %c0_34 = arith.constant 0 : index
    %c0_35 = arith.constant 0 : index
    %c0_36 = arith.constant 0 : index
    %90 = vector.load %arg5[%c0_34, %c0_35, %c0_36] : memref<1x128x128xbf16, #tpu.memory_space<vmem>>, vector<1x128x128xbf16>
    %91 = vector.shape_cast %90 : vector<1x128x128xbf16> to vector<128x128xbf16>
    %cst_37 = arith.constant dense<0.000000e+00> : vector<128x128xf32>
    %92 = tpu.matmul %89, %91, %cst_37 {dimension_numbers = #tpu.dot_dimension_numbers<[1], [0], [0], [1], [0, 0, 1, 1], [], []>} : vector<128x128xbf16>, vector<128x128xbf16>, vector<128x128xf32> -> vector<128x128xf32>
    %c0_38 = arith.constant 0 : index
    %c0_39 = arith.constant 0 : index
    %c0_40 = arith.constant 0 : index
    %93 = vector.load %arg8[%c0_38, %c0_39, %c0_40] : memref<1x1x128xf32, #tpu.memory_space<vmem>>, vector<1x1x128xf32>
    %94 = vector.shape_cast %93 : vector<1x1x128xf32> to vector<128xf32>
    %95 = vector.shape_cast %94 : vector<128xf32> to vector<1x128xf32>
    %96 = vector.broadcast %95 : vector<1x128xf32> to vector<128x128xf32>
    %97 = arith.addf %92, %96 : vector<128x128xf32>
    %cst_41 = arith.constant 0.000000e+00 : f32
    %98 = vector.broadcast %cst_41 : f32 to vector<128x128xf32>
    %99 = arith.maximumf %97, %98 : vector<128x128xf32>
    %100 = arith.truncf %99 : vector<128x128xf32> to vector<128x128xbf16>
    %c0_42 = arith.constant 0 : index
    %c0_43 = arith.constant 0 : index
    %c0_44 = arith.constant 0 : index
    %101 = vector.load %arg6[%c0_42, %c0_43, %c0_44] : memref<1x128x128xbf16, #tpu.memory_space<vmem>>, vector<1x128x128xbf16>
    %102 = vector.shape_cast %101 : vector<1x128x128xbf16> to vector<128x128xbf16>
    %cst_45 = arith.constant dense<0.000000e+00> : vector<128x128xf32>
    %103 = tpu.matmul %100, %102, %cst_45 {dimension_numbers = #tpu.dot_dimension_numbers<[1], [0], [0], [1], [0, 0, 1, 1], [], []>} : vector<128x128xbf16>, vector<128x128xbf16>, vector<128x128xf32> -> vector<128x128xf32>
    %c0_46 = arith.constant 0 : index
    %c6 = arith.constant 6 : index
    %c0_47 = arith.constant 0 : index
    %104 = vector.load %arg7[%c0_46, %c6, %c0_47] : memref<1x16x128xf32, #tpu.memory_space<vmem>>, vector<1x1x128xf32>
    %105 = vector.shape_cast %104 : vector<1x1x128xf32> to vector<128xf32>
    %106 = vector.shape_cast %105 : vector<128xf32> to vector<1x128xf32>
    %107 = vector.broadcast %106 : vector<1x128xf32> to vector<128x128xf32>
    %108 = arith.addf %103, %107 : vector<128x128xf32>
    %109 = arith.addf %88, %108 : vector<128x128xf32>
    %cst_48 = arith.constant dense<0.000000e+00> : vector<128xf32>
    %110 = vector.multi_reduction <add>, %109, %cst_48 [1] : vector<128x128xf32> to vector<128xf32>
    %111 = vector.shape_cast %110 : vector<128xf32> to vector<128x1xf32>
    %cst_49 = arith.constant 3.125000e-02 : f32
    %112 = vector.broadcast %cst_49 : f32 to vector<128x1xf32>
    %113 = arith.mulf %111, %112 : vector<128x1xf32>
    %114 = arith.mulf %109, %109 : vector<128x128xf32>
    %cst_50 = arith.constant dense<0.000000e+00> : vector<128xf32>
    %115 = vector.multi_reduction <add>, %114, %cst_50 [1] : vector<128x128xf32> to vector<128xf32>
    %116 = vector.shape_cast %115 : vector<128xf32> to vector<128x1xf32>
    %cst_51 = arith.constant 3.125000e-02 : f32
    %117 = vector.broadcast %cst_51 : f32 to vector<128x1xf32>
    %118 = arith.mulf %116, %117 : vector<128x1xf32>
    %119 = arith.mulf %113, %113 : vector<128x1xf32>
    %120 = arith.subf %118, %119 : vector<128x1xf32>
    %cst_52 = arith.constant 0.000000e+00 : f32
    %121 = vector.broadcast %cst_52 : f32 to vector<128x1xf32>
    %122 = arith.maximumf %120, %121 : vector<128x1xf32>
    %123 = vector.broadcast %113 : vector<128x1xf32> to vector<128x128xf32>
    %124 = arith.subf %109, %123 : vector<128x128xf32>
    %cst_53 = arith.constant 9.99999974E-6 : f32
    %125 = vector.broadcast %cst_53 : f32 to vector<128x1xf32>
    %126 = arith.addf %122, %125 : vector<128x1xf32>
    %127 = math.rsqrt %126 : vector<128x1xf32>
    %128 = vector.broadcast %127 : vector<128x1xf32> to vector<128x128xf32>
    %129 = arith.mulf %124, %128 : vector<128x128xf32>
    %c0_54 = arith.constant 0 : index
    %c7 = arith.constant 7 : index
    %c0_55 = arith.constant 0 : index
    %130 = vector.load %arg7[%c0_54, %c7, %c0_55] : memref<1x16x128xf32, #tpu.memory_space<vmem>>, vector<1x1x128xf32>
    %131 = vector.shape_cast %130 : vector<1x1x128xf32> to vector<128xf32>
    %132 = vector.shape_cast %131 : vector<128xf32> to vector<1x128xf32>
    %133 = vector.broadcast %132 : vector<1x128xf32> to vector<128x128xf32>
    %134 = arith.mulf %129, %133 : vector<128x128xf32>
    %c0_56 = arith.constant 0 : index
    %c8 = arith.constant 8 : index
    %c0_57 = arith.constant 0 : index
    %135 = vector.load %arg7[%c0_56, %c8, %c0_57] : memref<1x16x128xf32, #tpu.memory_space<vmem>>, vector<1x1x128xf32>
    %136 = vector.shape_cast %135 : vector<1x1x128xf32> to vector<128xf32>
    %137 = vector.shape_cast %136 : vector<128xf32> to vector<1x128xf32>
    %138 = vector.broadcast %137 : vector<1x128xf32> to vector<128x128xf32>
    %139 = arith.addf %134, %138 : vector<128x128xf32>
    %140 = vector.shape_cast %139 : vector<128x128xf32> to vector<8x16x128xf32>
    %c0_58 = arith.constant 0 : index
    %c0_59 = arith.constant 0 : index
    %c0_60 = arith.constant 0 : index
    %141 = vector.load %arg9[%c0_58, %c0_59, %c0_60] : memref<8x16x128xf32, #tpu.memory_space<vmem>>, vector<8x16x128xf32>
    tpu.vector_store %arg9[%c0_58, %c0_59, %c0_60], %140 {strides = array<i32>} : memref<8x16x128xf32, #tpu.memory_space<vmem>>, vector<8x16x128xf32>,
    return
  }
  func.func @transform_0(%arg0: i32, %arg1: i32) -> (i32, i32, i32) {
    %c0_i32 = arith.constant 0 : i32
    %c0_i32_0 = arith.constant 0 : i32
    %c0_i32_1 = arith.constant 0 : i32
    return %arg0, %c0_i32, %c0_i32_0 : i32, i32, i32
  }
  func.func @transform_1(%arg0: i32, %arg1: i32) -> (i32, i32, i32) {
    %c0_i32 = arith.constant 0 : i32
    %c0_i32_0 = arith.constant 0 : i32
    %c0_i32_1 = arith.constant 0 : i32
    return %arg1, %c0_i32, %c0_i32_0 : i32, i32, i32
  }
  func.func @transform_2(%arg0: i32, %arg1: i32) -> (i32, i32, i32) {
    %c0_i32 = arith.constant 0 : i32
    %c0_i32_0 = arith.constant 0 : i32
    %c0_i32_1 = arith.constant 0 : i32
    return %arg1, %c0_i32, %c0_i32_0 : i32, i32, i32
  }
  func.func @transform_3(%arg0: i32, %arg1: i32) -> (i32, i32, i32) {
    %c0_i32 = arith.constant 0 : i32
    %c0_i32_0 = arith.constant 0 : i32
    %c0_i32_1 = arith.constant 0 : i32
    return %arg1, %c0_i32, %c0_i32_0 : i32, i32, i32
  }
  func.func @transform_4(%arg0: i32, %arg1: i32) -> (i32, i32, i32) {
    %c0_i32 = arith.constant 0 : i32
    %c0_i32_0 = arith.constant 0 : i32
    %c0_i32_1 = arith.constant 0 : i32
    return %arg1, %c0_i32, %c0_i32_0 : i32, i32, i32
  }
  func.func @transform_5(%arg0: i32, %arg1: i32) -> (i32, i32, i32) {
    %c0_i32 = arith.constant 0 : i32
    %c0_i32_0 = arith.constant 0 : i32
    %c0_i32_1 = arith.constant 0 : i32
    return %arg1, %c0_i32, %c0_i32_0 : i32, i32, i32
  }
  func.func @transform_6(%arg0: i32, %arg1: i32) -> (i32, i32, i32) {
    %c0_i32 = arith.constant 0 : i32
    %c0_i32_0 = arith.constant 0 : i32
    %c0_i32_1 = arith.constant 0 : i32
    return %arg1, %c0_i32, %c0_i32_0 : i32, i32, i32
  }
  func.func @transform_7(%arg0: i32, %arg1: i32) -> (i32, i32, i32) {
    %c0_i32 = arith.constant 0 : i32
    %c0_i32_0 = arith.constant 0 : i32
    %c0_i32_1 = arith.constant 0 : i32
    return %arg0, %c0_i32, %c0_i32_0 : i32, i32, i32
  }
}

module attributes {stable_mosaic.version = 11 : i64} {
  func.func @logits_kernel(%arg0: i32, %arg1: memref<16x256xbf16, #tpu.memory_space<vmem>>, %arg2: memref<256x128xbf16, #tpu.memory_space<vmem>>, %arg3: memref<1x128xf32, #tpu.memory_space<vmem>>, %arg4: memref<16x128xf32, #tpu.memory_space<vmem>>) attributes {dimension_semantics = [#tpu.dimension_semantics<parallel>], iteration_bounds = array<i64: 1>, scalar_prefetch = 0 : i64, scratch_operands = 0 : i64, tpu.core_type = #tpu.core_type<tc>, window_params = [{pipeline_mode = #tpu.pipeline_mode<synchronous>, transform_indices = @transform_0, window_bounds = array<i64: 16, 256>}, {transform_indices = @transform_1, window_bounds = array<i64: 256, 128>}, {transform_indices = @transform_2, window_bounds = array<i64: 1, 128>}, {transform_indices = @transform_3, window_bounds = array<i64: 16, 128>}]} {
    %c0 = arith.constant 0 : index
    %c0_0 = arith.constant 0 : index
    %0 = vector.load %arg1[%c0, %c0_0] : memref<16x256xbf16, #tpu.memory_space<vmem>>, vector<16x256xbf16>
    %c0_1 = arith.constant 0 : index
    %c0_2 = arith.constant 0 : index
    %1 = vector.load %arg2[%c0_1, %c0_2] : memref<256x128xbf16, #tpu.memory_space<vmem>>, vector<256x128xbf16>
    %cst = arith.constant dense<0.000000e+00> : vector<16x128xf32>
    %2 = tpu.matmul %0, %1, %cst {dimension_numbers = #tpu.dot_dimension_numbers<[1], [0], [0], [1], [0, 0, 1, 1], [], []>} : vector<16x256xbf16>, vector<256x128xbf16>, vector<16x128xf32> -> vector<16x128xf32>
    %c0_3 = arith.constant 0 : index
    %c0_4 = arith.constant 0 : index
    %3 = vector.load %arg3[%c0_3, %c0_4] : memref<1x128xf32, #tpu.memory_space<vmem>>, vector<1x128xf32>
    %4 = vector.broadcast %3 : vector<1x128xf32> to vector<16x128xf32>
    %5 = arith.addf %2, %4 : vector<16x128xf32>
    %c0_5 = arith.constant 0 : index
    %c0_6 = arith.constant 0 : index
    %6 = vector.load %arg4[%c0_5, %c0_6] : memref<16x128xf32, #tpu.memory_space<vmem>>, vector<16x128xf32>
    tpu.vector_store %arg4[%c0_5, %c0_6], %5 {strides = array<i32>} : memref<16x128xf32, #tpu.memory_space<vmem>>, vector<16x128xf32>,
    return
  }
  func.func @transform_0(%arg0: i32) -> (i32, i32) {
    %c0_i32 = arith.constant 0 : i32
    %c0_i32_0 = arith.constant 0 : i32
    %c0_i32_1 = arith.constant 0 : i32
    return %c0_i32, %c0_i32_0 : i32, i32
  }
  func.func @transform_1(%arg0: i32) -> (i32, i32) {
    %c0_i32 = arith.constant 0 : i32
    %c0_i32_0 = arith.constant 0 : i32
    return %c0_i32, %arg0 : i32, i32
  }
  func.func @transform_2(%arg0: i32) -> (i32, i32) {
    %c0_i32 = arith.constant 0 : i32
    %c0_i32_0 = arith.constant 0 : i32
    return %c0_i32, %arg0 : i32, i32
  }
  func.func @transform_3(%arg0: i32) -> (i32, i32) {
    %c0_i32 = arith.constant 0 : i32
    %c0_i32_0 = arith.constant 0 : i32
    return %c0_i32, %arg0 : i32, i32
  }
}

</mosaic_0001>

<llo_original>
// kernel: u2gnn_forward.5
$region0: #{u2gnn_forward.5}
  #allocation0 [shape = 'u32[]', space=smem, size = 0x4, offset = 0x4, fixed_abs, tag = 'smem constant byte address 0x4 - core index']
  #allocation1 [shape = 'u32[144,128]{1,0:T(1,128)}', space=vmem, size = 0x12000, scoped, tag = 'internal scratch']
  %s0 = inlined_call_operand.vmem [shape: bf16[16,256], index: 0, kind: input, shape index: {}]
  %s1 = inlined_call_operand.vmem [shape: bf16[256,128], index: 1, kind: input, shape index: {}]
  %s2 = inlined_call_operand.vmem [shape: f32[1,128], index: 2, kind: input, shape index: {}]
  %s3 = inlined_call_operand.hbm [shape: f32[16,128], index: 3, kind: output, shape index: {}]
  %s4 = sld [smem:[#allocation0]]
  $region22: #{u2gnn_forward.5} parent=0
    _
  %s6 = ssub.s32 1, %s4
  %s7 = scalar_select 0, %s6, %s4
  $region1: #{u2gnn_forward.5} parent=0
    #allocation2 [shape = 'u8[8192]{0}', space=vmem, size = 0x2000, scoped, tag = 'output window, operand 0, single buffered']
    #allocation3 [shape = 's32[1]{0}', space=sflag, size = 0x4, scoped, tag = 'scoped memory for u2gnn_forward.5']
    %8 = vsyncpa [#allocation3], 0
    // Predicated region
    $region2: #{u2gnn_forward.5} parent=1 // pred_check
      _
    $region3: #{u2gnn_forward.5} parent=1 // pred_check_branch
      %10 = sbr.rel (0) target = $region5
    $region4: #{u2gnn_forward.5} parent=1 // pred_region
      _
    $region5: #{u2gnn_forward.5} parent=1 // pred_fallthru
      _
    // Predicated region
    $region6: #{u2gnn_forward.5} parent=1 // pred_check
      _
    $region7: #{u2gnn_forward.5} parent=1 // pred_check_branch
      %12 = sbr.rel (0) target = $region9
    $region8: #{u2gnn_forward.5} parent=1 // pred_region
      _
    $region9: #{u2gnn_forward.5} parent=1 // pred_fallthru
      _
    // Predicated region
    $region10: #{u2gnn_forward.5} parent=1 // pred_check
      _
    $region11: #{u2gnn_forward.5} parent=1 // pred_check_branch
      %14 = sbr.rel (0) target = $region13
    $region12: #{u2gnn_forward.5} parent=1 // pred_region
      _
    $region13: #{u2gnn_forward.5} parent=1 // pred_fallthru
      _
    %v16 = vld [vmem:[%s0] sm:$0xff]
    %v17 = vld [vmem:[%s0 + $0x8] sm:$0xff]
    %v18 = vld [vmem:[%s1] sm:$0xf]
    %v19 = vld [vmem:[%s1 + $0x4] sm:$0xf]
    %v20 = vld [vmem:[%s1 + $0x8] sm:$0xf]
    %v21 = vld [vmem:[%s1 + $0xc] sm:$0xf]
    %v22 = vld [vmem:[%s1 + $0x10] sm:$0xf]
    %v23 = vld [vmem:[%s1 + $0x14] sm:$0xf]
    %v24 = vld [vmem:[%s1 + $0x18] sm:$0xf]
    %v25 = vld [vmem:[%s1 + $0x1c] sm:$0xf]
    %v26 = vld [vmem:[%s1 + $0x20] sm:$0xf]
    %v27 = vld [vmem:[%s1 + $0x24] sm:$0xf]
    %v28 = vld [vmem:[%s1 + $0x28] sm:$0xf]
    %v29 = vld [vmem:[%s1 + $0x2c] sm:$0xf]
    %v30 = vld [vmem:[%s1 + $0x30] sm:$0xf]
    %v31 = vld [vmem:[%s1 + $0x34] sm:$0xf]
    %v32 = vld [vmem:[%s1 + $0x38] sm:$0xf]
    %v33 = vld [vmem:[%s1 + $0x3c] sm:$0xf]
    %v34 = vld [vmem:[%s1 + $0x40] sm:$0xf]
    %v35 = vld [vmem:[%s1 + $0x44] sm:$0xf]
    %v36 = vld [vmem:[%s1 + $0x48] sm:$0xf]
    %v37 = vld [vmem:[%s1 + $0x4c] sm:$0xf]
    %v38 = vld [vmem:[%s1 + $0x50] sm:$0xf]
    %v39 = vld [vmem:[%s1 + $0x54] sm:$0xf]
    %v40 = vld [vmem:[%s1 + $0x58] sm:$0xf]
    %v41 = vld [vmem:[%s1 + $0x5c] sm:$0xf]
    %v42 = vld [vmem:[%s1 + $0x60] sm:$0xf]
    %v43 = vld [vmem:[%s1 + $0x64] sm:$0xf]
    %v44 = vld [vmem:[%s1 + $0x68] sm:$0xf]
    %v45 = vld [vmem:[%s1 + $0x6c] sm:$0xf]
    %v46 = vld [vmem:[%s1 + $0x70] sm:$0xf]
    %v47 = vld [vmem:[%s1 + $0x74] sm:$0xf]
    %v48 = vld [vmem:[%s1 + $0x78] sm:$0xf]
    %v49 = vld [vmem:[%s1 + $0x7c] sm:$0xf]
    %v50 = vld [vmem:[%s2] sm:$0x1]
    %v52 = vlaneseq
    %v53 = vshrl.u32 %v52, 7
    %v54 = vsub.s32 0, %v53
    %v55 = vrot.slane %v50, %v54
    %v59 = vunpack.c.l.b16 %v16
    %v60 = vunpack.c.h.b16 %v16
    %v61 = vunpack.c.l.b16 %v17
    %v62 = vunpack.c.h.b16 %v17
    %v63 = vpack.c.b16 %v61, %v59
    %v64 = vpack.c.b16 %v62, %v60
    %v99 = vunpack.c.l.b16 %v18
    %v100 = vunpack.c.l.b16 %v19
    %v101 = vunpack.c.l.b16 %v20
    %v102 = vunpack.c.l.b16 %v21
    %v103 = vunpack.c.l.b16 %v22
    %v104 = vunpack.c.l.b16 %v23
    %v105 = vunpack.c.l.b16 %v24
    %v106 = vunpack.c.l.b16 %v25
    %v107 = vunpack.c.l.b16 %v26
    %v108 = vunpack.c.l.b16 %v27
    %v109 = vunpack.c.l.b16 %v28
    %v110 = vunpack.c.l.b16 %v29
    %v111 = vunpack.c.l.b16 %v30
    %v112 = vunpack.c.l.b16 %v31
    %v113 = vunpack.c.l.b16 %v32
    %v114 = vunpack.c.l.b16 %v33
    %v115 = vunpack.c.l.b16 %v34
    %v116 = vunpack.c.l.b16 %v35
    %v117 = vunpack.c.l.b16 %v36
    %v118 = vunpack.c.l.b16 %v37
    %v119 = vunpack.c.l.b16 %v38
    %v120 = vunpack.c.l.b16 %v39
    %v121 = vunpack.c.l.b16 %v40
    %v122 = vunpack.c.l.b16 %v41
    %v123 = vunpack.c.l.b16 %v42
    %v124 = vunpack.c.l.b16 %v43
    %v125 = vunpack.c.l.b16 %v44
    %v126 = vunpack.c.l.b16 %v45
    %v127 = vunpack.c.l.b16 %v46
    %v128 = vunpack.c.l.b16 %v47
    %v129 = vunpack.c.l.b16 %v48
    %v130 = vunpack.c.l.b16 %v49
    %v131 = vpack.c.b16 %v100, %v99
    %v132 = vpack.c.b16 %v102, %v101
    %v133 = vpack.c.b16 %v104, %v103
    %v134 = vpack.c.b16 %v106, %v105
    %v135 = vpack.c.b16 %v108, %v107
    %v136 = vpack.c.b16 %v110, %v109
    %v137 = vpack.c.b16 %v112, %v111
    %v138 = vpack.c.b16 %v114, %v113
    %v139 = vpack.c.b16 %v116, %v115
    %v140 = vpack.c.b16 %v118, %v117
    %v141 = vpack.c.b16 %v120, %v119
    %v142 = vpack.c.b16 %v122, %v121
    %v143 = vpack.c.b16 %v124, %v123
    %v144 = vpack.c.b16 %v126, %v125
    %v145 = vpack.c.b16 %v128, %v127
    %v146 = vpack.c.b16 %v130, %v129
    %163 = vmatprep.subr.bf16.mxu0 0
    %164 = vmatpush1.bf16.msra.mxu0 %v131
    %165 = vmatprep.subr.bf16.mxu0 0
    %166 = vmatpush1.bf16.msra.mxu0 %v132
    %167 = vmatprep.subr.bf16.mxu0 0
    %168 = vmatpush1.bf16.msra.mxu0 %v133
    %169 = vmatprep.subr.bf16.mxu0 0
    %170 = vmatpush1.bf16.msra.mxu0 %v134
    %171 = vmatprep.subr.bf16.mxu0 0
    %172 = vmatpush1.bf16.msra.mxu0 %v135
    %173 = vmatprep.subr.bf16.mxu0 0
    %174 = vmatpush1.bf16.msra.mxu0 %v136
    %175 = vmatprep.subr.bf16.mxu0 0
    %176 = vmatpush1.bf16.msra.mxu0 %v137
    %177 = vmatprep.subr.bf16.mxu0 0
    %178 = vmatpush1.bf16.msra.mxu0 %v138
    %179 = vmatprep.subr.bf16.mxu0 0
    %180 = vmatpush1.bf16.msra.mxu0 %v139
    %181 = vmatprep.subr.bf16.mxu0 0
    %182 = vmatpush1.bf16.msra.mxu0 %v140
    %183 = vmatprep.subr.bf16.mxu0 0
    %184 = vmatpush1.bf16.msra.mxu0 %v141
    %185 = vmatprep.subr.bf16.mxu0 0
    %186 = vmatpush1.bf16.msra.mxu0 %v142
    %187 = vmatprep.subr.bf16.mxu0 0
    %188 = vmatpush1.bf16.msra.mxu0 %v143
    %189 = vmatprep.subr.bf16.mxu0 0
    %190 = vmatpush1.bf16.msra.mxu0 %v144
    %191 = vmatprep.subr.bf16.mxu0 0
    %192 = vmatpush1.bf16.msra.mxu0 %v145
    %193 = vmatprep.subr.bf16.mxu0 0
    %194 = vmatpush1.bf16.msra.mxu0 %v146
    %195 = vmatprep.mubr.bf16.mxu0 %v64
    %196 = vmatmul.mubr.bf16.gmra.mrb[0].mxu0 %v63
    %v197 = vpop.f32.mrb[0].mxu0
    %v198 = vadd.f32 %v55, %v197
    %v199 = vpop.f32.mrb[0].mxu0
    %v200 = vpop.f32.mrb[0].mxu0
    %v201 = vadd.f32 %v55, %v200
    %v202 = vpop.f32.mrb[0].mxu0
    %203 = vdwg.mxu0
    %204 = vst [vmem:[#allocation2] sm:$0xff] %v198
    %205 = vst [vmem:[#allocation2 + $0x8] sm:$0xff] %v201
    // Predicated region
    $region14: #{u2gnn_forward.5} parent=1 // pred_check
      _
    $region15: #{u2gnn_forward.5} parent=1 // pred_check_branch
      %207 = sbr.rel (0) target = $region17
    $region16: #{u2gnn_forward.5} parent=1 // pred_region
      %s209 = ssub.s32 256, 256
      %210 = vsyncadd [#allocation3], %s209
      %s211 = sshll.u32 [#allocation2], 4
      %s212 = int_to_ptr.vmem [resolvable:$true] %s211
      %217 = dma.vmem_to_hbm [thread:$0]  %s212, 256, %s3, [#allocation3], 128, 128, 8
    $region17: #{u2gnn_forward.5} parent=1 // pred_fallthru
      _
    // Predicated region
    $region18: #{u2gnn_forward.5} parent=1 // pred_check
      _
    $region19: #{u2gnn_forward.5} parent=1 // pred_check_branch
      %219 = sbr.rel (0) target = $region21
    $region20: #{u2gnn_forward.5} parent=1 // pred_region
      %220 = dma.done [#allocation3], 256
    $region21: #{u2gnn_forward.5} parent=1 // pred_fallthru
      _
    %221 = vsyncpa [#allocation3], 1

// kernel: u2gnn_forward.3
$region0: #{u2gnn_forward.3}
  #allocation0 [shape = 'u32[]', space=smem, size = 0x4, offset = 0x4, fixed_abs, tag = 'smem constant byte address 0x4 - core index']
  #allocation1 [shape = 'u32[144,128]{1,0:T(1,128)}', space=vmem, size = 0x12000, scoped, tag = 'internal scratch']
  %s0 = inlined_call_operand.vmem [shape: f32[8,16,128], index: 0, kind: input, shape index: {}]
  %s1 = inlined_call_operand.vmem [shape: bf16[2,128,384], index: 1, kind: input, shape index: {}]
  %s2 = inlined_call_operand.vmem [shape: bf16[2,128,128], index: 2, kind: input, shape index: {}]
  %s3 = inlined_call_operand.vmem [shape: bf16[2,128,128], index: 3, kind: input, shape index: {}]
  %s4 = inlined_call_operand.vmem [shape: bf16[2,128,128], index: 4, kind: input, shape index: {}]
  %s5 = inlined_call_operand.vmem [shape: f32[2,16,128], index: 5, kind: input, shape index: {}]
  %s6 = inlined_call_operand.vmem [shape: f32[2,1,128], index: 6, kind: input, shape index: {}]
  %s7 = inlined_call_operand.vmem [shape: f32[8,16,128], index: 7, kind: output, shape index: {}]
  %s8 = sld [smem:[#allocation0]]
  $region65: #{u2gnn_forward.3} parent=0
    _
  %s10 = ssub.s32 1, %s8
  %s11 = scalar_select 0, %s10, %s8
  loop: start=0, step=1, limit=4
  $region2: #{u2gnn_forward.3} parent=0 // loop_pre_header
    _
  $region3: #{u2gnn_forward.3} parent=0 // loop_header
    %s13 = sphi 0, %s17
    %p14 = scmp.ge.s32.totalorder %s13, 4
    %s20 = sphi 0, %s32
    %s21 = sphi 0, %s28
    %s22 = sphi 0, %s20
    %s23 = sphi 0, %s21
    %s24 = sphi 0, %s22
    %s25 = sphi 0, %s23
    %s35 = sphi 0, %s37
    %s38 = sphi 0, %s35
    %s39 = sphi 0, %s38
    %s55 = sphi 0, %s39
    %s61 = sphi 0, %s63
    %s64 = sphi 0, %s61
    %s65 = sphi 0, %s64
    %s81 = sphi 0, %s65
    %s87 = sphi 0, %s89
    %s90 = sphi 0, %s87
    %s91 = sphi 0, %s90
    %s107 = sphi 0, %s91
    %s113 = sphi 0, %s115
    %s116 = sphi 0, %s113
    %s117 = sphi 0, %s116
    %s133 = sphi 0, %s117
    %s139 = sphi 0, %s141
    %s142 = sphi 0, %s139
    %s143 = sphi 0, %s142
    %s159 = sphi 0, %s143
    %s165 = sphi 0, %s167
    %s168 = sphi 0, %s165
    %s169 = sphi 0, %s168
    %s185 = sphi 0, %s169
    %s191 = sphi 0, %s193
    %s194 = sphi 0, %s191
    %s195 = sphi 0, %s194
    %s211 = sphi 0, %s195
    %s217 = sphi 0, %s219
    %s220 = sphi 0, %s217
    %s221 = sphi 0, %s220
    %s237 = sphi 0, %s221
  $region4: #{u2gnn_forward.3} parent=0 // loop_header_branch
    %16 = sbr.rel (%p14) target = $region8
  $region5: #{u2gnn_forward.3} parent=0 // loop_body
    %s18 = ssub.s32 %s13, 1
    %s19 = ssub.s32 %s13, 2
    %s26 = sadd.s32 1, %s21
    %p27 = scmp.ge.s32.totalorder %s26, 2
    %s28 = scalar_select %p27, 0, %s26
    %s29 = sadd.s32 1, %s20
    %s30 = scalar_select %p27, %s29, %s20
    %p31 = scmp.ge.s32.totalorder %s30, 1
    %s32 = scalar_select %p31, 0, %s30
    %s33 = ssub.s32 %s20, %s32
    %p34 = scmp.eq.s32.totalorder %s33, 0
    %s36 = sadd.s32 %s35, 1
    %s37 = scalar_select %p34, %s35, %s36
    %p40 = pneg %p34
    %p41 = scmp.eq.s32.totalorder %s13, 1
    %p42 = por %p40, %p41
    %p43 = scmp.ne.s32.totalorder %s35, %s38
    %p44 = scmp.eq.s32.totalorder %s13, 0
    %p45 = por %p43, %p44
    %p46 = scmp.ne.s32.totalorder %s35, %s38
    %p47 = scmp.eq.s32.totalorder %s18, 1
    %p48 = por %p46, %p47
    %p49 = scmp.ne.s32.totalorder %s38, %s39
    %p50 = scmp.eq.s32.totalorder %s18, 0
    %p51 = por %p49, %p50
    %p52 = scmp.ne.s32.totalorder %s38, %s39
    %p53 = scmp.eq.s32.totalorder %s19, 1
    %p54 = por %p52, %p53
    %p56 = scmp.ne.s32.totalorder %s39, %s55
    %p57 = scmp.eq.s32.totalorder %s19, 0
    %p58 = por %p56, %p57
    %s59 = ssub.s32 %s21, %s28
    %p60 = scmp.eq.s32.totalorder %s59, 0
    %s62 = sadd.s32 %s61, 1
    %s63 = scalar_select %p60, %s61, %s62
    %p66 = pneg %p60
    %p67 = scmp.eq.s32.totalorder %s13, 1
    %p68 = por %p66, %p67
    %p69 = scmp.ne.s32.totalorder %s61, %s64
    %p70 = scmp.eq.s32.totalorder %s13, 0
    %p71 = por %p69, %p70
    %p72 = scmp.ne.s32.totalorder %s61, %s64
    %p73 = scmp.eq.s32.totalorder %s18, 1
    %p74 = por %p72, %p73
    %p75 = scmp.ne.s32.totalorder %s64, %s65
    %p76 = scmp.eq.s32.totalorder %s18, 0
    %p77 = por %p75, %p76
    %p78 = scmp.ne.s32.totalorder %s64, %s65
    %p79 = scmp.eq.s32.totalorder %s19, 1
    %p80 = por %p78, %p79
    %p82 = scmp.ne.s32.totalorder %s65, %s81
    %p83 = scmp.eq.s32.totalorder %s19, 0
    %p84 = por %p82, %p83
    %s85 = ssub.s32 %s21, %s28
    %p86 = scmp.eq.s32.totalorder %s85, 0
    %s88 = sadd.s32 %s87, 1
    %s89 = scalar_select %p86, %s87, %s88
    %p92 = pneg %p86
    %p93 = scmp.eq.s32.totalorder %s13, 1
    %p94 = por %p92, %p93
    %p95 = scmp.ne.s32.totalorder %s87, %s90
    %p96 = scmp.eq.s32.totalorder %s13, 0
    %p97 = por %p95, %p96
    %p98 = scmp.ne.s32.totalorder %s87, %s90
    %p99 = scmp.eq.s32.totalorder %s18, 1
    %p100 = por %p98, %p99
    %p101 = scmp.ne.s32.totalorder %s90, %s91
    %p102 = scmp.eq.s32.totalorder %s18, 0
    %p103 = por %p101, %p102
    %p104 = scmp.ne.s32.totalorder %s90, %s91
    %p105 = scmp.eq.s32.totalorder %s19, 1
    %p106 = por %p104, %p105
    %p108 = scmp.ne.s32.totalorder %s91, %s107
    %p109 = scmp.eq.s32.totalorder %s19, 0
    %p110 = por %p108, %p109
    %s111 = ssub.s32 %s21, %s28
    %p112 = scmp.eq.s32.totalorder %s111, 0
    %s114 = sadd.s32 %s113, 1
    %s115 = scalar_select %p112, %s113, %s114
    %p118 = pneg %p112
    %p119 = scmp.eq.s32.totalorder %s13, 1
    %p120 = por %p118, %p119
    %p121 = scmp.ne.s32.totalorder %s113, %s116
    %p122 = scmp.eq.s32.totalorder %s13, 0
    %p123 = por %p121, %p122
    %p124 = scmp.ne.s32.totalorder %s113, %s116
    %p125 = scmp.eq.s32.totalorder %s18, 1
    %p126 = por %p124, %p125
    %p127 = scmp.ne.s32.totalorder %s116, %s117
    %p128 = scmp.eq.s32.totalorder %s18, 0
    %p129 = por %p127, %p128
    %p130 = scmp.ne.s32.totalorder %s116, %s117
    %p131 = scmp.eq.s32.totalorder %s19, 1
    %p132 = por %p130, %p131
    %p134 = scmp.ne.s32.totalorder %s117, %s133
    %p135 = scmp.eq.s32.totalorder %s19, 0
    %p136 = por %p134, %p135
    %s137 = ssub.s32 %s21, %s28
    %p138 = scmp.eq.s32.totalorder %s137, 0
    %s140 = sadd.s32 %s139, 1
    %s141 = scalar_select %p138, %s139, %s140
    %p144 = pneg %p138
    %p145 = scmp.eq.s32.totalorder %s13, 1
    %p146 = por %p144, %p145
    %p147 = scmp.ne.s32.totalorder %s139, %s142
    %p148 = scmp.eq.s32.totalorder %s13, 0
    %p149 = por %p147, %p148
    %p150 = scmp.ne.s32.totalorder %s139, %s142
    %p151 = scmp.eq.s32.totalorder %s18, 1
    %p152 = por %p150, %p151
    %p153 = scmp.ne.s32.totalorder %s142, %s143
    %p154 = scmp.eq.s32.totalorder %s18, 0
    %p155 = por %p153, %p154
    %p156 = scmp.ne.s32.totalorder %s142, %s143
    %p157 = scmp.eq.s32.totalorder %s19, 1
    %p158 = por %p156, %p157
    %p160 = scmp.ne.s32.totalorder %s143, %s159
    %p161 = scmp.eq.s32.totalorder %s19, 0
    %p162 = por %p160, %p161
    %s163 = ssub.s32 %s21, %s28
    %p164 = scmp.eq.s32.totalorder %s163, 0
    %s166 = sadd.s32 %s165, 1
    %s167 = scalar_select %p164, %s165, %s166
    %p170 = pneg %p164
    %p171 = scmp.eq.s32.totalorder %s13, 1
    %p172 = por %p170, %p171
    %p173 = scmp.ne.s32.totalorder %s165, %s168
    %p174 = scmp.eq.s32.totalorder %s13, 0
    %p175 = por %p173, %p174
    %p176 = scmp.ne.s32.totalorder %s165, %s168
    %p177 = scmp.eq.s32.totalorder %s18, 1
    %p178 = por %p176, %p177
    %p179 = scmp.ne.s32.totalorder %s168, %s169
    %p180 = scmp.eq.s32.totalorder %s18, 0
    %p181 = por %p179, %p180
    %p182 = scmp.ne.s32.totalorder %s168, %s169
    %p183 = scmp.eq.s32.totalorder %s19, 1
    %p184 = por %p182, %p183
    %p186 = scmp.ne.s32.totalorder %s169, %s185
    %p187 = scmp.eq.s32.totalorder %s19, 0
    %p188 = por %p186, %p187
    %s189 = ssub.s32 %s21, %s28
    %p190 = scmp.eq.s32.totalorder %s189, 0
    %s192 = sadd.s32 %s191, 1
    %s193 = scalar_select %p190, %s191, %s192
    %p196 = pneg %p190
    %p197 = scmp.eq.s32.totalorder %s13, 1
    %p198 = por %p196, %p197
    %p199 = scmp.ne.s32.totalorder %s191, %s194
    %p200 = scmp.eq.s32.totalorder %s13, 0
    %p201 = por %p199, %p200
    %p202 = scmp.ne.s32.totalorder %s191, %s194
    %p203 = scmp.eq.s32.totalorder %s18, 1
    %p204 = por %p202, %p203
    %p205 = scmp.ne.s32.totalorder %s194, %s195
    %p206 = scmp.eq.s32.totalorder %s18, 0
    %p207 = por %p205, %p206
    %p208 = scmp.ne.s32.totalorder %s194, %s195
    %p209 = scmp.eq.s32.totalorder %s19, 1
    %p210 = por %p208, %p209
    %p212 = scmp.ne.s32.totalorder %s195, %s211
    %p213 = scmp.eq.s32.totalorder %s19, 0
    %p214 = por %p212, %p213
    %s215 = ssub.s32 %s20, %s32
    %p216 = scmp.eq.s32.totalorder %s215, 0
    %s218 = sadd.s32 %s217, 1
    %s219 = scalar_select %p216, %s217, %s218
    %p222 = pneg %p216
    %p223 = scmp.eq.s32.totalorder %s13, 1
    %p224 = por %p222, %p223
    %p225 = scmp.ne.s32.totalorder %s217, %s220
    %p226 = scmp.eq.s32.totalorder %s13, 0
    %p227 = por %p225, %p226
    %p228 = scmp.ne.s32.totalorder %s217, %s220
    %p229 = scmp.eq.s32.totalorder %s18, 1
    %p230 = por %p228, %p229
    %p231 = scmp.ne.s32.totalorder %s220, %s221
    %p232 = scmp.eq.s32.totalorder %s18, 0
    %p233 = por %p231, %p232
    %p234 = scmp.ne.s32.totalorder %s220, %s221
    %p235 = scmp.eq.s32.totalorder %s19, 1
    %p236 = por %p234, %p235
    %p238 = scmp.ne.s32.totalorder %s221, %s237
    %p239 = scmp.eq.s32.totalorder %s19, 0
    %p240 = por %p238, %p239
    %p241 = scmp.le.s32.totalorder 1, %s13
    %p242 = scmp.lt.s32.totalorder %s13, 3
    %p243 = pnand %p241, %p242
    %p244 = pneg %p243
    // Predicated region
    $region9: #{u2gnn_forward.3} parent=5 // pred_check
      _
    $region10: #{u2gnn_forward.3} parent=5 // pred_check_branch
      %246 = sbr.rel (%p243) target = $region12
    $region11: #{u2gnn_forward.3} parent=5 // pred_region
      %s247 = ssub.s32 %s13, 1
      // Predicated region
      $region13: #{u2gnn_forward.3} parent=11 // pred_check
        %p248 = pneg %p51
      $region14: #{u2gnn_forward.3} parent=11 // pred_check_branch
        %250 = sbr.rel (%p248) target = $region16
      $region15: #{u2gnn_forward.3} parent=11 // pred_region
        %s251 = smul.u32 8, %s22
        %p252 = scmp.lt.s32.totalorder %s251, 7
        %s253 = scalar_select %p252, %s251, 7
        %s254 = smul.addr %s253, 2
        %s255 = smul.addr %s254, 8
        %s256 = scalar_lea.vmem %s0, %s255
        %s257 = smul.u32 8, %s22
      $region16: #{u2gnn_forward.3} parent=11 // pred_fallthru
        _
    $region12: #{u2gnn_forward.3} parent=5 // pred_fallthru
      _
    %p258 = scmp.lt.s32.totalorder %s13, 2
    // Predicated region
    $region17: #{u2gnn_forward.3} parent=5 // pred_check
      %p259 = pneg %p258
    $region18: #{u2gnn_forward.3} parent=5 // pred_check_branch
      %261 = sbr.rel (%p259) target = $region20
    $region19: #{u2gnn_forward.3} parent=5 // pred_region
      // Predicated region
      $region21: #{u2gnn_forward.3} parent=19 // pred_check
        %p262 = pneg %p71
      $region22: #{u2gnn_forward.3} parent=19 // pred_check_branch
        %264 = sbr.rel (%p262) target = $region24
      $region23: #{u2gnn_forward.3} parent=19 // pred_region
        %p265 = scmp.lt.s32.totalorder %s21, 1
        %s266 = scalar_select %p265, %s21, 1
        %s267 = smul.addr %s266, 48
        %s268 = smul.addr %s267, 4
        %s269 = scalar_lea.vmem %s1, %s268
      $region24: #{u2gnn_forward.3} parent=19 // pred_fallthru
        _
      // Predicated region
      $region25: #{u2gnn_forward.3} parent=19 // pred_check
        %p270 = pneg %p97
      $region26: #{u2gnn_forward.3} parent=19 // pred_check_branch
        %272 = sbr.rel (%p270) target = $region28
      $region27: #{u2gnn_forward.3} parent=19 // pred_region
        %p273 = scmp.lt.s32.totalorder %s21, 1
        %s274 = scalar_select %p273, %s21, 1
        %s275 = smul.addr %s274, 16
        %s276 = smul.addr %s275, 4
        %s277 = scalar_lea.vmem %s2, %s276
      $region28: #{u2gnn_forward.3} parent=19 // pred_fallthru
        _
      // Predicated region
      $region29: #{u2gnn_forward.3} parent=19 // pred_check
        %p278 = pneg %p123
      $region30: #{u2gnn_forward.3} parent=19 // pred_check_branch
        %280 = sbr.rel (%p278) target = $region32
      $region31: #{u2gnn_forward.3} parent=19 // pred_region
        %p281 = scmp.lt.s32.totalorder %s21, 1
        %s282 = scalar_select %p281, %s21, 1
        %s283 = smul.addr %s282, 16
        %s284 = smul.addr %s283, 4
        %s285 = scalar_lea.vmem %s3, %s284
      $region32: #{u2gnn_forward.3} parent=19 // pred_fallthru
        _
      // Predicated region
      $region33: #{u2gnn_forward.3} parent=19 // pred_check
        %p286 = pneg %p149
      $region34: #{u2gnn_forward.3} parent=19 // pred_check_branch
        %288 = sbr.rel (%p286) target = $region36
      $region35: #{u2gnn_forward.3} parent=19 // pred_region
        %p289 = scmp.lt.s32.totalorder %s21, 1
        %s290 = scalar_select %p289, %s21, 1
        %s291 = smul.addr %s290, 16
        %s292 = smul.addr %s291, 4
        %s293 = scalar_lea.vmem %s4, %s292
      $region36: #{u2gnn_forward.3} parent=19 // pred_fallthru
        _
      // Predicated region
      $region37: #{u2gnn_forward.3} parent=19 // pred_check
        %p294 = pneg %p175
      $region38: #{u2gnn_forward.3} parent=19 // pred_check_branch
        %296 = sbr.rel (%p294) target = $region40
      $region39: #{u2gnn_forward.3} parent=19 // pred_region
        %p297 = scmp.lt.s32.totalorder %s21, 1
        %s298 = scalar_select %p297, %s21, 1
        %s299 = smul.addr %s298, 2
        %s300 = smul.addr %s299, 8
        %s301 = scalar_lea.vmem %s5, %s300
      $region40: #{u2gnn_forward.3} parent=19 // pred_fallthru
        _
      // Predicated region
      $region41: #{u2gnn_forward.3} parent=19 // pred_check
        %p302 = pneg %p201
      $region42: #{u2gnn_forward.3} parent=19 // pred_check_branch
        %304 = sbr.rel (%p302) target = $region44
      $region43: #{u2gnn_forward.3} parent=19 // pred_region
        %p305 = scmp.lt.s32.totalorder %s21, 1
        %s306 = scalar_select %p305, %s21, 1
        %s307 = scalar_lea.vmem %s6, %s306
      $region44: #{u2gnn_forward.3} parent=19 // pred_fallthru
        _
    $region20: #{u2gnn_forward.3} parent=5 // pred_fallthru
      _
    %p308 = scmp.le.s32.totalorder 1, %s13
    %p309 = scmp.lt.s32.totalorder %s13, 3
    %p310 = pnand %p308, %p309
    %p311 = pneg %p310
    // Predicated region
    $region45: #{u2gnn_forward.3} parent=5 // pred_check
      _
    $region46: #{u2gnn_forward.3} parent=5 // pred_check_branch
      %313 = sbr.rel (%p310) target = $region48
    $region47: #{u2gnn_forward.3} parent=5 // pred_region
      %s314 = ssub.s32 %s13, 1
      %s315 = smul.u32 8, %s22
      %p316 = scmp.lt.s32.totalorder %s315, 7
      %s317 = scalar_select %p316, %s315, 7
      %s318 = smul.addr %s317, 2
      %s319 = smul.addr %s318, 8
      %s320 = scalar_lea.vmem %s0, %s319
      %p321 = pneg %p51
      %p322 = pneg %p48
      %p323 = scmp.lt.s32.totalorder %s23, 1
      %s324 = scalar_select %p323, %s23, 1
      %s325 = smul.addr %s324, 48
      %s326 = smul.addr %s325, 4
      %s327 = scalar_lea.vmem %s1, %s326
      %p328 = pneg %p77
      %p329 = pneg %p74
      %p330 = scmp.lt.s32.totalorder %s23, 1
      %s331 = scalar_select %p330, %s23, 1
      %s332 = smul.addr %s331, 16
      %s333 = smul.addr %s332, 4
      %s334 = scalar_lea.vmem %s2, %s333
      %p335 = pneg %p103
      %p336 = pneg %p100
      %p337 = scmp.lt.s32.totalorder %s23, 1
      %s338 = scalar_select %p337, %s23, 1
      %s339 = smul.addr %s338, 16
      %s340 = smul.addr %s339, 4
      %s341 = scalar_lea.vmem %s3, %s340
      %p342 = pneg %p129
      %p343 = pneg %p126
      %p344 = scmp.lt.s32.totalorder %s23, 1
      %s345 = scalar_select %p344, %s23, 1
      %s346 = smul.addr %s345, 16
      %s347 = smul.addr %s346, 4
      %s348 = scalar_lea.vmem %s4, %s347
      %p349 = pneg %p155
      %p350 = pneg %p152
      %p351 = scmp.lt.s32.totalorder %s23, 1
      %s352 = scalar_select %p351, %s23, 1
      %s353 = smul.addr %s352, 2
      %s354 = smul.addr %s353, 8
      %s355 = scalar_lea.vmem %s5, %s354
      %p356 = pneg %p181
      %p357 = pneg %p178
      %p358 = scmp.lt.s32.totalorder %s23, 1
      %s359 = scalar_select %p358, %s23, 1
      %s360 = scalar_lea.vmem %s6, %s359
      %p361 = pneg %p207
      %p362 = pneg %p204
      %p363 = pneg %p233
      %p364 = pneg %p230
      %s365 = smul.u32 8, %s22
      %p366 = scmp.lt.s32.totalorder %s365, 7
      %s367 = scalar_select %p366, %s365, 7
      %s368 = smul.addr %s367, 2
      %s369 = smul.addr %s368, 8
      %s370 = scalar_lea.vmem %s7, %s369
      %s371 = smul.u32 8, %s22
      %p372 = scmp.lt.s32.totalorder %s371, 7
      %s373 = scalar_select %p372, %s371, 7
      %s374 = smul.addr %s373, 2
      %s375 = smul.addr %s374, 8
      %s376 = scalar_lea.vmem %s0, %s375
      %s377 = smul.u32 8, %s22
      %p378 = scmp.lt.s32.totalorder %s23, 1
      %s379 = scalar_select %p378, %s23, 1
      %s380 = smul.addr %s379, 48
      %s381 = smul.addr %s380, 4
      %s382 = scalar_lea.vmem %s1, %s381
      %p383 = scmp.lt.s32.totalorder %s23, 1
      %s384 = scalar_select %p383, %s23, 1
      %s385 = smul.addr %s384, 16
      %s386 = smul.addr %s385, 4
      %s387 = scalar_lea.vmem %s2, %s386
      %p388 = scmp.lt.s32.totalorder %s23, 1
      %s389 = scalar_select %p388, %s23, 1
      %s390 = smul.addr %s389, 16
      %s391 = smul.addr %s390, 4
      %s392 = scalar_lea.vmem %s3, %s391
      %p393 = scmp.lt.s32.totalorder %s23, 1
      %s394 = scalar_select %p393, %s23, 1
      %s395 = smul.addr %s394, 16
      %s396 = smul.addr %s395, 4
      %s397 = scalar_lea.vmem %s4, %s396
      %p398 = scmp.lt.s32.totalorder %s23, 1
      %s399 = scalar_select %p398, %s23, 1
      %s400 = smul.addr %s399, 2
      %s401 = smul.addr %s400, 8
      %s402 = scalar_lea.vmem %s5, %s401
      %p403 = scmp.lt.s32.totalorder %s23, 1
      %s404 = scalar_select %p403, %s23, 1
      %s405 = scalar_lea.vmem %s6, %s404
      %s406 = smul.u32 8, %s22
      %p407 = scmp.lt.s32.totalorder %s406, 7
      %s408 = scalar_select %p407, %s406, 7
      %s409 = smul.addr %s408, 2
      %s410 = smul.addr %s409, 8
      %s411 = scalar_lea.vmem %s7, %s410
      %s412 = smul.u32 8, %s22
      %p414 = scmp.eq.s32.totalorder %s23, 0
      // Predicated region
      $region49: #{u2gnn_forward.3} parent=47 // pred_check
        %p415 = pneg %p414
      $region50: #{u2gnn_forward.3} parent=47 // pred_check_branch
        %417 = sbr.rel (%p415) target = $region52
      $region51: #{u2gnn_forward.3} parent=47 // pred_region
        %v418 = vld [vmem:[%s376] sm:$0xff]
        %v419 = vld [vmem:[%s376 + $0x8] sm:$0xff]
        %v420 = vld [vmem:[%s376 + $0x10] sm:$0xff]
        %v421 = vld [vmem:[%s376 + $0x18] sm:$0xff]
        %v422 = vld [vmem:[%s376 + $0x20] sm:$0xff]
        %v423 = vld [vmem:[%s376 + $0x28] sm:$0xff]
        %v424 = vld [vmem:[%s376 + $0x30] sm:$0xff]
        %v425 = vld [vmem:[%s376 + $0x38] sm:$0xff]
        %v426 = vld [vmem:[%s376 + $0x40] sm:$0xff]
        %v427 = vld [vmem:[%s376 + $0x48] sm:$0xff]
        %v428 = vld [vmem:[%s376 + $0x50] sm:$0xff]
        %v429 = vld [vmem:[%s376 + $0x58] sm:$0xff]
        %v430 = vld [vmem:[%s376 + $0x60] sm:$0xff]
        %v431 = vld [vmem:[%s376 + $0x68] sm:$0xff]
        %v432 = vld [vmem:[%s376 + $0x70] sm:$0xff]
        %v433 = vld [vmem:[%s376 + $0x78] sm:$0xff]
        %434 = vst [vmem:[%s411] sm:$0xff] %v418
        %435 = vst [vmem:[%s411 + $0x8] sm:$0xff] %v419
        %436 = vst [vmem:[%s411 + $0x10] sm:$0xff] %v420
        %437 = vst [vmem:[%s411 + $0x18] sm:$0xff] %v421
        %438 = vst [vmem:[%s411 + $0x20] sm:$0xff] %v422
        %439 = vst [vmem:[%s411 + $0x28] sm:$0xff] %v423
        %440 = vst [vmem:[%s411 + $0x30] sm:$0xff] %v424
        %441 = vst [vmem:[%s411 + $0x38] sm:$0xff] %v425
        %442 = vst [vmem:[%s411 + $0x40] sm:$0xff] %v426
        %443 = vst [vmem:[%s411 + $0x48] sm:$0xff] %v427
        %444 = vst [vmem:[%s411 + $0x50] sm:$0xff] %v428
        %445 = vst [vmem:[%s411 + $0x58] sm:$0xff] %v429
        %446 = vst [vmem:[%s411 + $0x60] sm:$0xff] %v430
        %447 = vst [vmem:[%s411 + $0x68] sm:$0xff] %v431
        %448 = vst [vmem:[%s411 + $0x70] sm:$0xff] %v432
        %449 = vst [vmem:[%s411 + $0x78] sm:$0xff] %v433
      $region52: #{u2gnn_forward.3} parent=47 // pred_fallthru
        _
      %v450 = vld [vmem:[%s411] sm:$0xff]
      %v451 = vld [vmem:[%s411 + $0x8] sm:$0xff]
      %v452 = vld [vmem:[%s411 + $0x10] sm:$0xff]
      %v453 = vld [vmem:[%s411 + $0x18] sm:$0xff]
      %v454 = vld [vmem:[%s411 + $0x20] sm:$0xff]
      %v455 = vld [vmem:[%s411 + $0x28] sm:$0xff]
      %v456 = vld [vmem:[%s411 + $0x30] sm:$0xff]
      %v457 = vld [vmem:[%s411 + $0x38] sm:$0xff]
      %v458 = vld [vmem:[%s411 + $0x40] sm:$0xff]
      %v459 = vld [vmem:[%s411 + $0x48] sm:$0xff]
      %v460 = vld [vmem:[%s411 + $0x50] sm:$0xff]
      %v461 = vld [vmem:[%s411 + $0x58] sm:$0xff]
      %v462 = vld [vmem:[%s411 + $0x60] sm:$0xff]
      %v463 = vld [vmem:[%s411 + $0x68] sm:$0xff]
      %v464 = vld [vmem:[%s411 + $0x70] sm:$0xff]
      %v465 = vld [vmem:[%s411 + $0x78] sm:$0xff]
      %v466 = vpack.c.bf16 %v451, %v450
      %v467 = vpack.c.bf16 %v453, %v452
      %v468 = vpack.c.bf16 %v455, %v454
      %v469 = vpack.c.bf16 %v457, %v456
      %v470 = vpack.c.bf16 %v459, %v458
      %v471 = vpack.c.bf16 %v461, %v460
      %v472 = vpack.c.bf16 %v463, %v462
      %v473 = vpack.c.bf16 %v465, %v464
      %v474 = vld [vmem:[%s382] sm:$0xff]
      %v475 = vld [vmem:[%s382 + $0x8] sm:$0xf]
      %v476 = vld [vmem:[%s382 + $0xc] sm:$0xff]
      %v477 = vld [vmem:[%s382 + $0x14] sm:$0xf]
      %v478 = vld [vmem:[%s382 + $0x18] sm:$0xff]
      %v479 = vld [vmem:[%s382 + $0x20] sm:$0xf]
      %v480 = vld [vmem:[%s382 + $0x24] sm:$0xff]
      %v481 = vld [vmem:[%s382 + $0x2c] sm:$0xf]
      %v482 = vld [vmem:[%s382 + $0x30] sm:$0xff]
      %v483 = vld [vmem:[%s382 + $0x38] sm:$0xf]
      %v484 = vld [vmem:[%s382 + $0x3c] sm:$0xff]
      %v485 = vld [vmem:[%s382 + $0x44] sm:$0xf]
      %v486 = vld [vmem:[%s382 + $0x48] sm:$0xff]
      %v487 = vld [vmem:[%s382 + $0x50] sm:$0xf]
      %v488 = vld [vmem:[%s382 + $0x54] sm:$0xff]
      %v489 = vld [vmem:[%s382 + $0x5c] sm:$0xf]
      %v490 = vld [vmem:[%s382 + $0x60] sm:$0xff]
      %v491 = vld [vmem:[%s382 + $0x68] sm:$0xf]
      %v492 = vld [vmem:[%s382 + $0x6c] sm:$0xff]
      %v493 = vld [vmem:[%s382 + $0x74] sm:$0xf]
      %v494 = vld [vmem:[%s382 + $0x78] sm:$0xff]
      %v495 = vld [vmem:[%s382 + $0x80] sm:$0xf]
      %v496 = vld [vmem:[%s382 + $0x84] sm:$0xff]
      %v497 = vld [vmem:[%s382 + $0x8c] sm:$0xf]
      %v498 = vld [vmem:[%s382 + $0x90] sm:$0xff]
      %v499 = vld [vmem:[%s382 + $0x98] sm:$0xf]
      %v500 = vld [vmem:[%s382 + $0x9c] sm:$0xff]
      %v501 = vld [vmem:[%s382 + $0xa4] sm:$0xf]
      %v502 = vld [vmem:[%s382 + $0xa8] sm:$0xff]
      %v503 = vld [vmem:[%s382 + $0xb0] sm:$0xf]
      %v504 = vld [vmem:[%s382 + $0xb4] sm:$0xff]
      %v505 = vld [vmem:[%s382 + $0xbc] sm:$0xf]
      %v538 = vunpack.c.l.b16 %v474
      %v539 = vunpack.c.h.b16 %v474
      %v540 = vunpack.c.l.b16 %v475
      %v541 = vunpack.c.l.b16 %v476
      %v542 = vunpack.c.h.b16 %v476
      %v543 = vunpack.c.l.b16 %v477
      %v544 = vunpack.c.l.b16 %v478
      %v545 = vunpack.c.h.b16 %v478
      %v546 = vunpack.c.l.b16 %v479
      %v547 = vunpack.c.l.b16 %v480
      %v548 = vunpack.c.h.b16 %v480
      %v549 = vunpack.c.l.b16 %v481
      %v550 = vunpack.c.l.b16 %v482
      %v551 = vunpack.c.h.b16 %v482
      %v552 = vunpack.c.l.b16 %v483
      %v553 = vunpack.c.l.b16 %v484
      %v554 = vunpack.c.h.b16 %v484
      %v555 = vunpack.c.l.b16 %v485
      %v556 = vunpack.c.l.b16 %v486
      %v557 = vunpack.c.h.b16 %v486
      %v558 = vunpack.c.l.b16 %v487
      %v559 = vunpack.c.l.b16 %v488
      %v560 = vunpack.c.h.b16 %v488
      %v561 = vunpack.c.l.b16 %v489
      %v562 = vunpack.c.l.b16 %v490
      %v563 = vunpack.c.h.b16 %v490
      %v564 = vunpack.c.l.b16 %v491
      %v565 = vunpack.c.l.b16 %v492
      %v566 = vunpack.c.h.b16 %v492
      %v567 = vunpack.c.l.b16 %v493
      %v568 = vunpack.c.l.b16 %v494
      %v569 = vunpack.c.h.b16 %v494
      %v570 = vunpack.c.l.b16 %v495
      %v571 = vunpack.c.l.b16 %v496
      %v572 = vunpack.c.h.b16 %v496
      %v573 = vunpack.c.l.b16 %v497
      %v574 = vunpack.c.l.b16 %v498
      %v575 = vunpack.c.h.b16 %v498
      %v576 = vunpack.c.l.b16 %v499
      %v577 = vunpack.c.l.b16 %v500
      %v578 = vunpack.c.h.b16 %v500
      %v579 = vunpack.c.l.b16 %v501
      %v580 = vunpack.c.l.b16 %v502
      %v581 = vunpack.c.h.b16 %v502
      %v582 = vunpack.c.l.b16 %v503
      %v583 = vunpack.c.l.b16 %v504
      %v584 = vunpack.c.h.b16 %v504
      %v585 = vunpack.c.l.b16 %v505
      %v586 = vpack.c.b16 %v541, %v538
      %v587 = vpack.c.b16 %v542, %v539
      %v588 = vpack.c.b16 %v543, %v540
      %v589 = vpack.c.b16 %v547, %v544
      %v590 = vpack.c.b16 %v548, %v545
      %v591 = vpack.c.b16 %v549, %v546
      %v592 = vpack.c.b16 %v553, %v550
      %v593 = vpack.c.b16 %v554, %v551
      %v594 = vpack.c.b16 %v555, %v552
      %v595 = vpack.c.b16 %v559, %v556
      %v596 = vpack.c.b16 %v560, %v557
      %v597 = vpack.c.b16 %v561, %v558
      %v598 = vpack.c.b16 %v565, %v562
      %v599 = vpack.c.b16 %v566, %v563
      %v600 = vpack.c.b16 %v567, %v564
      %v601 = vpack.c.b16 %v571, %v568
      %v602 = vpack.c.b16 %v572, %v569
      %v603 = vpack.c.b16 %v573, %v570
      %v604 = vpack.c.b16 %v577, %v574
      %v605 = vpack.c.b16 %v578, %v575
      %v606 = vpack.c.b16 %v579, %v576
      %v607 = vpack.c.b16 %v583, %v580
      %v608 = vpack.c.b16 %v584, %v581
      %v609 = vpack.c.b16 %v585, %v582
      %634 = vmatprep.subr.bf16.mxu0 %v587
      %635 = vmatpush1.bf16.msra.mxu0 %v586
      %636 = vmatprep.subr.bf16.mxu0 %v590
      %637 = vmatpush1.bf16.msra.mxu0 %v589
      %638 = vmatprep.subr.bf16.mxu0 %v593
      %639 = vmatpush1.bf16.msra.mxu0 %v592
      %640 = vmatprep.subr.bf16.mxu0 %v596
      %641 = vmatpush1.bf16.msra.mxu0 %v595
      %642 = vmatprep.subr.bf16.mxu0 %v599
      %643 = vmatpush1.bf16.msra.mxu0 %v598
      %644 = vmatprep.subr.bf16.mxu0 %v602
      %645 = vmatpush1.bf16.msra.mxu0 %v601
      %646 = vmatprep.subr.bf16.mxu0 %v605
      %647 = vmatpush1.bf16.msra.mxu0 %v604
      %648 = vmatprep.subr.bf16.mxu0 %v608
      %649 = vmatpush1.bf16.msra.mxu0 %v607
      %650 = vmatprep.subr.bf16.mxu0 0
      %651 = vmatpush1.bf16.msra.mxu0 0
      %652 = vmatprep.subr.bf16.mxu0 0
      %653 = vmatpush1.bf16.msra.mxu0 0
      %654 = vmatprep.subr.bf16.mxu0 0
      %655 = vmatpush1.bf16.msra.mxu0 0
      %656 = vmatprep.subr.bf16.mxu0 0
      %657 = vmatpush1.bf16.msra.mxu0 0
      %658 = vmatprep.subr.bf16.mxu0 0
      %659 = vmatpush1.bf16.msra.mxu0 0
      %660 = vmatprep.subr.bf16.mxu0 0
      %661 = vmatpush1.bf16.msra.mxu0 0
      %662 = vmatprep.subr.bf16.mxu0 0
      %663 = vmatpush1.bf16.msra.mxu0 0
      %664 = vmatprep.subr.bf16.mxu0 0
      %665 = vmatpush1.bf16.msra.mxu0 0
      %666 = vmatprep.mubr.bf16.mxu0 0
      %667 = vmatmul.mubr.bf16.gmra.mrb[0].mxu0 %v466
      %v668 = vpop.f32.mrb[0].mxu0
      %v669 = vadd.f32 0.0, %v668
      %v670 = vpop.f32.mrb[0].mxu0
      %v671 = vadd.f32 0.0, %v670
      %v672 = vpop.f32.mrb[0].mxu0
      %v673 = vadd.f32 0.0, %v672
      %v674 = vpop.f32.mrb[0].mxu0
      %v675 = vadd.f32 0.0, %v674
      %676 = vmatprep.mubr.bf16.mxu0 0
      %677 = vmatmul.mubr.bf16.gmra.mrb[0].mxu0 %v467
      %v678 = vpop.f32.mrb[0].mxu0
      %v679 = vadd.f32 0.0, %v678
      %v680 = vpop.f32.mrb[0].mxu0
      %v681 = vadd.f32 0.0, %v680
      %v682 = vpop.f32.mrb[0].mxu0
      %v683 = vadd.f32 0.0, %v682
      %v684 = vpop.f32.mrb[0].mxu0
      %v685 = vadd.f32 0.0, %v684
      %686 = vmatprep.mubr.bf16.mxu0 0
      %687 = vmatmul.mubr.bf16.gmra.mrb[0].mxu0 %v468
      %v688 = vpop.f32.mrb[0].mxu0
      %v689 = vadd.f32 0.0, %v688
      %v690 = vpop.f32.mrb[0].mxu0
      %v691 = vadd.f32 0.0, %v690
      %v692 = vpop.f32.mrb[0].mxu0
      %v693 = vadd.f32 0.0, %v692
      %v694 = vpop.f32.mrb[0].mxu0
      %v695 = vadd.f32 0.0, %v694
      %696 = vmatprep.mubr.bf16.mxu0 0
      %697 = vmatmul.mubr.bf16.gmra.mrb[0].mxu0 %v469
      %v698 = vpop.f32.mrb[0].mxu0
      %v699 = vadd.f32 0.0, %v698
      %v700 = vpop.f32.mrb[0].mxu0
      %v701 = vadd.f32 0.0, %v700
      %v702 = vpop.f32.mrb[0].mxu0
      %v703 = vadd.f32 0.0, %v702
      %v704 = vpop.f32.mrb[0].mxu0
      %v705 = vadd.f32 0.0, %v704
      %706 = vmatprep.mubr.bf16.mxu0 0
      %707 = vmatmul.mubr.bf16.gmra.mrb[0].mxu0 %v470
      %v708 = vpop.f32.mrb[0].mxu0
      %v709 = vadd.f32 0.0, %v708
      %v710 = vpop.f32.mrb[0].mxu0
      %v711 = vadd.f32 0.0, %v710
      %v712 = vpop.f32.mrb[0].mxu0
      %v713 = vadd.f32 0.0, %v712
      %v714 = vpop.f32.mrb[0].mxu0
      %v715 = vadd.f32 0.0, %v714
      %716 = vmatprep.mubr.bf16.mxu0 0
      %717 = vmatmul.mubr.bf16.gmra.mrb[0].mxu0 %v471
      %v718 = vpop.f32.mrb[0].mxu0
      %v719 = vadd.f32 0.0, %v718
      %v720 = vpop.f32.mrb[0].mxu0
      %v721 = vadd.f32 0.0, %v720
      %v722 = vpop.f32.mrb[0].mxu0
      %v723 = vadd.f32 0.0, %v722
      %v724 = vpop.f32.mrb[0].mxu0
      %v725 = vadd.f32 0.0, %v724
      %726 = vmatprep.mubr.bf16.mxu0 0
      %727 = vmatmul.mubr.bf16.gmra.mrb[0].mxu0 %v472
      %v728 = vpop.f32.mrb[0].mxu0
      %v729 = vadd.f32 0.0, %v728
      %v730 = vpop.f32.mrb[0].mxu0
      %v731 = vadd.f32 0.0, %v730
      %v732 = vpop.f32.mrb[0].mxu0
      %v733 = vadd.f32 0.0, %v732
      %v734 = vpop.f32.mrb[0].mxu0
      %v735 = vadd.f32 0.0, %v734
      %736 = vmatprep.mubr.bf16.mxu0 0
      %737 = vmatmul.mubr.bf16.gmra.mrb[0].mxu0 %v473
      %v738 = vpop.f32.mrb[0].mxu0
      %v739 = vadd.f32 0.0, %v738
      %v740 = vpop.f32.mrb[0].mxu0
      %v741 = vadd.f32 0.0, %v740
      %v742 = vpop.f32.mrb[0].mxu0
      %v743 = vadd.f32 0.0, %v742
      %v744 = vpop.f32.mrb[0].mxu0
      %v745 = vadd.f32 0.0, %v744
      %746 = vdwg.mxu0
      %747 = vmatprep.subr.bf16.mxu0 0
      %748 = vmatpush1.bf16.msra.mxu0 %v588
      %749 = vmatprep.subr.bf16.mxu0 0
      %750 = vmatpush1.bf16.msra.mxu0 %v591
      %751 = vmatprep.subr.bf16.mxu0 0
      %752 = vmatpush1.bf16.msra.mxu0 %v594
      %753 = vmatprep.subr.bf16.mxu0 0
      %754 = vmatpush1.bf16.msra.mxu0 %v597
      %755 = vmatprep.subr.bf16.mxu0 0
      %756 = vmatpush1.bf16.msra.mxu0 %v600
      %757 = vmatprep.subr.bf16.mxu0 0
      %758 = vmatpush1.bf16.msra.mxu0 %v603
      %759 = vmatprep.subr.bf16.mxu0 0
      %760 = vmatpush1.bf16.msra.mxu0 %v606
      %761 = vmatprep.subr.bf16.mxu0 0
      %762 = vmatpush1.bf16.msra.mxu0 %v609
      %763 = vmatprep.subr.bf16.mxu0 0
      %764 = vmatpush1.bf16.msra.mxu0 0
      %765 = vmatprep.subr.bf16.mxu0 0
      %766 = vmatpush1.bf16.msra.mxu0 0
      %767 = vmatprep.subr.bf16.mxu0 0
      %768 = vmatpush1.bf16.msra.mxu0 0
      %769 = vmatprep.subr.bf16.mxu0 0
      %770 = vmatpush1.bf16.msra.mxu0 0
      %771 = vmatprep.subr.bf16.mxu0 0
      %772 = vmatpush1.bf16.msra.mxu0 0
      %773 = vmatprep.subr.bf16.mxu0 0
      %774 = vmatpush1.bf16.msra.mxu0 0
      %775 = vmatprep.subr.bf16.mxu0 0
      %776 = vmatpush1.bf16.msra.mxu0 0
      %777 = vmatprep.subr.bf16.mxu0 0
      %778 = vmatpush1.bf16.msra.mxu0 0
      %779 = vmatprep.mubr.bf16.mxu0 0
      %780 = vmatmul.mubr.bf16.gmra.mrb[0].mxu0 %v466
      %v781 = vpop.f32.mrb[0].mxu0
      %v782 = vadd.f32 0.0, %v781
      %v783 = vpop.f32.mrb[0].mxu0
      %v784 = vpop.f32.mrb[0].mxu0
      %v785 = vadd.f32 0.0, %v784
      %v786 = vpop.f32.mrb[0].mxu0
      %787 = vmatprep.mubr.bf16.mxu0 0
      %788 = vmatmul.mubr.bf16.gmra.mrb[0].mxu0 %v467
      %v789 = vpop.f32.mrb[0].mxu0
      %v790 = vadd.f32 0.0, %v789
      %v791 = vpop.f32.mrb[0].mxu0
      %v792 = vpop.f32.mrb[0].mxu0
      %v793 = vadd.f32 0.0, %v792
      %v794 = vpop.f32.mrb[0].mxu0
      %795 = vmatprep.mubr.bf16.mxu0 0
      %796 = vmatmul.mubr.bf16.gmra.mrb[0].mxu0 %v468
      %v797 = vpop.f32.mrb[0].mxu0
      %v798 = vadd.f32 0.0, %v797
      %v799 = vpop.f32.mrb[0].mxu0
      %v800 = vpop.f32.mrb[0].mxu0
      %v801 = vadd.f32 0.0, %v800
      %v802 = vpop.f32.mrb[0].mxu0
      %803 = vmatprep.mubr.bf16.mxu0 0
      %804 = vmatmul.mubr.bf16.gmra.mrb[0].mxu0 %v469
      %v805 = vpop.f32.mrb[0].mxu0
      %v806 = vadd.f32 0.0, %v805
      %v807 = vpop.f32.mrb[0].mxu0
      %v808 = vpop.f32.mrb[0].mxu0
      %v809 = vadd.f32 0.0, %v808
      %v810 = vpop.f32.mrb[0].mxu0
      %811 = vmatprep.mubr.bf16.mxu0 0
      %812 = vmatmul.mubr.bf16.gmra.mrb[0].mxu0 %v470
      %v813 = vpop.f32.mrb[0].mxu0
      %v814 = vadd.f32 0.0, %v813
      %v815 = vpop.f32.mrb[0].mxu0
      %v816 = vpop.f32.mrb[0].mxu0
      %v817 = vadd.f32 0.0, %v816
      %v818 = vpop.f32.mrb[0].mxu0
      %819 = vmatprep.mubr.bf16.mxu0 0
      %820 = vmatmul.mubr.bf16.gmra.mrb[0].mxu0 %v471
      %v821 = vpop.f32.mrb[0].mxu0
      %v822 = vadd.f32 0.0, %v821
      %v823 = vpop.f32.mrb[0].mxu0
      %v824 = vpop.f32.mrb[0].mxu0
      %v825 = vadd.f32 0.0, %v824
      %v826 = vpop.f32.mrb[0].mxu0
      %827 = vmatprep.mubr.bf16.mxu0 0
      %828 = vmatmul.mubr.bf16.gmra.mrb[0].mxu0 %v472
      %v829 = vpop.f32.mrb[0].mxu0
      %v830 = vadd.f32 0.0, %v829
      %v831 = vpop.f32.mrb[0].mxu0
      %v832 = vpop.f32.mrb[0].mxu0
      %v833 = vadd.f32 0.0, %v832
      %v834 = vpop.f32.mrb[0].mxu0
      %835 = vmatprep.mubr.bf16.mxu0 0
      %836 = vmatmul.mubr.bf16.gmra.mrb[0].mxu0 %v473
      %v837 = vpop.f32.mrb[0].mxu0
      %v838 = vadd.f32 0.0, %v837
      %v839 = vpop.f32.mrb[0].mxu0
      %v840 = vpop.f32.mrb[0].mxu0
      %v841 = vadd.f32 0.0, %v840
      %v842 = vpop.f32.mrb[0].mxu0
      %843 = vdwg.mxu0
      %v844 = vld [vmem:[%s402] sm:$0x1]
      %v845 = vlaneseq
      %v846 = vshrl.u32 %v845, 7
      %v847 = vsub.s32 0, %v846
      %v848 = vrot.slane %v844, %v847
      %v849 = vadd.f32 %v669, %v848
      %v850 = vadd.f32 %v673, %v848
      %v851 = vadd.f32 %v679, %v848
      %v852 = vadd.f32 %v683, %v848
      %v853 = vadd.f32 %v689, %v848
      %v854 = vadd.f32 %v693, %v848
      %v855 = vadd.f32 %v699, %v848
      %v856 = vadd.f32 %v703, %v848
      %v857 = vadd.f32 %v709, %v848
      %v858 = vadd.f32 %v713, %v848
      %v859 = vadd.f32 %v719, %v848
      %v860 = vadd.f32 %v723, %v848
      %v861 = vadd.f32 %v729, %v848
      %v862 = vadd.f32 %v733, %v848
      %v863 = vadd.f32 %v739, %v848
      %v864 = vadd.f32 %v743, %v848
      %v865 = vld [vmem:[%s402 + $0x1] sm:$0x1]
      %v866 = vlaneseq
      %v867 = vshrl.u32 %v866, 7
      %v868 = vsub.s32 0, %v867
      %v869 = vrot.slane %v865, %v868
      %v870 = vadd.f32 %v671, %v869
      %v871 = vadd.f32 %v675, %v869
      %v872 = vadd.f32 %v681, %v869
      %v873 = vadd.f32 %v685, %v869
      %v874 = vadd.f32 %v691, %v869
      %v875 = vadd.f32 %v695, %v869
      %v876 = vadd.f32 %v701, %v869
      %v877 = vadd.f32 %v705, %v869
      %v878 = vadd.f32 %v711, %v869
      %v879 = vadd.f32 %v715, %v869
      %v880 = vadd.f32 %v721, %v869
      %v881 = vadd.f32 %v725, %v869
      %v882 = vadd.f32 %v731, %v869
      %v883 = vadd.f32 %v735, %v869
      %v884 = vadd.f32 %v741, %v869
      %v885 = vadd.f32 %v745, %v869
      %v886 = vld [vmem:[%s402 + $0x2] sm:$0x1]
      %v887 = vlaneseq
      %v888 = vshrl.u32 %v887, 7
      %v889 = vsub.s32 0, %v888
      %v890 = vrot.slane %v886, %v889
      %v891 = vadd.f32 %v782, %v890
      %v892 = vadd.f32 %v785, %v890
      %v893 = vadd.f32 %v790, %v890
      %v894 = vadd.f32 %v793, %v890
      %v895 = vadd.f32 %v798, %v890
      %v896 = vadd.f32 %v801, %v890
      %v897 = vadd.f32 %v806, %v890
      %v898 = vadd.f32 %v809, %v890
      %v899 = vadd.f32 %v814, %v890
      %v900 = vadd.f32 %v817, %v890
      %v901 = vadd.f32 %v822, %v890
      %v902 = vadd.f32 %v825, %v890
      %v903 = vadd.f32 %v830, %v890
      %v904 = vadd.f32 %v833, %v890
      %v905 = vadd.f32 %v838, %v890
      %v906 = vadd.f32 %v841, %v890
      %v907 = vpack.c.bf16 %v850, %v849
      %v908 = vpack.c.bf16 %v852, %v851
      %v909 = vpack.c.bf16 %v854, %v853
      %v910 = vpack.c.bf16 %v856, %v855
      %v911 = vpack.c.bf16 %v858, %v857
      %v912 = vpack.c.bf16 %v860, %v859
      %v913 = vpack.c.bf16 %v862, %v861
      %v914 = vpack.c.bf16 %v864, %v863
      %v915 = vpack.c.bf16 %v871, %v870
      %v916 = vpack.c.bf16 %v873, %v872
      %v917 = vpack.c.bf16 %v875, %v874
      %v918 = vpack.c.bf16 %v877, %v876
      %v919 = vpack.c.bf16 %v879, %v878
      %v920 = vpack.c.bf16 %v881, %v880
      %v921 = vpack.c.bf16 %v883, %v882
      %v922 = vpack.c.bf16 %v885, %v884
      %923 = vmatprep.subr.bf16.mxu0 0
      %924 = vmatpush1.bf16.xpose.msra.mxu0 %v915
      %925 = vmatprep.subr.bf16.mxu0 0
      %926 = vmatpush1.bf16.xpose.msra.mxu0 0
      %927 = vmatprep.subr.bf16.mxu0 0
      %928 = vmatpush1.bf16.xpose.msra.mxu0 0
      %929 = vmatprep.subr.bf16.mxu0 0
      %930 = vmatpush1.bf16.xpose.msra.mxu0 0
      %931 = vmatprep.subr.bf16.mxu0 0
      %932 = vmatpush1.bf16.xpose.msra.mxu0 0
      %933 = vmatprep.subr.bf16.mxu0 0
      %934 = vmatpush1.bf16.xpose.msra.mxu0 0
      %935 = vmatprep.subr.bf16.mxu0 0
      %936 = vmatpush1.bf16.xpose.msra.mxu0 0
      %937 = vmatprep.subr.bf16.mxu0 0
      %938 = vmatpush1.bf16.xpose.msra.mxu0 0
      %939 = vmatprep.subr.bf16.mxu0 0
      %940 = vmatpush1.bf16.xpose.msra.mxu0 0
      %941 = vmatprep.subr.bf16.mxu0 0
      %942 = vmatpush1.bf16.xpose.msra.mxu0 0
      %943 = vmatprep.subr.bf16.mxu0 0
      %944 = vmatpush1.bf16.xpose.msra.mxu0 0
      %945 = vmatprep.subr.bf16.mxu0 0
      %946 = vmatpush1.bf16.xpose.msra.mxu0 0
      %947 = vmatprep.subr.bf16.mxu0 0
      %948 = vmatpush1.bf16.xpose.msra.mxu0 0
      %949 = vmatprep.subr.bf16.mxu0 0
      %950 = vmatpush1.bf16.xpose.msra.mxu0 0
      %951 = vmatprep.subr.bf16.mxu0 0
      %952 = vmatpush1.bf16.xpose.msra.mxu0 0
      %953 = vmatprep.subr.bf16.mxu0 0
      %954 = vmatpush1.bf16.xpose.msra.mxu0 0
      %955 = vmatprep.mubr.bf16.mxu0 0
      %956 = vmatmul.mubr.bf16.gmra.mrb[0].mxu0 %v907
      %v957 = vpop.f32.mrb[0].mxu0
      %v958 = vadd.f32 0.0, %v957
      %v959 = vpop.f32.mrb[0].mxu0
      %v960 = vpop.f32.mrb[0].mxu0
      %v961 = vadd.f32 0.0, %v960
      %v962 = vpop.f32.mrb[0].mxu0
      %963 = vdwg.mxu0
      %964 = vmatprep.subr.bf16.mxu0 0
      %965 = vmatpush1.bf16.xpose.msra.mxu0 %v916
      %966 = vmatprep.subr.bf16.mxu0 0
      %967 = vmatpush1.bf16.xpose.msra.mxu0 0
      %968 = vmatprep.subr.bf16.mxu0 0
      %969 = vmatpush1.bf16.xpose.msra.mxu0 0
      %970 = vmatprep.subr.bf16.mxu0 0
      %971 = vmatpush1.bf16.xpose.msra.mxu0 0
      %972 = vmatprep.subr.bf16.mxu0 0
      %973 = vmatpush1.bf16.xpose.msra.mxu0 0
      %974 = vmatprep.subr.bf16.mxu0 0
      %975 = vmatpush1.bf16.xpose.msra.mxu0 0
      %976 = vmatprep.subr.bf16.mxu0 0
      %977 = vmatpush1.bf16.xpose.msra.mxu0 0
      %978 = vmatprep.subr.bf16.mxu0 0
      %979 = vmatpush1.bf16.xpose.msra.mxu0 0
      %980 = vmatprep.subr.bf16.mxu0 0
      %981 = vmatpush1.bf16.xpose.msra.mxu0 0
      %982 = vmatprep.subr.bf16.mxu0 0
      %983 = vmatpush1.bf16.xpose.msra.mxu0 0
      %984 = vmatprep.subr.bf16.mxu0 0
      %985 = vmatpush1.bf16.xpose.msra.mxu0 0
      %986 = vmatprep.subr.bf16.mxu0 0
      %987 = vmatpush1.bf16.xpose.msra.mxu0 0
      %988 = vmatprep.subr.bf16.mxu0 0
      %989 = vmatpush1.bf16.xpose.msra.mxu0 0
      %990 = vmatprep.subr.bf16.mxu0 0
      %991 = vmatpush1.bf16.xpose.msra.mxu0 0
      %992 = vmatprep.subr.bf16.mxu0 0
      %993 = vmatpush1.bf16.xpose.msra.mxu0 0
      %994 = vmatprep.subr.bf16.mxu0 0
      %995 = vmatpush1.bf16.xpose.msra.mxu0 0
      %996 = vmatprep.mubr.bf16.mxu0 0
      %997 = vmatmul.mubr.bf16.gmra.mrb[0].mxu0 %v908
      %v998 = vpop.f32.mrb[0].mxu0
      %v999 = vadd.f32 0.0, %v998
      %v1000 = vpop.f32.mrb[0].mxu0
      %v1001 = vpop.f32.mrb[0].mxu0
      %v1002 = vadd.f32 0.0, %v1001
      %v1003 = vpop.f32.mrb[0].mxu0
      %1004 = vdwg.mxu0
      %1005 = vmatprep.subr.bf16.mxu0 0
      %1006 = vmatpush1.bf16.xpose.msra.mxu0 %v917
      %1007 = vmatprep.subr.bf16.mxu0 0
      %1008 = vmatpush1.bf16.xpose.msra.mxu0 0
      %1009 = vmatprep.subr.bf16.mxu0 0
      %1010 = vmatpush1.bf16.xpose.msra.mxu0 0
      %1011 = vmatprep.subr.bf16.mxu0 0
      %1012 = vmatpush1.bf16.xpose.msra.mxu0 0
      %1013 = vmatprep.subr.bf16.mxu0 0
      %1014 = vmatpush1.bf16.xpose.msra.mxu0 0
      %1015 = vmatprep.subr.bf16.mxu0 0
      %1016 = vmatpush1.bf16.xpose.msra.mxu0 0
      %1017 = vmatprep.subr.bf16.mxu0 0
      %1018 = vmatpush1.bf16.xpose.msra.mxu0 0
      %1019 = vmatprep.subr.bf16.mxu0 0
      %1020 = vmatpush1.bf16.xpose.msra.mxu0 0
      %1021 = vmatprep.subr.bf16.mxu0 0
      %1022 = vmatpush1.bf16.xpose.msra.mxu0 0
      %1023 = vmatprep.subr.bf16.mxu0 0
      %1024 = vmatpush1.bf16.xpose.msra.mxu0 0
      %1025 = vmatprep.subr.bf16.mxu0 0
      %1026 = vmatpush1.bf16.xpose.msra.mxu0 0
      %1027 = vmatprep.subr.bf16.mxu0 0
      %1028 = vmatpush1.bf16.xpose.msra.mxu0 0
      %1029 = vmatprep.subr.bf16.mxu0 0
      %1030 = vmatpush1.bf16.xpose.msra.mxu0 0
      %1031 = vmatprep.subr.bf16.mxu0 0
      %1032 = vmatpush1.bf16.xpose.msra.mxu0 0
      %1033 = vmatprep.subr.bf16.mxu0 0
      %1034 = vmatpush1.bf16.xpose.msra.mxu0 0
      %1035 = vmatprep.subr.bf16.mxu0 0
      %1036 = vmatpush1.bf16.xpose.msra.mxu0 0
      %1037 = vmatprep.mubr.bf16.mxu0 0
      %1038 = vmatmul.mubr.bf16.gmra.mrb[0].mxu0 %v909
      %v1039 = vpop.f32.mrb[0].mxu0
      %v1040 = vadd.f32 0.0, %v1039
      %v1041 = vpop.f32.mrb[0].mxu0
      %v1042 = vpop.f32.mrb[0].mxu0
      %v1043 = vadd.f32 0.0, %v1042
      %v1044 = vpop.f32.mrb[0].mxu0
      %1045 = vdwg.mxu0
      %1046 = vmatprep.subr.bf16.mxu0 0
      %1047 = vmatpush1.bf16.xpose.msra.mxu0 %v918
      %1048 = vmatprep.subr.bf16.mxu0 0
      %1049 = vmatpush1.bf16.xpose.msra.mxu0 0
      %1050 = vmatprep.subr.bf16.mxu0 0
      %1051 = vmatpush1.bf16.xpose.msra.mxu0 0
      %1052 = vmatprep.subr.bf16.mxu0 0
      %1053 = vmatpush1.bf16.xpose.msra.mxu0 0
      %1054 = vmatprep.subr.bf16.mxu0 0
      %1055 = vmatpush1.bf16.xpose.msra.mxu0 0
      %1056 = vmatprep.subr.bf16.mxu0 0
      %1057 = vmatpush1.bf16.xpose.msra.mxu0 0
      %1058 = vmatprep.subr.bf16.mxu0 0
      %1059 = vmatpush1.bf16.xpose.msra.mxu0 0
      %1060 = vmatprep.subr.bf16.mxu0 0
      %1061 = vmatpush1.bf16.xpose.msra.mxu0 0
      %1062 = vmatprep.subr.bf16.mxu0 0
      %1063 = vmatpush1.bf16.xpose.msra.mxu0 0
      %1064 = vmatprep.subr.bf16.mxu0 0
      %1065 = vmatpush1.bf16.xpose.msra.mxu0 0
      %1066 = vmatprep.subr.bf16.mxu0 0
      %1067 = vmatpush1.bf16.xpose.msra.mxu0 0
      %1068 = vmatprep.subr.bf16.mxu0 0
      %1069 = vmatpush1.bf16.xpose.msra.mxu0 0
      %1070 = vmatprep.subr.bf16.mxu0 0
      %1071 = vmatpush1.bf16.xpose.msra.mxu0 0
      %1072 = vmatprep.subr.bf16.mxu0 0
      %1073 = vmatpush1.bf16.xpose.msra.mxu0 0
      %1074 = vmatprep.subr.bf16.mxu0 0
      %1075 = vmatpush1.bf16.xpose.msra.mxu0 0
      %1076 = vmatprep.subr.bf16.mxu0 0
      %1077 = vmatpush1.bf16.xpose.msra.mxu0 0
      %1078 = vmatprep.mubr.bf16.mxu0 0
      %1079 = vmatmul.mubr.bf16.gmra.mrb[0].mxu0 %v910
      %v1080 = vpop.f32.mrb[0].mxu0
      %v1081 = vadd.f32 0.0, %v1080
      %v1082 = vpop.f32.mrb[0].mxu0
      %v1083 = vpop.f32.mrb[0].mxu0
      %v1084 = vadd.f32 0.0, %v1083
      %v1085 = vpop.f32.mrb[0].mxu0
      %1086 = vdwg.mxu0
      %1087 = vmatprep.subr.bf16.mxu0 0
      %1088 = vmatpush1.bf16.xpose.msra.mxu0 %v919
      %1089 = vmatprep.subr.bf16.mxu0 0
      %1090 = vmatpush1.bf16.xpose.msra.mxu0 0
      %1091 = vmatprep.subr.bf16.mxu0 0
      %1092 = vmatpush1.bf16.xpose.msra.mxu0 0
      %1093 = vmatprep.subr.bf16.mxu0 0
      %1094 = vmatpush1.bf16.xpose.msra.mxu0 0
      %1095 = vmatprep.subr.bf16.mxu0 0
      %1096 = vmatpush1.bf16.xpose.msra.mxu0 0
      %1097 = vmatprep.subr.bf16.mxu0 0
      %1098 = vmatpush1.bf16.xpose.msra.mxu0 0
      %1099 = vmatprep.subr.bf16.mxu0 0
      %1100 = vmatpush1.bf16.xpose.msra.mxu0 0
      %1101 = vmatprep.subr.bf16.mxu0 0
      %1102 = vmatpush1.bf16.xpose.msra.mxu0 0
      %1103 = vmatprep.subr.bf16.mxu0 0
      %1104 = vmatpush1.bf16.xpose.msra.mxu0 0
      %1105 = vmatprep.subr.bf16.mxu0 0
      %1106 = vmatpush1.bf16.xpose.msra.mxu0 0
      %1107 = vmatprep.subr.bf16.mxu0 0
      %1108 = vmatpush1.bf16.xpose.msra.mxu0 0
      %1109 = vmatprep.subr.bf16.mxu0 0
      %1110 = vmatpush1.bf16.xpose.msra.mxu0 0
      %1111 = vmatprep.subr.bf16.mxu0 0
      %1112 = vmatpush1.bf16.xpose.msra.mxu0 0
      %1113 = vmatprep.subr.bf16.mxu0 0
      %1114 = vmatpush1.bf16.xpose.msra.mxu0 0
      %1115 = vmatprep.subr.bf16.mxu0 0
      %1116 = vmatpush1.bf16.xpose.msra.mxu0 0
      %1117 = vmatprep.subr.bf16.mxu0 0
      %1118 = vmatpush1.bf16.xpose.msra.mxu0 0
      %1119 = vmatprep.mubr.bf16.mxu0 0
      %1120 = vmatmul.mubr.bf16.gmra.mrb[0].mxu0 %v911
      %v1121 = vpop.f32.mrb[0].mxu0
      %v1122 = vadd.f32 0.0, %v1121
      %v1123 = vpop.f32.mrb[0].mxu0
      %v1124 = vpop.f32.mrb[0].mxu0
      %v1125 = vadd.f32 0.0, %v1124
      %v1126 = vpop.f32.mrb[0].mxu0
      %1127 = vdwg.mxu0
      %1128 = vmatprep.subr.bf16.mxu0 0
      %1129 = vmatpush1.bf16.xpose.msra.mxu0 %v920
      %1130 = vmatprep.subr.bf16.mxu0 0
      %1131 = vmatpush1.bf16.xpose.msra.mxu0 0
      %1132 = vmatprep.subr.bf16.mxu0 0
      %1133 = vmatpush1.bf16.xpose.msra.mxu0 0
      %1134 = vmatprep.subr.bf16.mxu0 0
      %1135 = vmatpush1.bf16.xpose.msra.mxu0 0
      %1136 = vmatprep.subr.bf16.mxu0 0
      %1137 = vmatpush1.bf16.xpose.msra.mxu0 0
      %1138 = vmatprep.subr.bf16.mxu0 0
      %1139 = vmatpush1.bf16.xpose.msra.mxu0 0
      %1140 = vmatprep.subr.bf16.mxu0 0
      %1141 = vmatpush1.bf16.xpose.msra.mxu0 0
      %1142 = vmatprep.subr.bf16.mxu0 0
      %1143 = vmatpush1.bf16.xpose.msra.mxu0 0
      %1144 = vmatprep.subr.bf16.mxu0 0
      %1145 = vmatpush1.bf16.xpose.msra.mxu0 0
      %1146 = vmatprep.subr.bf16.mxu0 0
      %1147 = vmatpush1.bf16.xpose.msra.mxu0 0
      %1148 = vmatprep.subr.bf16.mxu0 0
      %1149 = vmatpush1.bf16.xpose.msra.mxu0 0
      %1150 = vmatprep.subr.bf16.mxu0 0
      %1151 = vmatpush1.bf16.xpose.msra.mxu0 0
      %1152 = vmatprep.subr.bf16.mxu0 0
      %1153 = vmatpush1.bf16.xpose.msra.mxu0 0
      %1154 = vmatprep.subr.bf16.mxu0 0
      %1155 = vmatpush1.bf16.xpose.msra.mxu0 0
      %1156 = vmatprep.subr.bf16.mxu0 0
      %1157 = vmatpush1.bf16.xpose.msra.mxu0 0
      %1158 = vmatprep.subr.bf16.mxu0 0
      %1159 = vmatpush1.bf16.xpose.msra.mxu0 0
      %1160 = vmatprep.mubr.bf16.mxu0 0
      %1161 = vmatmul.mubr.bf16.gmra.mrb[0].mxu0 %v912
      %v1162 = vpop.f32.mrb[0].mxu0
      %v1163 = vadd.f32 0.0, %v1162
      %v1164 = vpop.f32.mrb[0].mxu0
      %v1165 = vpop.f32.mrb[0].mxu0
      %v1166 = vadd.f32 0.0, %v1165
      %v1167 = vpop.f32.mrb[0].mxu0
      %1168 = vdwg.mxu0
      %1169 = vmatprep.subr.bf16.mxu0 0
      %1170 = vmatpush1.bf16.xpose.msra.mxu0 %v921
      %1171 = vmatprep.subr.bf16.mxu0 0
      %1172 = vmatpush1.bf16.xpose.msra.mxu0 0
      %1173 = vmatprep.subr.bf16.mxu0 0
      %1174 = vmatpush1.bf16.xpose.msra.mxu0 0
      %1175 = vmatprep.subr.bf16.mxu0 0
      %1176 = vmatpush1.bf16.xpose.msra.mxu0 0
      %1177 = vmatprep.subr.bf16.mxu0 0
      %1178 = vmatpush1.bf16.xpose.msra.mxu0 0
      %1179 = vmatprep.subr.bf16.mxu0 0
      %1180 = vmatpush1.bf16.xpose.msra.mxu0 0
      %1181 = vmatprep.subr.bf16.mxu0 0
      %1182 = vmatpush1.bf16.xpose.msra.mxu0 0
      %1183 = vmatprep.subr.bf16.mxu0 0
      %1184 = vmatpush1.bf16.xpose.msra.mxu0 0
      %1185 = vmatprep.subr.bf16.mxu0 0
      %1186 = vmatpush1.bf16.xpose.msra.mxu0 0
      %1187 = vmatprep.subr.bf16.mxu0 0
      %1188 = vmatpush1.bf16.xpose.msra.mxu0 0
      %1189 = vmatprep.subr.bf16.mxu0 0
      %1190 = vmatpush1.bf16.xpose.msra.mxu0 0
      %1191 = vmatprep.subr.bf16.mxu0 0
      %1192 = vmatpush1.bf16.xpose.msra.mxu0 0
      %1193 = vmatprep.subr.bf16.mxu0 0
      %1194 = vmatpush1.bf16.xpose.msra.mxu0 0
      %1195 = vmatprep.subr.bf16.mxu0 0
      %1196 = vmatpush1.bf16.xpose.msra.mxu0 0
      %1197 = vmatprep.subr.bf16.mxu0 0
      %1198 = vmatpush1.bf16.xpose.msra.mxu0 0
      %1199 = vmatprep.subr.bf16.mxu0 0
      %1200 = vmatpush1.bf16.xpose.msra.mxu0 0
      %1201 = vmatprep.mubr.bf16.mxu0 0
      %1202 = vmatmul.mubr.bf16.gmra.mrb[0].mxu0 %v913
      %v1203 = vpop.f32.mrb[0].mxu0
      %v1204 = vadd.f32 0.0, %v1203
      %v1205 = vpop.f32.mrb[0].mxu0
      %v1206 = vpop.f32.mrb[0].mxu0
      %v1207 = vadd.f32 0.0, %v1206
      %v1208 = vpop.f32.mrb[0].mxu0
      %1209 = vdwg.mxu0
      %1210 = vmatprep.subr.bf16.mxu0 0
      %1211 = vmatpush1.bf16.xpose.msra.mxu0 %v922
      %1212 = vmatprep.subr.bf16.mxu0 0
      %1213 = vmatpush1.bf16.xpose.msra.mxu0 0
      %1214 = vmatprep.subr.bf16.mxu0 0
      %1215 = vmatpush1.bf16.xpose.msra.mxu0 0
      %1216 = vmatprep.subr.bf16.mxu0 0
      %1217 = vmatpush1.bf16.xpose.msra.mxu0 0
      %1218 = vmatprep.subr.bf16.mxu0 0
      %1219 = vmatpush1.bf16.xpose.msra.mxu0 0
      %1220 = vmatprep.subr.bf16.mxu0 0
      %1221 = vmatpush1.bf16.xpose.msra.mxu0 0
      %1222 = vmatprep.subr.bf16.mxu0 0
      %1223 = vmatpush1.bf16.xpose.msra.mxu0 0
      %1224 = vmatprep.subr.bf16.mxu0 0
      %1225 = vmatpush1.bf16.xpose.msra.mxu0 0
      %1226 = vmatprep.subr.bf16.mxu0 0
      %1227 = vmatpush1.bf16.xpose.msra.mxu0 0
      %1228 = vmatprep.subr.bf16.mxu0 0
      %1229 = vmatpush1.bf16.xpose.msra.mxu0 0
      %1230 = vmatprep.subr.bf16.mxu0 0
      %1231 = vmatpush1.bf16.xpose.msra.mxu0 0
      %1232 = vmatprep.subr.bf16.mxu0 0
      %1233 = vmatpush1.bf16.xpose.msra.mxu0 0
      %1234 = vmatprep.subr.bf16.mxu0 0
      %1235 = vmatpush1.bf16.xpose.msra.mxu0 0
      %1236 = vmatprep.subr.bf16.mxu0 0
      %1237 = vmatpush1.bf16.xpose.msra.mxu0 0
      %1238 = vmatprep.subr.bf16.mxu0 0
      %1239 = vmatpush1.bf16.xpose.msra.mxu0 0
      %1240 = vmatprep.subr.bf16.mxu0 0
      %1241 = vmatpush1.bf16.xpose.msra.mxu0 0
      %1242 = vmatprep.mubr.bf16.mxu0 0
      %1243 = vmatmul.mubr.bf16.gmra.mrb[0].mxu0 %v914
      %v1244 = vpop.f32.mrb[0].mxu0
      %v1245 = vadd.f32 0.0, %v1244
      %v1246 = vpop.f32.mrb[0].mxu0
      %v1247 = vpop.f32.mrb[0].mxu0
      %v1248 = vadd.f32 0.0, %v1247
      %v1249 = vpop.f32.mrb[0].mxu0
      %1250 = vdwg.mxu0
      %v1251 = vmul.f32 %v958, 0.17677669
      %v1252 = vmul.f32 %v961, 0.17677669
      %v1253 = vmul.f32 %v999, 0.17677669
      %v1254 = vmul.f32 %v1002, 0.17677669
      %v1255 = vmul.f32 %v1040, 0.17677669
      %v1256 = vmul.f32 %v1043, 0.17677669
      %v1257 = vmul.f32 %v1081, 0.17677669
      %v1258 = vmul.f32 %v1084, 0.17677669
      %v1259 = vmul.f32 %v1122, 0.17677669
      %v1260 = vmul.f32 %v1125, 0.17677669
      %v1261 = vmul.f32 %v1163, 0.17677669
      %v1262 = vmul.f32 %v1166, 0.17677669
      %v1263 = vmul.f32 %v1204, 0.17677669
      %v1264 = vmul.f32 %v1207, 0.17677669
      %v1265 = vmul.f32 %v1245, 0.17677669
      %v1266 = vmul.f32 %v1248, 0.17677669
      %vm1267 = vcmask 130048
      %v1268 = vsel %vm1267, %v1251, -inf
      %1269 = vmax.xlane.f32.xlu0 %v1268
      %v1270 = vpop.xlane.xlu0 %1269
      %v1271 = vsel %vm1267, %v1252, -inf
      %1272 = vmax.xlane.f32.xlu0 %v1271
      %v1273 = vpop.xlane.xlu0 %1272
      %v1274 = vsel %vm1267, %v1253, -inf
      %1275 = vmax.xlane.f32.xlu0 %v1274
      %v1276 = vpop.xlane.xlu0 %1275
      %v1277 = vsel %vm1267, %v1254, -inf
      %1278 = vmax.xlane.f32.xlu0 %v1277
      %v1279 = vpop.xlane.xlu0 %1278
      %v1280 = vsel %vm1267, %v1255, -inf
      %1281 = vmax.xlane.f32.xlu0 %v1280
      %v1282 = vpop.xlane.xlu0 %1281
      %v1283 = vsel %vm1267, %v1256, -inf
      %1284 = vmax.xlane.f32.xlu0 %v1283
      %v1285 = vpop.xlane.xlu0 %1284
      %v1286 = vsel %vm1267, %v1257, -inf
      %1287 = vmax.xlane.f32.xlu0 %v1286
      %v1288 = vpop.xlane.xlu0 %1287
      %v1289 = vsel %vm1267, %v1258, -inf
      %1290 = vmax.xlane.f32.xlu0 %v1289
      %v1291 = vpop.xlane.xlu0 %1290
      %v1292 = vsel %vm1267, %v1259, -inf
      %1293 = vmax.xlane.f32.xlu0 %v1292
      %v1294 = vpop.xlane.xlu0 %1293
      %v1295 = vsel %vm1267, %v1260, -inf
      %1296 = vmax.xlane.f32.xlu0 %v1295
      %v1297 = vpop.xlane.xlu0 %1296
      %v1298 = vsel %vm1267, %v1261, -inf
      %1299 = vmax.xlane.f32.xlu0 %v1298
      %v1300 = vpop.xlane.xlu0 %1299
      %v1301 = vsel %vm1267, %v1262, -inf
      %1302 = vmax.xlane.f32.xlu0 %v1301
      %v1303 = vpop.xlane.xlu0 %1302
      %v1304 = vsel %vm1267, %v1263, -inf
      %1305 = vmax.xlane.f32.xlu0 %v1304
      %v1306 = vpop.xlane.xlu0 %1305
      %v1307 = vsel %vm1267, %v1264, -inf
      %1308 = vmax.xlane.f32.xlu0 %v1307
      %v1309 = vpop.xlane.xlu0 %1308
      %v1310 = vsel %vm1267, %v1265, -inf
      %1311 = vmax.xlane.f32.xlu0 %v1310
      %v1312 = vpop.xlane.xlu0 %1311
      %v1313 = vsel %vm1267, %v1266, -inf
      %1314 = vmax.xlane.f32.xlu0 %v1313
      %v1315 = vpop.xlane.xlu0 %1314
      %v1316 = vsub.f32 %v1251, %v1270
      %v1317 = vsub.f32 %v1252, %v1273
      %v1318 = vsub.f32 %v1253, %v1276
      %v1319 = vsub.f32 %v1254, %v1279
      %v1320 = vsub.f32 %v1255, %v1282
      %v1321 = vsub.f32 %v1256, %v1285
      %v1322 = vsub.f32 %v1257, %v1288
      %v1323 = vsub.f32 %v1258, %v1291
      %v1324 = vsub.f32 %v1259, %v1294
      %v1325 = vsub.f32 %v1260, %v1297
      %v1326 = vsub.f32 %v1261, %v1300
      %v1327 = vsub.f32 %v1262, %v1303
      %v1328 = vsub.f32 %v1263, %v1306
      %v1329 = vsub.f32 %v1264, %v1309
      %v1330 = vsub.f32 %v1265, %v1312
      %v1331 = vsub.f32 %v1266, %v1315
      %v1332 = vmul.f32 %v1316, 1.442695
      %v1333 = vpow.pop %v1332
      %v1334 = vmul.f32 %v1317, 1.442695
      %v1335 = vpow.pop %v1334
      %v1336 = vmul.f32 %v1318, 1.442695
      %v1337 = vpow.pop %v1336
      %v1338 = vmul.f32 %v1319, 1.442695
      %v1339 = vpow.pop %v1338
      %v1340 = vmul.f32 %v1320, 1.442695
      %v1341 = vpow.pop %v1340
      %v1342 = vmul.f32 %v1321, 1.442695
      %v1343 = vpow.pop %v1342
      %v1344 = vmul.f32 %v1322, 1.442695
      %v1345 = vpow.pop %v1344
      %v1346 = vmul.f32 %v1323, 1.442695
      %v1347 = vpow.pop %v1346
      %v1348 = vmul.f32 %v1324, 1.442695
      %v1349 = vpow.pop %v1348
      %v1350 = vmul.f32 %v1325, 1.442695
      %v1351 = vpow.pop %v1350
      %v1352 = vmul.f32 %v1326, 1.442695
      %v1353 = vpow.pop %v1352
      %v1354 = vmul.f32 %v1327, 1.442695
      %v1355 = vpow.pop %v1354
      %v1356 = vmul.f32 %v1328, 1.442695
      %v1357 = vpow.pop %v1356
      %v1358 = vmul.f32 %v1329, 1.442695
      %v1359 = vpow.pop %v1358
      %v1360 = vmul.f32 %v1330, 1.442695
      %v1361 = vpow.pop %v1360
      %v1362 = vmul.f32 %v1331, 1.442695
      %v1363 = vpow.pop %v1362
      %v1364 = vsel %vm1267, %v1333, 0.0
      %1365 = vadd.xlane.f32.xlu0 %v1364
      %v1366 = vpop.xlane.xlu0 %1365
      %v1367 = vsel %vm1267, %v1335, 0.0
      %1368 = vadd.xlane.f32.xlu0 %v1367
      %v1369 = vpop.xlane.xlu0 %1368
      %v1370 = vsel %vm1267, %v1337, 0.0
      %1371 = vadd.xlane.f32.xlu0 %v1370
      %v1372 = vpop.xlane.xlu0 %1371
      %v1373 = vsel %vm1267, %v1339, 0.0
      %1374 = vadd.xlane.f32.xlu0 %v1373
      %v1375 = vpop.xlane.xlu0 %1374
      %v1376 = vsel %vm1267, %v1341, 0.0
      %1377 = vadd.xlane.f32.xlu0 %v1376
      %v1378 = vpop.xlane.xlu0 %1377
      %v1379 = vsel %vm1267, %v1343, 0.0
      %1380 = vadd.xlane.f32.xlu0 %v1379
      %v1381 = vpop.xlane.xlu0 %1380
      %v1382 = vsel %vm1267, %v1345, 0.0
      %1383 = vadd.xlane.f32.xlu0 %v1382
      %v1384 = vpop.xlane.xlu0 %1383
      %v1385 = vsel %vm1267, %v1347, 0.0
      %1386 = vadd.xlane.f32.xlu0 %v1385
      %v1387 = vpop.xlane.xlu0 %1386
      %v1388 = vsel %vm1267, %v1349, 0.0
      %1389 = vadd.xlane.f32.xlu0 %v1388
      %v1390 = vpop.xlane.xlu0 %1389
      %v1391 = vsel %vm1267, %v1351, 0.0
      %1392 = vadd.xlane.f32.xlu0 %v1391
      %v1393 = vpop.xlane.xlu0 %1392
      %v1394 = vsel %vm1267, %v1353, 0.0
      %1395 = vadd.xlane.f32.xlu0 %v1394
      %v1396 = vpop.xlane.xlu0 %1395
      %v1397 = vsel %vm1267, %v1355, 0.0
      %1398 = vadd.xlane.f32.xlu0 %v1397
      %v1399 = vpop.xlane.xlu0 %1398
      %v1400 = vsel %vm1267, %v1357, 0.0
      %1401 = vadd.xlane.f32.xlu0 %v1400
      %v1402 = vpop.xlane.xlu0 %1401
      %v1403 = vsel %vm1267, %v1359, 0.0
      %1404 = vadd.xlane.f32.xlu0 %v1403
      %v1405 = vpop.xlane.xlu0 %1404
      %v1406 = vsel %vm1267, %v1361, 0.0
      %1407 = vadd.xlane.f32.xlu0 %v1406
      %v1408 = vpop.xlane.xlu0 %1407
      %v1409 = vsel %vm1267, %v1363, 0.0
      %1410 = vadd.xlane.f32.xlu0 %v1409
      %v1411 = vpop.xlane.xlu0 %1410
      %v1412 = vrcp.pop %v1366
      %v1413 = vrcp.pop %v1369
      %v1414 = vrcp.pop %v1372
      %v1415 = vrcp.pop %v1375
      %v1416 = vrcp.pop %v1378
      %v1417 = vrcp.pop %v1381
      %v1418 = vrcp.pop %v1384
      %v1419 = vrcp.pop %v1387
      %v1420 = vrcp.pop %v1390
      %v1421 = vrcp.pop %v1393
      %v1422 = vrcp.pop %v1396
      %v1423 = vrcp.pop %v1399
      %v1424 = vrcp.pop %v1402
      %v1425 = vrcp.pop %v1405
      %v1426 = vrcp.pop %v1408
      %v1427 = vrcp.pop %v1411
      %v1428 = vmul.f32 %v1333, %v1412
      %v1429 = vmul.f32 %v1335, %v1413
      %v1430 = vmul.f32 %v1337, %v1414
      %v1431 = vmul.f32 %v1339, %v1415
      %v1432 = vmul.f32 %v1341, %v1416
      %v1433 = vmul.f32 %v1343, %v1417
      %v1434 = vmul.f32 %v1345, %v1418
      %v1435 = vmul.f32 %v1347, %v1419
      %v1436 = vmul.f32 %v1349, %v1420
      %v1437 = vmul.f32 %v1351, %v1421
      %v1438 = vmul.f32 %v1353, %v1422
      %v1439 = vmul.f32 %v1355, %v1423
      %v1440 = vmul.f32 %v1357, %v1424
      %v1441 = vmul.f32 %v1359, %v1425
      %v1442 = vmul.f32 %v1361, %v1426
      %v1443 = vmul.f32 %v1363, %v1427
      %v1444 = vpack.c.bf16 %v1429, %v1428
      %v1445 = vpack.c.bf16 %v1431, %v1430
      %v1446 = vpack.c.bf16 %v1433, %v1432
      %v1447 = vpack.c.bf16 %v1435, %v1434
      %v1448 = vpack.c.bf16 %v1437, %v1436
      %v1449 = vpack.c.bf16 %v1439, %v1438
      %v1450 = vpack.c.bf16 %v1441, %v1440
      %v1451 = vpack.c.bf16 %v1443, %v1442
      %v1452 = vpack.c.bf16 %v892, %v891
      %v1453 = vpack.c.bf16 %v894, %v893
      %v1454 = vpack.c.bf16 %v896, %v895
      %v1455 = vpack.c.bf16 %v898, %v897
      %v1456 = vpack.c.bf16 %v900, %v899
      %v1457 = vpack.c.bf16 %v902, %v901
      %v1458 = vpack.c.bf16 %v904, %v903
      %v1459 = vpack.c.bf16 %v906, %v905
      %v1461 = vsel %vm1267, %v1444, 0
      %1463 = vmatprep.subr.bf16.mxu0 0
      %1464 = vmatpush1.bf16.msra.mxu0 %v1452
      %1465 = vmatprep.subr.bf16.mxu0 0
      %1466 = vmatpush1.bf16.msra.mxu0 0
      %1467 = vmatprep.subr.bf16.mxu0 0
      %1468 = vmatpush1.bf16.msra.mxu0 0
      %1469 = vmatprep.subr.bf16.mxu0 0
      %1470 = vmatpush1.bf16.msra.mxu0 0
      %1471 = vmatprep.subr.bf16.mxu0 0
      %1472 = vmatpush1.bf16.msra.mxu0 0
      %1473 = vmatprep.subr.bf16.mxu0 0
      %1474 = vmatpush1.bf16.msra.mxu0 0
      %1475 = vmatprep.subr.bf16.mxu0 0
      %1476 = vmatpush1.bf16.msra.mxu0 0
      %1477 = vmatprep.subr.bf16.mxu0 0
      %1478 = vmatpush1.bf16.msra.mxu0 0
      %1479 = vmatprep.subr.bf16.mxu0 0
      %1480 = vmatpush1.bf16.msra.mxu0 0
      %1481 = vmatprep.subr.bf16.mxu0 0
      %1482 = vmatpush1.bf16.msra.mxu0 0
      %1483 = vmatprep.subr.bf16.mxu0 0
      %1484 = vmatpush1.bf16.msra.mxu0 0
      %1485 = vmatprep.subr.bf16.mxu0 0
      %1486 = vmatpush1.bf16.msra.mxu0 0
      %1487 = vmatprep.subr.bf16.mxu0 0
      %1488 = vmatpush1.bf16.msra.mxu0 0
      %1489 = vmatprep.subr.bf16.mxu0 0
      %1490 = vmatpush1.bf16.msra.mxu0 0
      %1491 = vmatprep.subr.bf16.mxu0 0
      %1492 = vmatpush1.bf16.msra.mxu0 0
      %1493 = vmatprep.subr.bf16.mxu0 0
      %1494 = vmatpush1.bf16.msra.mxu0 0
      %1495 = vmatprep.mubr.bf16.mxu0 0
      %1496 = vmatmul.mubr.bf16.gmra.mrb[0].mxu0 %v1461
      %v1497 = vpop.f32.mrb[0].mxu0
      %v1498 = vadd.f32 0.0, %v1497
      %v1499 = vpop.f32.mrb[0].mxu0
      %v1500 = vpop.f32.mrb[0].mxu0
      %v1501 = vadd.f32 0.0, %v1500
      %v1502 = vpop.f32.mrb[0].mxu0
      %1503 = vdwg.mxu0
      %v1505 = vsel %vm1267, %v1445, 0
      %1507 = vmatprep.subr.bf16.mxu0 0
      %1508 = vmatpush1.bf16.msra.mxu0 %v1453
      %1509 = vmatprep.subr.bf16.mxu0 0
      %1510 = vmatpush1.bf16.msra.mxu0 0
      %1511 = vmatprep.subr.bf16.mxu0 0
      %1512 = vmatpush1.bf16.msra.mxu0 0
      %1513 = vmatprep.subr.bf16.mxu0 0
      %1514 = vmatpush1.bf16.msra.mxu0 0
      %1515 = vmatprep.subr.bf16.mxu0 0
      %1516 = vmatpush1.bf16.msra.mxu0 0
      %1517 = vmatprep.subr.bf16.mxu0 0
      %1518 = vmatpush1.bf16.msra.mxu0 0
      %1519 = vmatprep.subr.bf16.mxu0 0
      %1520 = vmatpush1.bf16.msra.mxu0 0
      %1521 = vmatprep.subr.bf16.mxu0 0
      %1522 = vmatpush1.bf16.msra.mxu0 0
      %1523 = vmatprep.subr.bf16.mxu0 0
      %1524 = vmatpush1.bf16.msra.mxu0 0
      %1525 = vmatprep.subr.bf16.mxu0 0
      %1526 = vmatpush1.bf16.msra.mxu0 0
      %1527 = vmatprep.subr.bf16.mxu0 0
      %1528 = vmatpush1.bf16.msra.mxu0 0
      %1529 = vmatprep.subr.bf16.mxu0 0
      %1530 = vmatpush1.bf16.msra.mxu0 0
      %1531 = vmatprep.subr.bf16.mxu0 0
      %1532 = vmatpush1.bf16.msra.mxu0 0
      %1533 = vmatprep.subr.bf16.mxu0 0
      %1534 = vmatpush1.bf16.msra.mxu0 0
      %1535 = vmatprep.subr.bf16.mxu0 0
      %1536 = vmatpush1.bf16.msra.mxu0 0
      %1537 = vmatprep.subr.bf16.mxu0 0
      %1538 = vmatpush1.bf16.msra.mxu0 0
      %1539 = vmatprep.mubr.bf16.mxu0 0
      %1540 = vmatmul.mubr.bf16.gmra.mrb[0].mxu0 %v1505
      %v1541 = vpop.f32.mrb[0].mxu0
      %v1542 = vadd.f32 0.0, %v1541
      %v1543 = vpop.f32.mrb[0].mxu0
      %v1544 = vpop.f32.mrb[0].mxu0
      %v1545 = vadd.f32 0.0, %v1544
      %v1546 = vpop.f32.mrb[0].mxu0
      %1547 = vdwg.mxu0
      %v1549 = vsel %vm1267, %v1446, 0
      %1551 = vmatprep.subr.bf16.mxu0 0
      %1552 = vmatpush1.bf16.msra.mxu0 %v1454
      %1553 = vmatprep.subr.bf16.mxu0 0
      %1554 = vmatpush1.bf16.msra.mxu0 0
      %1555 = vmatprep.subr.bf16.mxu0 0
      %1556 = vmatpush1.bf16.msra.mxu0 0
      %1557 = vmatprep.subr.bf16.mxu0 0
      %1558 = vmatpush1.bf16.msra.mxu0 0
      %1559 = vmatprep.subr.bf16.mxu0 0
      %1560 = vmatpush1.bf16.msra.mxu0 0
      %1561 = vmatprep.subr.bf16.mxu0 0
      %1562 = vmatpush1.bf16.msra.mxu0 0
      %1563 = vmatprep.subr.bf16.mxu0 0
      %1564 = vmatpush1.bf16.msra.mxu0 0
      %1565 = vmatprep.subr.bf16.mxu0 0
      %1566 = vmatpush1.bf16.msra.mxu0 0
      %1567 = vmatprep.subr.bf16.mxu0 0
      %1568 = vmatpush1.bf16.msra.mxu0 0
      %1569 = vmatprep.subr.bf16.mxu0 0
      %1570 = vmatpush1.bf16.msra.mxu0 0
      %1571 = vmatprep.subr.bf16.mxu0 0
      %1572 = vmatpush1.bf16.msra.mxu0 0
      %1573 = vmatprep.subr.bf16.mxu0 0
      %1574 = vmatpush1.bf16.msra.mxu0 0
      %1575 = vmatprep.subr.bf16.mxu0 0
      %1576 = vmatpush1.bf16.msra.mxu0 0
      %1577 = vmatprep.subr.bf16.mxu0 0
      %1578 = vmatpush1.bf16.msra.mxu0 0
      %1579 = vmatprep.subr.bf16.mxu0 0
      %1580 = vmatpush1.bf16.msra.mxu0 0
      %1581 = vmatprep.subr.bf16.mxu0 0
      %1582 = vmatpush1.bf16.msra.mxu0 0
      %1583 = vmatprep.mubr.bf16.mxu0 0
      %1584 = vmatmul.mubr.bf16.gmra.mrb[0].mxu0 %v1549
      %v1585 = vpop.f32.mrb[0].mxu0
      %v1586 = vadd.f32 0.0, %v1585
      %v1587 = vpop.f32.mrb[0].mxu0
      %v1588 = vpop.f32.mrb[0].mxu0
      %v1589 = vadd.f32 0.0, %v1588
      %v1590 = vpop.f32.mrb[0].mxu0
      %1591 = vdwg.mxu0
      %v1593 = vsel %vm1267, %v1447, 0
      %1595 = vmatprep.subr.bf16.mxu0 0
      %1596 = vmatpush1.bf16.msra.mxu0 %v1455
      %1597 = vmatprep.subr.bf16.mxu0 0
      %1598 = vmatpush1.bf16.msra.mxu0 0
      %1599 = vmatprep.subr.bf16.mxu0 0
      %1600 = vmatpush1.bf16.msra.mxu0 0
      %1601 = vmatprep.subr.bf16.mxu0 0
      %1602 = vmatpush1.bf16.msra.mxu0 0
      %1603 = vmatprep.subr.bf16.mxu0 0
      %1604 = vmatpush1.bf16.msra.mxu0 0
      %1605 = vmatprep.subr.bf16.mxu0 0
      %1606 = vmatpush1.bf16.msra.mxu0 0
      %1607 = vmatprep.subr.bf16.mxu0 0
      %1608 = vmatpush1.bf16.msra.mxu0 0
      %1609 = vmatprep.subr.bf16.mxu0 0
      %1610 = vmatpush1.bf16.msra.mxu0 0
      %1611 = vmatprep.subr.bf16.mxu0 0
      %1612 = vmatpush1.bf16.msra.mxu0 0
      %1613 = vmatprep.subr.bf16.mxu0 0
      %1614 = vmatpush1.bf16.msra.mxu0 0
      %1615 = vmatprep.subr.bf16.mxu0 0
      %1616 = vmatpush1.bf16.msra.mxu0 0
      %1617 = vmatprep.subr.bf16.mxu0 0
      %1618 = vmatpush1.bf16.msra.mxu0 0
      %1619 = vmatprep.subr.bf16.mxu0 0
      %1620 = vmatpush1.bf16.msra.mxu0 0
      %1621 = vmatprep.subr.bf16.mxu0 0
      %1622 = vmatpush1.bf16.msra.mxu0 0
      %1623 = vmatprep.subr.bf16.mxu0 0
      %1624 = vmatpush1.bf16.msra.mxu0 0
      %1625 = vmatprep.subr.bf16.mxu0 0
      %1626 = vmatpush1.bf16.msra.mxu0 0
      %1627 = vmatprep.mubr.bf16.mxu0 0
      %1628 = vmatmul.mubr.bf16.gmra.mrb[0].mxu0 %v1593
      %v1629 = vpop.f32.mrb[0].mxu0
      %v1630 = vadd.f32 0.0, %v1629
      %v1631 = vpop.f32.mrb[0].mxu0
      %v1632 = vpop.f32.mrb[0].mxu0
      %v1633 = vadd.f32 0.0, %v1632
      %v1634 = vpop.f32.mrb[0].mxu0
      %1635 = vdwg.mxu0
      %v1637 = vsel %vm1267, %v1448, 0
      %1639 = vmatprep.subr.bf16.mxu0 0
      %1640 = vmatpush1.bf16.msra.mxu0 %v1456
      %1641 = vmatprep.subr.bf16.mxu0 0
      %1642 = vmatpush1.bf16.msra.mxu0 0
      %1643 = vmatprep.subr.bf16.mxu0 0
      %1644 = vmatpush1.bf16.msra.mxu0 0
      %1645 = vmatprep.subr.bf16.mxu0 0
      %1646 = vmatpush1.bf16.msra.mxu0 0
      %1647 = vmatprep.subr.bf16.mxu0 0
      %1648 = vmatpush1.bf16.msra.mxu0 0
      %1649 = vmatprep.subr.bf16.mxu0 0
      %1650 = vmatpush1.bf16.msra.mxu0 0
      %1651 = vmatprep.subr.bf16.mxu0 0
      %1652 = vmatpush1.bf16.msra.mxu0 0
      %1653 = vmatprep.subr.bf16.mxu0 0
      %1654 = vmatpush1.bf16.msra.mxu0 0
      %1655 = vmatprep.subr.bf16.mxu0 0
      %1656 = vmatpush1.bf16.msra.mxu0 0
      %1657 = vmatprep.subr.bf16.mxu0 0
      %1658 = vmatpush1.bf16.msra.mxu0 0
      %1659 = vmatprep.subr.bf16.mxu0 0
      %1660 = vmatpush1.bf16.msra.mxu0 0
      %1661 = vmatprep.subr.bf16.mxu0 0
      %1662 = vmatpush1.bf16.msra.mxu0 0
      %1663 = vmatprep.subr.bf16.mxu0 0
      %1664 = vmatpush1.bf16.msra.mxu0 0
      %1665 = vmatprep.subr.bf16.mxu0 0
      %1666 = vmatpush1.bf16.msra.mxu0 0
      %1667 = vmatprep.subr.bf16.mxu0 0
      %1668 = vmatpush1.bf16.msra.mxu0 0
      %1669 = vmatprep.subr.bf16.mxu0 0
      %1670 = vmatpush1.bf16.msra.mxu0 0
      %1671 = vmatprep.mubr.bf16.mxu0 0
      %1672 = vmatmul.mubr.bf16.gmra.mrb[0].mxu0 %v1637
      %v1673 = vpop.f32.mrb[0].mxu0
      %v1674 = vadd.f32 0.0, %v1673
      %v1675 = vpop.f32.mrb[0].mxu0
      %v1676 = vpop.f32.mrb[0].mxu0
      %v1677 = vadd.f32 0.0, %v1676
      %v1678 = vpop.f32.mrb[0].mxu0
      %1679 = vdwg.mxu0
      %v1681 = vsel %vm1267, %v1449, 0
      %1683 = vmatprep.subr.bf16.mxu0 0
      %1684 = vmatpush1.bf16.msra.mxu0 %v1457
      %1685 = vmatprep.subr.bf16.mxu0 0
      %1686 = vmatpush1.bf16.msra.mxu0 0
      %1687 = vmatprep.subr.bf16.mxu0 0
      %1688 = vmatpush1.bf16.msra.mxu0 0
      %1689 = vmatprep.subr.bf16.mxu0 0
      %1690 = vmatpush1.bf16.msra.mxu0 0
      %1691 = vmatprep.subr.bf16.mxu0 0
      %1692 = vmatpush1.bf16.msra.mxu0 0
      %1693 = vmatprep.subr.bf16.mxu0 0
      %1694 = vmatpush1.bf16.msra.mxu0 0
      %1695 = vmatprep.subr.bf16.mxu0 0
      %1696 = vmatpush1.bf16.msra.mxu0 0
      %1697 = vmatprep.subr.bf16.mxu0 0
      %1698 = vmatpush1.bf16.msra.mxu0 0
      %1699 = vmatprep.subr.bf16.mxu0 0
      %1700 = vmatpush1.bf16.msra.mxu0 0
      %1701 = vmatprep.subr.bf16.mxu0 0
      %1702 = vmatpush1.bf16.msra.mxu0 0
      %1703 = vmatprep.subr.bf16.mxu0 0
      %1704 = vmatpush1.bf16.msra.mxu0 0
      %1705 = vmatprep.subr.bf16.mxu0 0
      %1706 = vmatpush1.bf16.msra.mxu0 0
      %1707 = vmatprep.subr.bf16.mxu0 0
      %1708 = vmatpush1.bf16.msra.mxu0 0
      %1709 = vmatprep.subr.bf16.mxu0 0
      %1710 = vmatpush1.bf16.msra.mxu0 0
      %1711 = vmatprep.subr.bf16.mxu0 0
      %1712 = vmatpush1.bf16.msra.mxu0 0
      %1713 = vmatprep.subr.bf16.mxu0 0
      %1714 = vmatpush1.bf16.msra.mxu0 0
      %1715 = vmatprep.mubr.bf16.mxu0 0
      %1716 = vmatmul.mubr.bf16.gmra.mrb[0].mxu0 %v1681
      %v1717 = vpop.f32.mrb[0].mxu0
      %v1718 = vadd.f32 0.0, %v1717
      %v1719 = vpop.f32.mrb[0].mxu0
      %v1720 = vpop.f32.mrb[0].mxu0
      %v1721 = vadd.f32 0.0, %v1720
      %v1722 = vpop.f32.mrb[0].mxu0
      %1723 = vdwg.mxu0
      %v1725 = vsel %vm1267, %v1450, 0
      %1727 = vmatprep.subr.bf16.mxu0 0
      %1728 = vmatpush1.bf16.msra.mxu0 %v1458
      %1729 = vmatprep.subr.bf16.mxu0 0
      %1730 = vmatpush1.bf16.msra.mxu0 0
      %1731 = vmatprep.subr.bf16.mxu0 0
      %1732 = vmatpush1.bf16.msra.mxu0 0
      %1733 = vmatprep.subr.bf16.mxu0 0
      %1734 = vmatpush1.bf16.msra.mxu0 0
      %1735 = vmatprep.subr.bf16.mxu0 0
      %1736 = vmatpush1.bf16.msra.mxu0 0
      %1737 = vmatprep.subr.bf16.mxu0 0
      %1738 = vmatpush1.bf16.msra.mxu0 0
      %1739 = vmatprep.subr.bf16.mxu0 0
      %1740 = vmatpush1.bf16.msra.mxu0 0
      %1741 = vmatprep.subr.bf16.mxu0 0
      %1742 = vmatpush1.bf16.msra.mxu0 0
      %1743 = vmatprep.subr.bf16.mxu0 0
      %1744 = vmatpush1.bf16.msra.mxu0 0
      %1745 = vmatprep.subr.bf16.mxu0 0
      %1746 = vmatpush1.bf16.msra.mxu0 0
      %1747 = vmatprep.subr.bf16.mxu0 0
      %1748 = vmatpush1.bf16.msra.mxu0 0
      %1749 = vmatprep.subr.bf16.mxu0 0
      %1750 = vmatpush1.bf16.msra.mxu0 0
      %1751 = vmatprep.subr.bf16.mxu0 0
      %1752 = vmatpush1.bf16.msra.mxu0 0
      %1753 = vmatprep.subr.bf16.mxu0 0
      %1754 = vmatpush1.bf16.msra.mxu0 0
      %1755 = vmatprep.subr.bf16.mxu0 0
      %1756 = vmatpush1.bf16.msra.mxu0 0
      %1757 = vmatprep.subr.bf16.mxu0 0
      %1758 = vmatpush1.bf16.msra.mxu0 0
      %1759 = vmatprep.mubr.bf16.mxu0 0
      %1760 = vmatmul.mubr.bf16.gmra.mrb[0].mxu0 %v1725
      %v1761 = vpop.f32.mrb[0].mxu0
      %v1762 = vadd.f32 0.0, %v1761
      %v1763 = vpop.f32.mrb[0].mxu0
      %v1764 = vpop.f32.mrb[0].mxu0
      %v1765 = vadd.f32 0.0, %v1764
      %v1766 = vpop.f32.mrb[0].mxu0
      %1767 = vdwg.mxu0
      %v1769 = vsel %vm1267, %v1451, 0
      %1771 = vmatprep.subr.bf16.mxu0 0
      %1772 = vmatpush1.bf16.msra.mxu0 %v1459
      %1773 = vmatprep.subr.bf16.mxu0 0
      %1774 = vmatpush1.bf16.msra.mxu0 0
      %1775 = vmatprep.subr.bf16.mxu0 0
      %1776 = vmatpush1.bf16.msra.mxu0 0
      %1777 = vmatprep.subr.bf16.mxu0 0
      %1778 = vmatpush1.bf16.msra.mxu0 0
      %1779 = vmatprep.subr.bf16.mxu0 0
      %1780 = vmatpush1.bf16.msra.mxu0 0
      %1781 = vmatprep.subr.bf16.mxu0 0
      %1782 = vmatpush1.bf16.msra.mxu0 0
      %1783 = vmatprep.subr.bf16.mxu0 0
      %1784 = vmatpush1.bf16.msra.mxu0 0
      %1785 = vmatprep.subr.bf16.mxu0 0
      %1786 = vmatpush1.bf16.msra.mxu0 0
      %1787 = vmatprep.subr.bf16.mxu0 0
      %1788 = vmatpush1.bf16.msra.mxu0 0
      %1789 = vmatprep.subr.bf16.mxu0 0
      %1790 = vmatpush1.bf16.msra.mxu0 0
      %1791 = vmatprep.subr.bf16.mxu0 0
      %1792 = vmatpush1.bf16.msra.mxu0 0
      %1793 = vmatprep.subr.bf16.mxu0 0
      %1794 = vmatpush1.bf16.msra.mxu0 0
      %1795 = vmatprep.subr.bf16.mxu0 0
      %1796 = vmatpush1.bf16.msra.mxu0 0
      %1797 = vmatprep.subr.bf16.mxu0 0
      %1798 = vmatpush1.bf16.msra.mxu0 0
      %1799 = vmatprep.subr.bf16.mxu0 0
      %1800 = vmatpush1.bf16.msra.mxu0 0
      %1801 = vmatprep.subr.bf16.mxu0 0
      %1802 = vmatpush1.bf16.msra.mxu0 0
      %1803 = vmatprep.mubr.bf16.mxu0 0
      %1804 = vmatmul.mubr.bf16.gmra.mrb[0].mxu0 %v1769
      %v1805 = vpop.f32.mrb[0].mxu0
      %v1806 = vadd.f32 0.0, %v1805
      %v1807 = vpop.f32.mrb[0].mxu0
      %v1808 = vpop.f32.mrb[0].mxu0
      %v1809 = vadd.f32 0.0, %v1808
      %v1810 = vpop.f32.mrb[0].mxu0
      %1811 = vdwg.mxu0
      %v1812 = vpack.c.bf16 %v1501, %v1498
      %v1813 = vpack.c.bf16 %v1545, %v1542
      %v1814 = vpack.c.bf16 %v1589, %v1586
      %v1815 = vpack.c.bf16 %v1633, %v1630
      %v1816 = vpack.c.bf16 %v1677, %v1674
      %v1817 = vpack.c.bf16 %v1721, %v1718
      %v1818 = vpack.c.bf16 %v1765, %v1762
      %v1819 = vpack.c.bf16 %v1809, %v1806
      %v1820 = vld [vmem:[%s387] sm:$0xf]
      %v1821 = vld [vmem:[%s387 + $0x4] sm:$0xf]
      %v1822 = vld [vmem:[%s387 + $0x8] sm:$0xf]
      %v1823 = vld [vmem:[%s387 + $0xc] sm:$0xf]
      %v1824 = vld [vmem:[%s387 + $0x10] sm:$0xf]
      %v1825 = vld [vmem:[%s387 + $0x14] sm:$0xf]
      %v1826 = vld [vmem:[%s387 + $0x18] sm:$0xf]
      %v1827 = vld [vmem:[%s387 + $0x1c] sm:$0xf]
      %v1828 = vld [vmem:[%s387 + $0x20] sm:$0xf]
      %v1829 = vld [vmem:[%s387 + $0x24] sm:$0xf]
      %v1830 = vld [vmem:[%s387 + $0x28] sm:$0xf]
      %v1831 = vld [vmem:[%s387 + $0x2c] sm:$0xf]
      %v1832 = vld [vmem:[%s387 + $0x30] sm:$0xf]
      %v1833 = vld [vmem:[%s387 + $0x34] sm:$0xf]
      %v1834 = vld [vmem:[%s387 + $0x38] sm:$0xf]
      %v1835 = vld [vmem:[%s387 + $0x3c] sm:$0xf]
      %v1836 = vld [vmem:[%s402 + $0x3] sm:$0x1]
      %v1837 = vlaneseq
      %v1838 = vshrl.u32 %v1837, 7
      %v1839 = vsub.s32 0, %v1838
      %v1840 = vrot.slane %v1836, %v1839
      %v1857 = vunpack.c.l.b16 %v1820
      %v1858 = vunpack.c.l.b16 %v1821
      %v1859 = vunpack.c.l.b16 %v1822
      %v1860 = vunpack.c.l.b16 %v1823
      %v1861 = vunpack.c.l.b16 %v1824
      %v1862 = vunpack.c.l.b16 %v1825
      %v1863 = vunpack.c.l.b16 %v1826
      %v1864 = vunpack.c.l.b16 %v1827
      %v1865 = vunpack.c.l.b16 %v1828
      %v1866 = vunpack.c.l.b16 %v1829
      %v1867 = vunpack.c.l.b16 %v1830
      %v1868 = vunpack.c.l.b16 %v1831
      %v1869 = vunpack.c.l.b16 %v1832
      %v1870 = vunpack.c.l.b16 %v1833
      %v1871 = vunpack.c.l.b16 %v1834
      %v1872 = vunpack.c.l.b16 %v1835
      %v1873 = vpack.c.b16 %v1858, %v1857
      %v1874 = vpack.c.b16 %v1860, %v1859
      %v1875 = vpack.c.b16 %v1862, %v1861
      %v1876 = vpack.c.b16 %v1864, %v1863
      %v1877 = vpack.c.b16 %v1866, %v1865
      %v1878 = vpack.c.b16 %v1868, %v1867
      %v1879 = vpack.c.b16 %v1870, %v1869
      %v1880 = vpack.c.b16 %v1872, %v1871
      %1889 = vmatprep.subr.bf16.mxu0 0
      %1890 = vmatpush1.bf16.msra.mxu0 %v1873
      %1891 = vmatprep.subr.bf16.mxu0 0
      %1892 = vmatpush1.bf16.msra.mxu0 %v1874
      %1893 = vmatprep.subr.bf16.mxu0 0
      %1894 = vmatpush1.bf16.msra.mxu0 %v1875
      %1895 = vmatprep.subr.bf16.mxu0 0
      %1896 = vmatpush1.bf16.msra.mxu0 %v1876
      %1897 = vmatprep.subr.bf16.mxu0 0
      %1898 = vmatpush1.bf16.msra.mxu0 %v1877
      %1899 = vmatprep.subr.bf16.mxu0 0
      %1900 = vmatpush1.bf16.msra.mxu0 %v1878
      %1901 = vmatprep.subr.bf16.mxu0 0
      %1902 = vmatpush1.bf16.msra.mxu0 %v1879
      %1903 = vmatprep.subr.bf16.mxu0 0
      %1904 = vmatpush1.bf16.msra.mxu0 %v1880
      %1905 = vmatprep.subr.bf16.mxu0 0
      %1906 = vmatpush1.bf16.msra.mxu0 0
      %1907 = vmatprep.subr.bf16.mxu0 0
      %1908 = vmatpush1.bf16.msra.mxu0 0
      %1909 = vmatprep.subr.bf16.mxu0 0
      %1910 = vmatpush1.bf16.msra.mxu0 0
      %1911 = vmatprep.subr.bf16.mxu0 0
      %1912 = vmatpush1.bf16.msra.mxu0 0
      %1913 = vmatprep.subr.bf16.mxu0 0
      %1914 = vmatpush1.bf16.msra.mxu0 0
      %1915 = vmatprep.subr.bf16.mxu0 0
      %1916 = vmatpush1.bf16.msra.mxu0 0
      %1917 = vmatprep.subr.bf16.mxu0 0
      %1918 = vmatpush1.bf16.msra.mxu0 0
      %1919 = vmatprep.subr.bf16.mxu0 0
      %1920 = vmatpush1.bf16.msra.mxu0 0
      %1921 = vmatprep.mubr.bf16.mxu0 0
      %1922 = vmatmul.mubr.bf16.gmra.mrb[0].mxu0 %v1812
      %v1923 = vpop.f32.mrb[0].mxu0
      %v1924 = vadd.f32 %v1840, %v1923
      %v1925 = vpop.f32.mrb[0].mxu0
      %v1926 = vpop.f32.mrb[0].mxu0
      %v1927 = vadd.f32 %v1840, %v1926
      %v1928 = vpop.f32.mrb[0].mxu0
      %1929 = vmatprep.mubr.bf16.mxu0 0
      %1930 = vmatmul.mubr.bf16.gmra.mrb[0].mxu0 %v1813
      %v1931 = vpop.f32.mrb[0].mxu0
      %v1932 = vadd.f32 %v1840, %v1931
      %v1933 = vpop.f32.mrb[0].mxu0
      %v1934 = vpop.f32.mrb[0].mxu0
      %v1935 = vadd.f32 %v1840, %v1934
      %v1936 = vpop.f32.mrb[0].mxu0
      %1937 = vmatprep.mubr.bf16.mxu0 0
      %1938 = vmatmul.mubr.bf16.gmra.mrb[0].mxu0 %v1814
      %v1939 = vpop.f32.mrb[0].mxu0
      %v1940 = vadd.f32 %v1840, %v1939
      %v1941 = vpop.f32.mrb[0].mxu0
      %v1942 = vpop.f32.mrb[0].mxu0
      %v1943 = vadd.f32 %v1840, %v1942
      %v1944 = vpop.f32.mrb[0].mxu0
      %1945 = vmatprep.mubr.bf16.mxu0 0
      %1946 = vmatmul.mubr.bf16.gmra.mrb[0].mxu0 %v1815
      %v1947 = vpop.f32.mrb[0].mxu0
      %v1948 = vadd.f32 %v1840, %v1947
      %v1949 = vpop.f32.mrb[0].mxu0
      %v1950 = vpop.f32.mrb[0].mxu0
      %v1951 = vadd.f32 %v1840, %v1950
      %v1952 = vpop.f32.mrb[0].mxu0
      %1953 = vmatprep.mubr.bf16.mxu0 0
      %1954 = vmatmul.mubr.bf16.gmra.mrb[0].mxu0 %v1816
      %v1955 = vpop.f32.mrb[0].mxu0
      %v1956 = vadd.f32 %v1840, %v1955
      %v1957 = vpop.f32.mrb[0].mxu0
      %v1958 = vpop.f32.mrb[0].mxu0
      %v1959 = vadd.f32 %v1840, %v1958
      %v1960 = vpop.f32.mrb[0].mxu0
      %1961 = vmatprep.mubr.bf16.mxu0 0
      %1962 = vmatmul.mubr.bf16.gmra.mrb[0].mxu0 %v1817
      %v1963 = vpop.f32.mrb[0].mxu0
      %v1964 = vadd.f32 %v1840, %v1963
      %v1965 = vpop.f32.mrb[0].mxu0
      %v1966 = vpop.f32.mrb[0].mxu0
      %v1967 = vadd.f32 %v1840, %v1966
      %v1968 = vpop.f32.mrb[0].mxu0
      %1969 = vmatprep.mubr.bf16.mxu0 0
      %1970 = vmatmul.mubr.bf16.gmra.mrb[0].mxu0 %v1818
      %v1971 = vpop.f32.mrb[0].mxu0
      %v1972 = vadd.f32 %v1840, %v1971
      %v1973 = vpop.f32.mrb[0].mxu0
      %v1974 = vpop.f32.mrb[0].mxu0
      %v1975 = vadd.f32 %v1840, %v1974
      %v1976 = vpop.f32.mrb[0].mxu0
      %1977 = vmatprep.mubr.bf16.mxu0 0
      %1978 = vmatmul.mubr.bf16.gmra.mrb[0].mxu0 %v1819
      %v1979 = vpop.f32.mrb[0].mxu0
      %v1980 = vadd.f32 %v1840, %v1979
      %v1981 = vpop.f32.mrb[0].mxu0
      %v1982 = vpop.f32.mrb[0].mxu0
      %v1983 = vadd.f32 %v1840, %v1982
      %v1984 = vpop.f32.mrb[0].mxu0
      %1985 = vdwg.mxu0
      %v1986 = vadd.f32 %v450, %v1924
      %v1987 = vadd.f32 %v451, %v1927
      %v1988 = vadd.f32 %v452, %v1932
      %v1989 = vadd.f32 %v453, %v1935
      %v1990 = vadd.f32 %v454, %v1940
      %v1991 = vadd.f32 %v455, %v1943
      %v1992 = vadd.f32 %v456, %v1948
      %v1993 = vadd.f32 %v457, %v1951
      %v1994 = vadd.f32 %v458, %v1956
      %v1995 = vadd.f32 %v459, %v1959
      %v1996 = vadd.f32 %v460, %v1964
      %v1997 = vadd.f32 %v461, %v1967
      %v1998 = vadd.f32 %v462, %v1972
      %v1999 = vadd.f32 %v463, %v1975
      %v2000 = vadd.f32 %v464, %v1980
      %v2001 = vadd.f32 %v465, %v1983
      %2002 = vadd.xlane.f32.xlu0 %v1986
      %v2003 = vpop.xlane.xlu0 %2002
      %2004 = vadd.xlane.f32.xlu0 %v1987
      %v2005 = vpop.xlane.xlu0 %2004
      %2006 = vadd.xlane.f32.xlu0 %v1988
      %v2007 = vpop.xlane.xlu0 %2006
      %2008 = vadd.xlane.f32.xlu0 %v1989
      %v2009 = vpop.xlane.xlu0 %2008
      %2010 = vadd.xlane.f32.xlu0 %v1990
      %v2011 = vpop.xlane.xlu0 %2010
      %2012 = vadd.xlane.f32.xlu0 %v1991
      %v2013 = vpop.xlane.xlu0 %2012
      %2014 = vadd.xlane.f32.xlu0 %v1992
      %v2015 = vpop.xlane.xlu0 %2014
      %2016 = vadd.xlane.f32.xlu0 %v1993
      %v2017 = vpop.xlane.xlu0 %2016
      %2018 = vadd.xlane.f32.xlu0 %v1994
      %v2019 = vpop.xlane.xlu0 %2018
      %2020 = vadd.xlane.f32.xlu0 %v1995
      %v2021 = vpop.xlane.xlu0 %2020
      %2022 = vadd.xlane.f32.xlu0 %v1996
      %v2023 = vpop.xlane.xlu0 %2022
      %2024 = vadd.xlane.f32.xlu0 %v1997
      %v2025 = vpop.xlane.xlu0 %2024
      %2026 = vadd.xlane.f32.xlu0 %v1998
      %v2027 = vpop.xlane.xlu0 %2026
      %2028 = vadd.xlane.f32.xlu0 %v1999
      %v2029 = vpop.xlane.xlu0 %2028
      %2030 = vadd.xlane.f32.xlu0 %v2000
      %v2031 = vpop.xlane.xlu0 %2030
      %2032 = vadd.xlane.f32.xlu0 %v2001
      %v2033 = vpop.xlane.xlu0 %2032
      %v2034 = vmul.f32 %v2003, 0.03125
      %v2035 = vmul.f32 %v2005, 0.03125
      %v2036 = vmul.f32 %v2007, 0.03125
      %v2037 = vmul.f32 %v2009, 0.03125
      %v2038 = vmul.f32 %v2011, 0.03125
      %v2039 = vmul.f32 %v2013, 0.03125
      %v2040 = vmul.f32 %v2015, 0.03125
      %v2041 = vmul.f32 %v2017, 0.03125
      %v2042 = vmul.f32 %v2019, 0.03125
      %v2043 = vmul.f32 %v2021, 0.03125
      %v2044 = vmul.f32 %v2023, 0.03125
      %v2045 = vmul.f32 %v2025, 0.03125
      %v2046 = vmul.f32 %v2027, 0.03125
      %v2047 = vmul.f32 %v2029, 0.03125
      %v2048 = vmul.f32 %v2031, 0.03125
      %v2049 = vmul.f32 %v2033, 0.03125
      %v2050 = vmul.f32 %v1986, %v1986
      %v2051 = vmul.f32 %v1987, %v1987
      %v2052 = vmul.f32 %v1988, %v1988
      %v2053 = vmul.f32 %v1989, %v1989
      %v2054 = vmul.f32 %v1990, %v1990
      %v2055 = vmul.f32 %v1991, %v1991
      %v2056 = vmul.f32 %v1992, %v1992
      %v2057 = vmul.f32 %v1993, %v1993
      %v2058 = vmul.f32 %v1994, %v1994
      %v2059 = vmul.f32 %v1995, %v1995
      %v2060 = vmul.f32 %v1996, %v1996
      %v2061 = vmul.f32 %v1997, %v1997
      %v2062 = vmul.f32 %v1998, %v1998
      %v2063 = vmul.f32 %v1999, %v1999
      %v2064 = vmul.f32 %v2000, %v2000
      %v2065 = vmul.f32 %v2001, %v2001
      %2066 = vadd.xlane.f32.xlu0 %v2050
      %v2067 = vpop.xlane.xlu0 %2066
      %2068 = vadd.xlane.f32.xlu0 %v2051
      %v2069 = vpop.xlane.xlu0 %2068
      %2070 = vadd.xlane.f32.xlu0 %v2052
      %v2071 = vpop.xlane.xlu0 %2070
      %2072 = vadd.xlane.f32.xlu0 %v2053
      %v2073 = vpop.xlane.xlu0 %2072
      %2074 = vadd.xlane.f32.xlu0 %v2054
      %v2075 = vpop.xlane.xlu0 %2074
      %2076 = vadd.xlane.f32.xlu0 %v2055
      %v2077 = vpop.xlane.xlu0 %2076
      %2078 = vadd.xlane.f32.xlu0 %v2056
      %v2079 = vpop.xlane.xlu0 %2078
      %2080 = vadd.xlane.f32.xlu0 %v2057
      %v2081 = vpop.xlane.xlu0 %2080
      %2082 = vadd.xlane.f32.xlu0 %v2058
      %v2083 = vpop.xlane.xlu0 %2082
      %2084 = vadd.xlane.f32.xlu0 %v2059
      %v2085 = vpop.xlane.xlu0 %2084
      %2086 = vadd.xlane.f32.xlu0 %v2060
      %v2087 = vpop.xlane.xlu0 %2086
      %2088 = vadd.xlane.f32.xlu0 %v2061
      %v2089 = vpop.xlane.xlu0 %2088
      %2090 = vadd.xlane.f32.xlu0 %v2062
      %v2091 = vpop.xlane.xlu0 %2090
      %2092 = vadd.xlane.f32.xlu0 %v2063
      %v2093 = vpop.xlane.xlu0 %2092
      %2094 = vadd.xlane.f32.xlu0 %v2064
      %v2095 = vpop.xlane.xlu0 %2094
      %2096 = vadd.xlane.f32.xlu0 %v2065
      %v2097 = vpop.xlane.xlu0 %2096
      %v2098 = vmul.f32 %v2067, 0.03125
      %v2099 = vmul.f32 %v2069, 0.03125
      %v2100 = vmul.f32 %v2071, 0.03125
      %v2101 = vmul.f32 %v2073, 0.03125
      %v2102 = vmul.f32 %v2075, 0.03125
      %v2103 = vmul.f32 %v2077, 0.03125
      %v2104 = vmul.f32 %v2079, 0.03125
      %v2105 = vmul.f32 %v2081, 0.03125
      %v2106 = vmul.f32 %v2083, 0.03125
      %v2107 = vmul.f32 %v2085, 0.03125
      %v2108 = vmul.f32 %v2087, 0.03125
      %v2109 = vmul.f32 %v2089, 0.03125
      %v2110 = vmul.f32 %v2091, 0.03125
      %v2111 = vmul.f32 %v2093, 0.03125
      %v2112 = vmul.f32 %v2095, 0.03125
      %v2113 = vmul.f32 %v2097, 0.03125
      %v2114 = vmul.f32 %v2034, %v2034
      %v2115 = vmul.f32 %v2035, %v2035
      %v2116 = vmul.f32 %v2036, %v2036
      %v2117 = vmul.f32 %v2037, %v2037
      %v2118 = vmul.f32 %v2038, %v2038
      %v2119 = vmul.f32 %v2039, %v2039
      %v2120 = vmul.f32 %v2040, %v2040
      %v2121 = vmul.f32 %v2041, %v2041
      %v2122 = vmul.f32 %v2042, %v2042
      %v2123 = vmul.f32 %v2043, %v2043
      %v2124 = vmul.f32 %v2044, %v2044
      %v2125 = vmul.f32 %v2045, %v2045
      %v2126 = vmul.f32 %v2046, %v2046
      %v2127 = vmul.f32 %v2047, %v2047
      %v2128 = vmul.f32 %v2048, %v2048
      %v2129 = vmul.f32 %v2049, %v2049
      %v2130 = vsub.f32 %v2098, %v2114
      %v2131 = vsub.f32 %v2099, %v2115
      %v2132 = vsub.f32 %v2100, %v2116
      %v2133 = vsub.f32 %v2101, %v2117
      %v2134 = vsub.f32 %v2102, %v2118
      %v2135 = vsub.f32 %v2103, %v2119
      %v2136 = vsub.f32 %v2104, %v2120
      %v2137 = vsub.f32 %v2105, %v2121
      %v2138 = vsub.f32 %v2106, %v2122
      %v2139 = vsub.f32 %v2107, %v2123
      %v2140 = vsub.f32 %v2108, %v2124
      %v2141 = vsub.f32 %v2109, %v2125
      %v2142 = vsub.f32 %v2110, %v2126
      %v2143 = vsub.f32 %v2111, %v2127
      %v2144 = vsub.f32 %v2112, %v2128
      %v2145 = vsub.f32 %v2113, %v2129
      %v2146 = vmax.f32 %v2130, 0.0
      %v2147 = vmax.f32 %v2131, 0.0
      %v2148 = vmax.f32 %v2132, 0.0
      %v2149 = vmax.f32 %v2133, 0.0
      %v2150 = vmax.f32 %v2134, 0.0
      %v2151 = vmax.f32 %v2135, 0.0
      %v2152 = vmax.f32 %v2136, 0.0
      %v2153 = vmax.f32 %v2137, 0.0
      %v2154 = vmax.f32 %v2138, 0.0
      %v2155 = vmax.f32 %v2139, 0.0
      %v2156 = vmax.f32 %v2140, 0.0
      %v2157 = vmax.f32 %v2141, 0.0
      %v2158 = vmax.f32 %v2142, 0.0
      %v2159 = vmax.f32 %v2143, 0.0
      %v2160 = vmax.f32 %v2144, 0.0
      %v2161 = vmax.f32 %v2145, 0.0
      %v2162 = vsub.f32 %v1986, %v2034
      %v2163 = vsub.f32 %v1987, %v2035
      %v2164 = vsub.f32 %v1988, %v2036
      %v2165 = vsub.f32 %v1989, %v2037
      %v2166 = vsub.f32 %v1990, %v2038
      %v2167 = vsub.f32 %v1991, %v2039
      %v2168 = vsub.f32 %v1992, %v2040
      %v2169 = vsub.f32 %v1993, %v2041
      %v2170 = vsub.f32 %v1994, %v2042
      %v2171 = vsub.f32 %v1995, %v2043
      %v2172 = vsub.f32 %v1996, %v2044
      %v2173 = vsub.f32 %v1997, %v2045
      %v2174 = vsub.f32 %v1998, %v2046
      %v2175 = vsub.f32 %v1999, %v2047
      %v2176 = vsub.f32 %v2000, %v2048
      %v2177 = vsub.f32 %v2001, %v2049
      %v2178 = vadd.f32 %v2146, 1e-05
      %v2179 = vadd.f32 %v2147, 1e-05
      %v2180 = vadd.f32 %v2148, 1e-05
      %v2181 = vadd.f32 %v2149, 1e-05
      %v2182 = vadd.f32 %v2150, 1e-05
      %v2183 = vadd.f32 %v2151, 1e-05
      %v2184 = vadd.f32 %v2152, 1e-05
      %v2185 = vadd.f32 %v2153, 1e-05
      %v2186 = vadd.f32 %v2154, 1e-05
      %v2187 = vadd.f32 %v2155, 1e-05
      %v2188 = vadd.f32 %v2156, 1e-05
      %v2189 = vadd.f32 %v2157, 1e-05
      %v2190 = vadd.f32 %v2158, 1e-05
      %v2191 = vadd.f32 %v2159, 1e-05
      %v2192 = vadd.f32 %v2160, 1e-05
      %v2193 = vadd.f32 %v2161, 1e-05
      %v2194 = vrsqrt.pop %v2178
      %v2195 = vrsqrt.pop %v2179
      %v2196 = vrsqrt.pop %v2180
      %v2197 = vrsqrt.pop %v2181
      %v2198 = vrsqrt.pop %v2182
      %v2199 = vrsqrt.pop %v2183
      %v2200 = vrsqrt.pop %v2184
      %v2201 = vrsqrt.pop %v2185
      %v2202 = vrsqrt.pop %v2186
      %v2203 = vrsqrt.pop %v2187
      %v2204 = vrsqrt.pop %v2188
      %v2205 = vrsqrt.pop %v2189
      %v2206 = vrsqrt.pop %v2190
      %v2207 = vrsqrt.pop %v2191
      %v2208 = vrsqrt.pop %v2192
      %v2209 = vrsqrt.pop %v2193
      %v2210 = vmul.f32 %v2162, %v2194
      %v2211 = vmul.f32 %v2163, %v2195
      %v2212 = vmul.f32 %v2164, %v2196
      %v2213 = vmul.f32 %v2165, %v2197
      %v2214 = vmul.f32 %v2166, %v2198
      %v2215 = vmul.f32 %v2167, %v2199
      %v2216 = vmul.f32 %v2168, %v2200
      %v2217 = vmul.f32 %v2169, %v2201
      %v2218 = vmul.f32 %v2170, %v2202
      %v2219 = vmul.f32 %v2171, %v2203
      %v2220 = vmul.f32 %v2172, %v2204
      %v2221 = vmul.f32 %v2173, %v2205
      %v2222 = vmul.f32 %v2174, %v2206
      %v2223 = vmul.f32 %v2175, %v2207
      %v2224 = vmul.f32 %v2176, %v2208
      %v2225 = vmul.f32 %v2177, %v2209
      %v2226 = vld [vmem:[%s402 + $0x4] sm:$0x1]
      %v2227 = vlaneseq
      %v2228 = vshrl.u32 %v2227, 7
      %v2229 = vsub.s32 0, %v2228
      %v2230 = vrot.slane %v2226, %v2229
      %v2231 = vmul.f32 %v2210, %v2230
      %v2232 = vmul.f32 %v2211, %v2230
      %v2233 = vmul.f32 %v2212, %v2230
      %v2234 = vmul.f32 %v2213, %v2230
      %v2235 = vmul.f32 %v2214, %v2230
      %v2236 = vmul.f32 %v2215, %v2230
      %v2237 = vmul.f32 %v2216, %v2230
      %v2238 = vmul.f32 %v2217, %v2230
      %v2239 = vmul.f32 %v2218, %v2230
      %v2240 = vmul.f32 %v2219, %v2230
      %v2241 = vmul.f32 %v2220, %v2230
      %v2242 = vmul.f32 %v2221, %v2230
      %v2243 = vmul.f32 %v2222, %v2230
      %v2244 = vmul.f32 %v2223, %v2230
      %v2245 = vmul.f32 %v2224, %v2230
      %v2246 = vmul.f32 %v2225, %v2230
      %v2247 = vld [vmem:[%s402 + $0x5] sm:$0x1]
      %v2248 = vlaneseq
      %v2249 = vshrl.u32 %v2248, 7
      %v2250 = vsub.s32 0, %v2249
      %v2251 = vrot.slane %v2247, %v2250
      %v2252 = vadd.f32 %v2231, %v2251
      %v2253 = vadd.f32 %v2232, %v2251
      %v2254 = vadd.f32 %v2233, %v2251
      %v2255 = vadd.f32 %v2234, %v2251
      %v2256 = vadd.f32 %v2235, %v2251
      %v2257 = vadd.f32 %v2236, %v2251
      %v2258 = vadd.f32 %v2237, %v2251
      %v2259 = vadd.f32 %v2238, %v2251
      %v2260 = vadd.f32 %v2239, %v2251
      %v2261 = vadd.f32 %v2240, %v2251
      %v2262 = vadd.f32 %v2241, %v2251
      %v2263 = vadd.f32 %v2242, %v2251
      %v2264 = vadd.f32 %v2243, %v2251
      %v2265 = vadd.f32 %v2244, %v2251
      %v2266 = vadd.f32 %v2245, %v2251
      %v2267 = vadd.f32 %v2246, %v2251
      %v2268 = vpack.c.bf16 %v2253, %v2252
      %v2269 = vpack.c.bf16 %v2255, %v2254
      %v2270 = vpack.c.bf16 %v2257, %v2256
      %v2271 = vpack.c.bf16 %v2259, %v2258
      %v2272 = vpack.c.bf16 %v2261, %v2260
      %v2273 = vpack.c.bf16 %v2263, %v2262
      %v2274 = vpack.c.bf16 %v2265, %v2264
      %v2275 = vpack.c.bf16 %v2267, %v2266
      %v2276 = vld [vmem:[%s392] sm:$0xf]
      %v2277 = vld [vmem:[%s392 + $0x4] sm:$0xf]
      %v2278 = vld [vmem:[%s392 + $0x8] sm:$0xf]
      %v2279 = vld [vmem:[%s392 + $0xc] sm:$0xf]
      %v2280 = vld [vmem:[%s392 + $0x10] sm:$0xf]
      %v2281 = vld [vmem:[%s392 + $0x14] sm:$0xf]
      %v2282 = vld [vmem:[%s392 + $0x18] sm:$0xf]
      %v2283 = vld [vmem:[%s392 + $0x1c] sm:$0xf]
      %v2284 = vld [vmem:[%s392 + $0x20] sm:$0xf]
      %v2285 = vld [vmem:[%s392 + $0x24] sm:$0xf]
      %v2286 = vld [vmem:[%s392 + $0x28] sm:$0xf]
      %v2287 = vld [vmem:[%s392 + $0x2c] sm:$0xf]
      %v2288 = vld [vmem:[%s392 + $0x30] sm:$0xf]
      %v2289 = vld [vmem:[%s392 + $0x34] sm:$0xf]
      %v2290 = vld [vmem:[%s392 + $0x38] sm:$0xf]
      %v2291 = vld [vmem:[%s392 + $0x3c] sm:$0xf]
      %v2292 = vld [vmem:[%s405] sm:$0x1]
      %v2294 = vlaneseq
      %v2295 = vshrl.u32 %v2294, 7
      %v2296 = vsub.s32 0, %v2295
      %v2297 = vrot.slane %v2292, %v2296
      %v2315 = vunpack.c.l.b16 %v2276
      %v2316 = vunpack.c.l.b16 %v2277
      %v2317 = vunpack.c.l.b16 %v2278
      %v2318 = vunpack.c.l.b16 %v2279
      %v2319 = vunpack.c.l.b16 %v2280
      %v2320 = vunpack.c.l.b16 %v2281
      %v2321 = vunpack.c.l.b16 %v2282
      %v2322 = vunpack.c.l.b16 %v2283
      %v2323 = vunpack.c.l.b16 %v2284
      %v2324 = vunpack.c.l.b16 %v2285
      %v2325 = vunpack.c.l.b16 %v2286
      %v2326 = vunpack.c.l.b16 %v2287
      %v2327 = vunpack.c.l.b16 %v2288
      %v2328 = vunpack.c.l.b16 %v2289
      %v2329 = vunpack.c.l.b16 %v2290
      %v2330 = vunpack.c.l.b16 %v2291
      %v2331 = vpack.c.b16 %v2316, %v2315
      %v2332 = vpack.c.b16 %v2318, %v2317
      %v2333 = vpack.c.b16 %v2320, %v2319
      %v2334 = vpack.c.b16 %v2322, %v2321
      %v2335 = vpack.c.b16 %v2324, %v2323
      %v2336 = vpack.c.b16 %v2326, %v2325
      %v2337 = vpack.c.b16 %v2328, %v2327
      %v2338 = vpack.c.b16 %v2330, %v2329
      %2347 = vmatprep.subr.bf16.mxu0 0
      %2348 = vmatpush1.bf16.msra.mxu0 %v2331
      %2349 = vmatprep.subr.bf16.mxu0 0
      %2350 = vmatpush1.bf16.msra.mxu0 %v2332
      %2351 = vmatprep.subr.bf16.mxu0 0
      %2352 = vmatpush1.bf16.msra.mxu0 %v2333
      %2353 = vmatprep.subr.bf16.mxu0 0
      %2354 = vmatpush1.bf16.msra.mxu0 %v2334
      %2355 = vmatprep.subr.bf16.mxu0 0
      %2356 = vmatpush1.bf16.msra.mxu0 %v2335
      %2357 = vmatprep.subr.bf16.mxu0 0
      %2358 = vmatpush1.bf16.msra.mxu0 %v2336
      %2359 = vmatprep.subr.bf16.mxu0 0
      %2360 = vmatpush1.bf16.msra.mxu0 %v2337
      %2361 = vmatprep.subr.bf16.mxu0 0
      %2362 = vmatpush1.bf16.msra.mxu0 %v2338
      %2363 = vmatprep.subr.bf16.mxu0 0
      %2364 = vmatpush1.bf16.msra.mxu0 0
      %2365 = vmatprep.subr.bf16.mxu0 0
      %2366 = vmatpush1.bf16.msra.mxu0 0
      %2367 = vmatprep.subr.bf16.mxu0 0
      %2368 = vmatpush1.bf16.msra.mxu0 0
      %2369 = vmatprep.subr.bf16.mxu0 0
      %2370 = vmatpush1.bf16.msra.mxu0 0
      %2371 = vmatprep.subr.bf16.mxu0 0
      %2372 = vmatpush1.bf16.msra.mxu0 0
      %2373 = vmatprep.subr.bf16.mxu0 0
      %2374 = vmatpush1.bf16.msra.mxu0 0
      %2375 = vmatprep.subr.bf16.mxu0 0
      %2376 = vmatpush1.bf16.msra.mxu0 0
      %2377 = vmatprep.subr.bf16.mxu0 0
      %2378 = vmatpush1.bf16.msra.mxu0 0
      %2379 = vmatprep.mubr.bf16.mxu0 0
      %2380 = vmatmul.mubr.bf16.gmra.mrb[0].mxu0 %v2268
      %v2381 = vpop.f32.mrb[0].mxu0
      %v2382 = vadd.f32 %v2297, %v2381
      %v2383 = vpop.f32.mrb[0].mxu0
      %v2384 = vpop.f32.mrb[0].mxu0
      %v2385 = vadd.f32 %v2297, %v2384
      %v2386 = vpop.f32.mrb[0].mxu0
      %2387 = vmatprep.mubr.bf16.mxu0 0
      %2388 = vmatmul.mubr.bf16.gmra.mrb[0].mxu0 %v2269
      %v2389 = vpop.f32.mrb[0].mxu0
      %v2390 = vadd.f32 %v2297, %v2389
      %v2391 = vpop.f32.mrb[0].mxu0
      %v2392 = vpop.f32.mrb[0].mxu0
      %v2393 = vadd.f32 %v2297, %v2392
      %v2394 = vpop.f32.mrb[0].mxu0
      %2395 = vmatprep.mubr.bf16.mxu0 0
      %2396 = vmatmul.mubr.bf16.gmra.mrb[0].mxu0 %v2270
      %v2397 = vpop.f32.mrb[0].mxu0
      %v2398 = vadd.f32 %v2297, %v2397
      %v2399 = vpop.f32.mrb[0].mxu0
      %v2400 = vpop.f32.mrb[0].mxu0
      %v2401 = vadd.f32 %v2297, %v2400
      %v2402 = vpop.f32.mrb[0].mxu0
      %2403 = vmatprep.mubr.bf16.mxu0 0
      %2404 = vmatmul.mubr.bf16.gmra.mrb[0].mxu0 %v2271
      %v2405 = vpop.f32.mrb[0].mxu0
      %v2406 = vadd.f32 %v2297, %v2405
      %v2407 = vpop.f32.mrb[0].mxu0
      %v2408 = vpop.f32.mrb[0].mxu0
      %v2409 = vadd.f32 %v2297, %v2408
      %v2410 = vpop.f32.mrb[0].mxu0
      %2411 = vmatprep.mubr.bf16.mxu0 0
      %2412 = vmatmul.mubr.bf16.gmra.mrb[0].mxu0 %v2272
      %v2413 = vpop.f32.mrb[0].mxu0
      %v2414 = vadd.f32 %v2297, %v2413
      %v2415 = vpop.f32.mrb[0].mxu0
      %v2416 = vpop.f32.mrb[0].mxu0
      %v2417 = vadd.f32 %v2297, %v2416
      %v2418 = vpop.f32.mrb[0].mxu0
      %2419 = vmatprep.mubr.bf16.mxu0 0
      %2420 = vmatmul.mubr.bf16.gmra.mrb[0].mxu0 %v2273
      %v2421 = vpop.f32.mrb[0].mxu0
      %v2422 = vadd.f32 %v2297, %v2421
      %v2423 = vpop.f32.mrb[0].mxu0
      %v2424 = vpop.f32.mrb[0].mxu0
      %v2425 = vadd.f32 %v2297, %v2424
      %v2426 = vpop.f32.mrb[0].mxu0
      %2427 = vmatprep.mubr.bf16.mxu0 0
      %2428 = vmatmul.mubr.bf16.gmra.mrb[0].mxu0 %v2274
      %v2429 = vpop.f32.mrb[0].mxu0
      %v2430 = vadd.f32 %v2297, %v2429
      %v2431 = vpop.f32.mrb[0].mxu0
      %v2432 = vpop.f32.mrb[0].mxu0
      %v2433 = vadd.f32 %v2297, %v2432
      %v2434 = vpop.f32.mrb[0].mxu0
      %2435 = vmatprep.mubr.bf16.mxu0 0
      %2436 = vmatmul.mubr.bf16.gmra.mrb[0].mxu0 %v2275
      %v2437 = vpop.f32.mrb[0].mxu0
      %v2438 = vadd.f32 %v2297, %v2437
      %v2439 = vpop.f32.mrb[0].mxu0
      %v2440 = vpop.f32.mrb[0].mxu0
      %v2441 = vadd.f32 %v2297, %v2440
      %v2442 = vpop.f32.mrb[0].mxu0
      %2443 = vdwg.mxu0
      %v2444 = vmax.f32 %v2382, 0.0
      %v2445 = vmax.f32 %v2385, 0.0
      %v2446 = vmax.f32 %v2390, 0.0
      %v2447 = vmax.f32 %v2393, 0.0
      %v2448 = vmax.f32 %v2398, 0.0
      %v2449 = vmax.f32 %v2401, 0.0
      %v2450 = vmax.f32 %v2406, 0.0
      %v2451 = vmax.f32 %v2409, 0.0
      %v2452 = vmax.f32 %v2414, 0.0
      %v2453 = vmax.f32 %v2417, 0.0
      %v2454 = vmax.f32 %v2422, 0.0
      %v2455 = vmax.f32 %v2425, 0.0
      %v2456 = vmax.f32 %v2430, 0.0
      %v2457 = vmax.f32 %v2433, 0.0
      %v2458 = vmax.f32 %v2438, 0.0
      %v2459 = vmax.f32 %v2441, 0.0
      %v2460 = vpack.c.bf16 %v2445, %v2444
      %v2461 = vpack.c.bf16 %v2447, %v2446
      %v2462 = vpack.c.bf16 %v2449, %v2448
      %v2463 = vpack.c.bf16 %v2451, %v2450
      %v2464 = vpack.c.bf16 %v2453, %v2452
      %v2465 = vpack.c.bf16 %v2455, %v2454
      %v2466 = vpack.c.bf16 %v2457, %v2456
      %v2467 = vpack.c.bf16 %v2459, %v2458
      %v2468 = vld [vmem:[%s397] sm:$0xf]
      %v2469 = vld [vmem:[%s397 + $0x4] sm:$0xf]
      %v2470 = vld [vmem:[%s397 + $0x8] sm:$0xf]
      %v2471 = vld [vmem:[%s397 + $0xc] sm:$0xf]
      %v2472 = vld [vmem:[%s397 + $0x10] sm:$0xf]
      %v2473 = vld [vmem:[%s397 + $0x14] sm:$0xf]
      %v2474 = vld [vmem:[%s397 + $0x18] sm:$0xf]
      %v2475 = vld [vmem:[%s397 + $0x1c] sm:$0xf]
      %v2476 = vld [vmem:[%s397 + $0x20] sm:$0xf]
      %v2477 = vld [vmem:[%s397 + $0x24] sm:$0xf]
      %v2478 = vld [vmem:[%s397 + $0x28] sm:$0xf]
      %v2479 = vld [vmem:[%s397 + $0x2c] sm:$0xf]
      %v2480 = vld [vmem:[%s397 + $0x30] sm:$0xf]
      %v2481 = vld [vmem:[%s397 + $0x34] sm:$0xf]
      %v2482 = vld [vmem:[%s397 + $0x38] sm:$0xf]
      %v2483 = vld [vmem:[%s397 + $0x3c] sm:$0xf]
      %v2484 = vld [vmem:[%s402 + $0x6] sm:$0x1]
      %v2485 = vlaneseq
      %v2486 = vshrl.u32 %v2485, 7
      %v2487 = vsub.s32 0, %v2486
      %v2488 = vrot.slane %v2484, %v2487
      %v2505 = vunpack.c.l.b16 %v2468
      %v2506 = vunpack.c.l.b16 %v2469
      %v2507 = vunpack.c.l.b16 %v2470
      %v2508 = vunpack.c.l.b16 %v2471
      %v2509 = vunpack.c.l.b16 %v2472
      %v2510 = vunpack.c.l.b16 %v2473
      %v2511 = vunpack.c.l.b16 %v2474
      %v2512 = vunpack.c.l.b16 %v2475
      %v2513 = vunpack.c.l.b16 %v2476
      %v2514 = vunpack.c.l.b16 %v2477
      %v2515 = vunpack.c.l.b16 %v2478
      %v2516 = vunpack.c.l.b16 %v2479
      %v2517 = vunpack.c.l.b16 %v2480
      %v2518 = vunpack.c.l.b16 %v2481
      %v2519 = vunpack.c.l.b16 %v2482
      %v2520 = vunpack.c.l.b16 %v2483
      %v2521 = vpack.c.b16 %v2506, %v2505
      %v2522 = vpack.c.b16 %v2508, %v2507
      %v2523 = vpack.c.b16 %v2510, %v2509
      %v2524 = vpack.c.b16 %v2512, %v2511
      %v2525 = vpack.c.b16 %v2514, %v2513
      %v2526 = vpack.c.b16 %v2516, %v2515
      %v2527 = vpack.c.b16 %v2518, %v2517
      %v2528 = vpack.c.b16 %v2520, %v2519
      %2537 = vmatprep.subr.bf16.mxu0 0
      %2538 = vmatpush1.bf16.msra.mxu0 %v2521
      %2539 = vmatprep.subr.bf16.mxu0 0
      %2540 = vmatpush1.bf16.msra.mxu0 %v2522
      %2541 = vmatprep.subr.bf16.mxu0 0
      %2542 = vmatpush1.bf16.msra.mxu0 %v2523
      %2543 = vmatprep.subr.bf16.mxu0 0
      %2544 = vmatpush1.bf16.msra.mxu0 %v2524
      %2545 = vmatprep.subr.bf16.mxu0 0
      %2546 = vmatpush1.bf16.msra.mxu0 %v2525
      %2547 = vmatprep.subr.bf16.mxu0 0
      %2548 = vmatpush1.bf16.msra.mxu0 %v2526
      %2549 = vmatprep.subr.bf16.mxu0 0
      %2550 = vmatpush1.bf16.msra.mxu0 %v2527
      %2551 = vmatprep.subr.bf16.mxu0 0
      %2552 = vmatpush1.bf16.msra.mxu0 %v2528
      %2553 = vmatprep.subr.bf16.mxu0 0
      %2554 = vmatpush1.bf16.msra.mxu0 0
      %2555 = vmatprep.subr.bf16.mxu0 0
      %2556 = vmatpush1.bf16.msra.mxu0 0
      %2557 = vmatprep.subr.bf16.mxu0 0
      %2558 = vmatpush1.bf16.msra.mxu0 0
      %2559 = vmatprep.subr.bf16.mxu0 0
      %2560 = vmatpush1.bf16.msra.mxu0 0
      %2561 = vmatprep.subr.bf16.mxu0 0
      %2562 = vmatpush1.bf16.msra.mxu0 0
      %2563 = vmatprep.subr.bf16.mxu0 0
      %2564 = vmatpush1.bf16.msra.mxu0 0
      %2565 = vmatprep.subr.bf16.mxu0 0
      %2566 = vmatpush1.bf16.msra.mxu0 0
      %2567 = vmatprep.subr.bf16.mxu0 0
      %2568 = vmatpush1.bf16.msra.mxu0 0
      %2569 = vmatprep.mubr.bf16.mxu0 0
      %2570 = vmatmul.mubr.bf16.gmra.mrb[0].mxu0 %v2460
      %v2571 = vpop.f32.mrb[0].mxu0
      %v2572 = vadd.f32 %v2488, %v2571
      %v2573 = vpop.f32.mrb[0].mxu0
      %v2574 = vpop.f32.mrb[0].mxu0
      %v2575 = vadd.f32 %v2488, %v2574
      %v2576 = vpop.f32.mrb[0].mxu0
      %2577 = vmatprep.mubr.bf16.mxu0 0
      %2578 = vmatmul.mubr.bf16.gmra.mrb[0].mxu0 %v2461
      %v2579 = vpop.f32.mrb[0].mxu0
      %v2580 = vadd.f32 %v2488, %v2579
      %v2581 = vpop.f32.mrb[0].mxu0
      %v2582 = vpop.f32.mrb[0].mxu0
      %v2583 = vadd.f32 %v2488, %v2582
      %v2584 = vpop.f32.mrb[0].mxu0
      %2585 = vmatprep.mubr.bf16.mxu0 0
      %2586 = vmatmul.mubr.bf16.gmra.mrb[0].mxu0 %v2462
      %v2587 = vpop.f32.mrb[0].mxu0
      %v2588 = vadd.f32 %v2488, %v2587
      %v2589 = vpop.f32.mrb[0].mxu0
      %v2590 = vpop.f32.mrb[0].mxu0
      %v2591 = vadd.f32 %v2488, %v2590
      %v2592 = vpop.f32.mrb[0].mxu0
      %2593 = vmatprep.mubr.bf16.mxu0 0
      %2594 = vmatmul.mubr.bf16.gmra.mrb[0].mxu0 %v2463
      %v2595 = vpop.f32.mrb[0].mxu0
      %v2596 = vadd.f32 %v2488, %v2595
      %v2597 = vpop.f32.mrb[0].mxu0
      %v2598 = vpop.f32.mrb[0].mxu0
      %v2599 = vadd.f32 %v2488, %v2598
      %v2600 = vpop.f32.mrb[0].mxu0
      %2601 = vmatprep.mubr.bf16.mxu0 0
      %2602 = vmatmul.mubr.bf16.gmra.mrb[0].mxu0 %v2464
      %v2603 = vpop.f32.mrb[0].mxu0
      %v2604 = vadd.f32 %v2488, %v2603
      %v2605 = vpop.f32.mrb[0].mxu0
      %v2606 = vpop.f32.mrb[0].mxu0
      %v2607 = vadd.f32 %v2488, %v2606
      %v2608 = vpop.f32.mrb[0].mxu0
      %2609 = vmatprep.mubr.bf16.mxu0 0
      %2610 = vmatmul.mubr.bf16.gmra.mrb[0].mxu0 %v2465
      %v2611 = vpop.f32.mrb[0].mxu0
      %v2612 = vadd.f32 %v2488, %v2611
      %v2613 = vpop.f32.mrb[0].mxu0
      %v2614 = vpop.f32.mrb[0].mxu0
      %v2615 = vadd.f32 %v2488, %v2614
      %v2616 = vpop.f32.mrb[0].mxu0
      %2617 = vmatprep.mubr.bf16.mxu0 0
      %2618 = vmatmul.mubr.bf16.gmra.mrb[0].mxu0 %v2466
      %v2619 = vpop.f32.mrb[0].mxu0
      %v2620 = vadd.f32 %v2488, %v2619
      %v2621 = vpop.f32.mrb[0].mxu0
      %v2622 = vpop.f32.mrb[0].mxu0
      %v2623 = vadd.f32 %v2488, %v2622
      %v2624 = vpop.f32.mrb[0].mxu0
      %2625 = vmatprep.mubr.bf16.mxu0 0
      %2626 = vmatmul.mubr.bf16.gmra.mrb[0].mxu0 %v2467
      %v2627 = vpop.f32.mrb[0].mxu0
      %v2628 = vadd.f32 %v2488, %v2627
      %v2629 = vpop.f32.mrb[0].mxu0
      %v2630 = vpop.f32.mrb[0].mxu0
      %v2631 = vadd.f32 %v2488, %v2630
      %v2632 = vpop.f32.mrb[0].mxu0
      %2633 = vdwg.mxu0
      %v2634 = vadd.f32 %v2252, %v2572
      %v2635 = vadd.f32 %v2253, %v2575
      %v2636 = vadd.f32 %v2254, %v2580
      %v2637 = vadd.f32 %v2255, %v2583
      %v2638 = vadd.f32 %v2256, %v2588
      %v2639 = vadd.f32 %v2257, %v2591
      %v2640 = vadd.f32 %v2258, %v2596
      %v2641 = vadd.f32 %v2259, %v2599
      %v2642 = vadd.f32 %v2260, %v2604
      %v2643 = vadd.f32 %v2261, %v2607
      %v2644 = vadd.f32 %v2262, %v2612
      %v2645 = vadd.f32 %v2263, %v2615
      %v2646 = vadd.f32 %v2264, %v2620
      %v2647 = vadd.f32 %v2265, %v2623
      %v2648 = vadd.f32 %v2266, %v2628
      %v2649 = vadd.f32 %v2267, %v2631
      %2650 = vadd.xlane.f32.xlu0 %v2634
      %v2651 = vpop.xlane.xlu0 %2650
      %2652 = vadd.xlane.f32.xlu0 %v2635
      %v2653 = vpop.xlane.xlu0 %2652
      %2654 = vadd.xlane.f32.xlu0 %v2636
      %v2655 = vpop.xlane.xlu0 %2654
      %2656 = vadd.xlane.f32.xlu0 %v2637
      %v2657 = vpop.xlane.xlu0 %2656
      %2658 = vadd.xlane.f32.xlu0 %v2638
      %v2659 = vpop.xlane.xlu0 %2658
      %2660 = vadd.xlane.f32.xlu0 %v2639
      %v2661 = vpop.xlane.xlu0 %2660
      %2662 = vadd.xlane.f32.xlu0 %v2640
      %v2663 = vpop.xlane.xlu0 %2662
      %2664 = vadd.xlane.f32.xlu0 %v2641
      %v2665 = vpop.xlane.xlu0 %2664
      %2666 = vadd.xlane.f32.xlu0 %v2642
      %v2667 = vpop.xlane.xlu0 %2666
      %2668 = vadd.xlane.f32.xlu0 %v2643
      %v2669 = vpop.xlane.xlu0 %2668
      %2670 = vadd.xlane.f32.xlu0 %v2644
      %v2671 = vpop.xlane.xlu0 %2670
      %2672 = vadd.xlane.f32.xlu0 %v2645
      %v2673 = vpop.xlane.xlu0 %2672
      %2674 = vadd.xlane.f32.xlu0 %v2646
      %v2675 = vpop.xlane.xlu0 %2674
      %2676 = vadd.xlane.f32.xlu0 %v2647
      %v2677 = vpop.xlane.xlu0 %2676
      %2678 = vadd.xlane.f32.xlu0 %v2648
      %v2679 = vpop.xlane.xlu0 %2678
      %2680 = vadd.xlane.f32.xlu0 %v2649
      %v2681 = vpop.xlane.xlu0 %2680
      %v2682 = vmul.f32 %v2651, 0.03125
      %v2683 = vmul.f32 %v2653, 0.03125
      %v2684 = vmul.f32 %v2655, 0.03125
      %v2685 = vmul.f32 %v2657, 0.03125
      %v2686 = vmul.f32 %v2659, 0.03125
      %v2687 = vmul.f32 %v2661, 0.03125
      %v2688 = vmul.f32 %v2663, 0.03125
      %v2689 = vmul.f32 %v2665, 0.03125
      %v2690 = vmul.f32 %v2667, 0.03125
      %v2691 = vmul.f32 %v2669, 0.03125
      %v2692 = vmul.f32 %v2671, 0.03125
      %v2693 = vmul.f32 %v2673, 0.03125
      %v2694 = vmul.f32 %v2675, 0.03125
      %v2695 = vmul.f32 %v2677, 0.03125
      %v2696 = vmul.f32 %v2679, 0.03125
      %v2697 = vmul.f32 %v2681, 0.03125
      %v2698 = vmul.f32 %v2634, %v2634
      %v2699 = vmul.f32 %v2635, %v2635
      %v2700 = vmul.f32 %v2636, %v2636
      %v2701 = vmul.f32 %v2637, %v2637
      %v2702 = vmul.f32 %v2638, %v2638
      %v2703 = vmul.f32 %v2639, %v2639
      %v2704 = vmul.f32 %v2640, %v2640
      %v2705 = vmul.f32 %v2641, %v2641
      %v2706 = vmul.f32 %v2642, %v2642
      %v2707 = vmul.f32 %v2643, %v2643
      %v2708 = vmul.f32 %v2644, %v2644
      %v2709 = vmul.f32 %v2645, %v2645
      %v2710 = vmul.f32 %v2646, %v2646
      %v2711 = vmul.f32 %v2647, %v2647
      %v2712 = vmul.f32 %v2648, %v2648
      %v2713 = vmul.f32 %v2649, %v2649
      %2714 = vadd.xlane.f32.xlu0 %v2698
      %v2715 = vpop.xlane.xlu0 %2714
      %2716 = vadd.xlane.f32.xlu0 %v2699
      %v2717 = vpop.xlane.xlu0 %2716
      %2718 = vadd.xlane.f32.xlu0 %v2700
      %v2719 = vpop.xlane.xlu0 %2718
      %2720 = vadd.xlane.f32.xlu0 %v2701
      %v2721 = vpop.xlane.xlu0 %2720
      %2722 = vadd.xlane.f32.xlu0 %v2702
      %v2723 = vpop.xlane.xlu0 %2722
      %2724 = vadd.xlane.f32.xlu0 %v2703
      %v2725 = vpop.xlane.xlu0 %2724
      %2726 = vadd.xlane.f32.xlu0 %v2704
      %v2727 = vpop.xlane.xlu0 %2726
      %2728 = vadd.xlane.f32.xlu0 %v2705
      %v2729 = vpop.xlane.xlu0 %2728
      %2730 = vadd.xlane.f32.xlu0 %v2706
      %v2731 = vpop.xlane.xlu0 %2730
      %2732 = vadd.xlane.f32.xlu0 %v2707
      %v2733 = vpop.xlane.xlu0 %2732
      %2734 = vadd.xlane.f32.xlu0 %v2708
      %v2735 = vpop.xlane.xlu0 %2734
      %2736 = vadd.xlane.f32.xlu0 %v2709
      %v2737 = vpop.xlane.xlu0 %2736
      %2738 = vadd.xlane.f32.xlu0 %v2710
      %v2739 = vpop.xlane.xlu0 %2738
      %2740 = vadd.xlane.f32.xlu0 %v2711
      %v2741 = vpop.xlane.xlu0 %2740
      %2742 = vadd.xlane.f32.xlu0 %v2712
      %v2743 = vpop.xlane.xlu0 %2742
      %2744 = vadd.xlane.f32.xlu0 %v2713
      %v2745 = vpop.xlane.xlu0 %2744
      %v2746 = vmul.f32 %v2715, 0.03125
      %v2747 = vmul.f32 %v2717, 0.03125
      %v2748 = vmul.f32 %v2719, 0.03125
      %v2749 = vmul.f32 %v2721, 0.03125
      %v2750 = vmul.f32 %v2723, 0.03125
      %v2751 = vmul.f32 %v2725, 0.03125
      %v2752 = vmul.f32 %v2727, 0.03125
      %v2753 = vmul.f32 %v2729, 0.03125
      %v2754 = vmul.f32 %v2731, 0.03125
      %v2755 = vmul.f32 %v2733, 0.03125
      %v2756 = vmul.f32 %v2735, 0.03125
      %v2757 = vmul.f32 %v2737, 0.03125
      %v2758 = vmul.f32 %v2739, 0.03125
      %v2759 = vmul.f32 %v2741, 0.03125
      %v2760 = vmul.f32 %v2743, 0.03125
      %v2761 = vmul.f32 %v2745, 0.03125
      %v2762 = vmul.f32 %v2682, %v2682
      %v2763 = vmul.f32 %v2683, %v2683
      %v2764 = vmul.f32 %v2684, %v2684
      %v2765 = vmul.f32 %v2685, %v2685
      %v2766 = vmul.f32 %v2686, %v2686
      %v2767 = vmul.f32 %v2687, %v2687
      %v2768 = vmul.f32 %v2688, %v2688
      %v2769 = vmul.f32 %v2689, %v2689
      %v2770 = vmul.f32 %v2690, %v2690
      %v2771 = vmul.f32 %v2691, %v2691
      %v2772 = vmul.f32 %v2692, %v2692
      %v2773 = vmul.f32 %v2693, %v2693
      %v2774 = vmul.f32 %v2694, %v2694
      %v2775 = vmul.f32 %v2695, %v2695
      %v2776 = vmul.f32 %v2696, %v2696
      %v2777 = vmul.f32 %v2697, %v2697
      %v2778 = vsub.f32 %v2746, %v2762
      %v2779 = vsub.f32 %v2747, %v2763
      %v2780 = vsub.f32 %v2748, %v2764
      %v2781 = vsub.f32 %v2749, %v2765
      %v2782 = vsub.f32 %v2750, %v2766
      %v2783 = vsub.f32 %v2751, %v2767
      %v2784 = vsub.f32 %v2752, %v2768
      %v2785 = vsub.f32 %v2753, %v2769
      %v2786 = vsub.f32 %v2754, %v2770
      %v2787 = vsub.f32 %v2755, %v2771
      %v2788 = vsub.f32 %v2756, %v2772
      %v2789 = vsub.f32 %v2757, %v2773
      %v2790 = vsub.f32 %v2758, %v2774
      %v2791 = vsub.f32 %v2759, %v2775
      %v2792 = vsub.f32 %v2760, %v2776
      %v2793 = vsub.f32 %v2761, %v2777
      %v2794 = vmax.f32 %v2778, 0.0
      %v2795 = vmax.f32 %v2779, 0.0
      %v2796 = vmax.f32 %v2780, 0.0
      %v2797 = vmax.f32 %v2781, 0.0
      %v2798 = vmax.f32 %v2782, 0.0
      %v2799 = vmax.f32 %v2783, 0.0
      %v2800 = vmax.f32 %v2784, 0.0
      %v2801 = vmax.f32 %v2785, 0.0
      %v2802 = vmax.f32 %v2786, 0.0
      %v2803 = vmax.f32 %v2787, 0.0
      %v2804 = vmax.f32 %v2788, 0.0
      %v2805 = vmax.f32 %v2789, 0.0
      %v2806 = vmax.f32 %v2790, 0.0
      %v2807 = vmax.f32 %v2791, 0.0
      %v2808 = vmax.f32 %v2792, 0.0
      %v2809 = vmax.f32 %v2793, 0.0
      %v2810 = vsub.f32 %v2634, %v2682
      %v2811 = vsub.f32 %v2635, %v2683
      %v2812 = vsub.f32 %v2636, %v2684
      %v2813 = vsub.f32 %v2637, %v2685
      %v2814 = vsub.f32 %v2638, %v2686
      %v2815 = vsub.f32 %v2639, %v2687
      %v2816 = vsub.f32 %v2640, %v2688
      %v2817 = vsub.f32 %v2641, %v2689
      %v2818 = vsub.f32 %v2642, %v2690
      %v2819 = vsub.f32 %v2643, %v2691
      %v2820 = vsub.f32 %v2644, %v2692
      %v2821 = vsub.f32 %v2645, %v2693
      %v2822 = vsub.f32 %v2646, %v2694
      %v2823 = vsub.f32 %v2647, %v2695
      %v2824 = vsub.f32 %v2648, %v2696
      %v2825 = vsub.f32 %v2649, %v2697
      %v2826 = vadd.f32 %v2794, 1e-05
      %v2827 = vadd.f32 %v2795, 1e-05
      %v2828 = vadd.f32 %v2796, 1e-05
      %v2829 = vadd.f32 %v2797, 1e-05
      %v2830 = vadd.f32 %v2798, 1e-05
      %v2831 = vadd.f32 %v2799, 1e-05
      %v2832 = vadd.f32 %v2800, 1e-05
      %v2833 = vadd.f32 %v2801, 1e-05
      %v2834 = vadd.f32 %v2802, 1e-05
      %v2835 = vadd.f32 %v2803, 1e-05
      %v2836 = vadd.f32 %v2804, 1e-05
      %v2837 = vadd.f32 %v2805, 1e-05
      %v2838 = vadd.f32 %v2806, 1e-05
      %v2839 = vadd.f32 %v2807, 1e-05
      %v2840 = vadd.f32 %v2808, 1e-05
      %v2841 = vadd.f32 %v2809, 1e-05
      %v2842 = vrsqrt.pop %v2826
      %v2843 = vrsqrt.pop %v2827
      %v2844 = vrsqrt.pop %v2828
      %v2845 = vrsqrt.pop %v2829
      %v2846 = vrsqrt.pop %v2830
      %v2847 = vrsqrt.pop %v2831
      %v2848 = vrsqrt.pop %v2832
      %v2849 = vrsqrt.pop %v2833
      %v2850 = vrsqrt.pop %v2834
      %v2851 = vrsqrt.pop %v2835
      %v2852 = vrsqrt.pop %v2836
      %v2853 = vrsqrt.pop %v2837
      %v2854 = vrsqrt.pop %v2838
      %v2855 = vrsqrt.pop %v2839
      %v2856 = vrsqrt.pop %v2840
      %v2857 = vrsqrt.pop %v2841
      %v2858 = vmul.f32 %v2810, %v2842
      %v2859 = vmul.f32 %v2811, %v2843
      %v2860 = vmul.f32 %v2812, %v2844
      %v2861 = vmul.f32 %v2813, %v2845
      %v2862 = vmul.f32 %v2814, %v2846
      %v2863 = vmul.f32 %v2815, %v2847
      %v2864 = vmul.f32 %v2816, %v2848
      %v2865 = vmul.f32 %v2817, %v2849
      %v2866 = vmul.f32 %v2818, %v2850
      %v2867 = vmul.f32 %v2819, %v2851
      %v2868 = vmul.f32 %v2820, %v2852
      %v2869 = vmul.f32 %v2821, %v2853
      %v2870 = vmul.f32 %v2822, %v2854
      %v2871 = vmul.f32 %v2823, %v2855
      %v2872 = vmul.f32 %v2824, %v2856
      %v2873 = vmul.f32 %v2825, %v2857
      %v2874 = vld [vmem:[%s402 + $0x7] sm:$0x1]
      %v2875 = vlaneseq
      %v2876 = vshrl.u32 %v2875, 7
      %v2877 = vsub.s32 0, %v2876
      %v2878 = vrot.slane %v2874, %v2877
      %v2879 = vmul.f32 %v2858, %v2878
      %v2880 = vmul.f32 %v2859, %v2878
      %v2881 = vmul.f32 %v2860, %v2878
      %v2882 = vmul.f32 %v2861, %v2878
      %v2883 = vmul.f32 %v2862, %v2878
      %v2884 = vmul.f32 %v2863, %v2878
      %v2885 = vmul.f32 %v2864, %v2878
      %v2886 = vmul.f32 %v2865, %v2878
      %v2887 = vmul.f32 %v2866, %v2878
      %v2888 = vmul.f32 %v2867, %v2878
      %v2889 = vmul.f32 %v2868, %v2878
      %v2890 = vmul.f32 %v2869, %v2878
      %v2891 = vmul.f32 %v2870, %v2878
      %v2892 = vmul.f32 %v2871, %v2878
      %v2893 = vmul.f32 %v2872, %v2878
      %v2894 = vmul.f32 %v2873, %v2878
      %v2895 = vld [vmem:[%s402 + $0x8] sm:$0x1]
      %v2896 = vlaneseq
      %v2897 = vshrl.u32 %v2896, 7
      %v2898 = vsub.s32 0, %v2897
      %v2899 = vrot.slane %v2895, %v2898
      %v2900 = vadd.f32 %v2879, %v2899
      %v2901 = vadd.f32 %v2880, %v2899
      %v2902 = vadd.f32 %v2881, %v2899
      %v2903 = vadd.f32 %v2882, %v2899
      %v2904 = vadd.f32 %v2883, %v2899
      %v2905 = vadd.f32 %v2884, %v2899
      %v2906 = vadd.f32 %v2885, %v2899
      %v2907 = vadd.f32 %v2886, %v2899
      %v2908 = vadd.f32 %v2887, %v2899
      %v2909 = vadd.f32 %v2888, %v2899
      %v2910 = vadd.f32 %v2889, %v2899
      %v2911 = vadd.f32 %v2890, %v2899
      %v2912 = vadd.f32 %v2891, %v2899
      %v2913 = vadd.f32 %v2892, %v2899
      %v2914 = vadd.f32 %v2893, %v2899
      %v2915 = vadd.f32 %v2894, %v2899
      %2916 = vst [vmem:[%s411] sm:$0xff] %v2900
      %2917 = vst [vmem:[%s411 + $0x8] sm:$0xff] %v2901
      %2918 = vst [vmem:[%s411 + $0x10] sm:$0xff] %v2902
      %2919 = vst [vmem:[%s411 + $0x18] sm:$0xff] %v2903
      %2920 = vst [vmem:[%s411 + $0x20] sm:$0xff] %v2904
      %2921 = vst [vmem:[%s411 + $0x28] sm:$0xff] %v2905
      %2922 = vst [vmem:[%s411 + $0x30] sm:$0xff] %v2906
      %2923 = vst [vmem:[%s411 + $0x38] sm:$0xff] %v2907
      %2924 = vst [vmem:[%s411 + $0x40] sm:$0xff] %v2908
      %2925 = vst [vmem:[%s411 + $0x48] sm:$0xff] %v2909
      %2926 = vst [vmem:[%s411 + $0x50] sm:$0xff] %v2910
      %2927 = vst [vmem:[%s411 + $0x58] sm:$0xff] %v2911
      %2928 = vst [vmem:[%s411 + $0x60] sm:$0xff] %v2912
      %2929 = vst [vmem:[%s411 + $0x68] sm:$0xff] %v2913
      %2930 = vst [vmem:[%s411 + $0x70] sm:$0xff] %v2914
      %2931 = vst [vmem:[%s411 + $0x78] sm:$0xff] %v2915
      %s2932 = smul.u32 8, %s22
      %p2933 = scmp.lt.s32.totalorder %s2932, 7
      %s2934 = scalar_select %p2933, %s2932, 7
      %s2935 = smul.addr %s2934, 2
      %s2936 = smul.addr %s2935, 8
      %s2937 = scalar_lea.vmem %s7, %s2936
      // Predicated region
      $region53: #{u2gnn_forward.3} parent=47 // pred_check
        %p2938 = pneg %p230
      $region54: #{u2gnn_forward.3} parent=47 // pred_check_branch
        %2940 = sbr.rel (%p2938) target = $region56
      $region55: #{u2gnn_forward.3} parent=47 // pred_region
        %s2941 = smul.u32 8, %s22
      $region56: #{u2gnn_forward.3} parent=47 // pred_fallthru
        _
      // Predicated region
      $region57: #{u2gnn_forward.3} parent=47 // pred_check
        %p2942 = pneg %p230
      $region58: #{u2gnn_forward.3} parent=47 // pred_check_branch
        %2944 = sbr.rel (%p2942) target = $region60
      $region59: #{u2gnn_forward.3} parent=47 // pred_region
        %s2945 = smul.u32 8, %s22
        %p2946 = scmp.lt.s32.totalorder %s2945, 7
        %s2947 = scalar_select %p2946, %s2945, 7
        %s2948 = smul.addr %s2947, 2
        %s2949 = smul.addr %s2948, 8
        %s2950 = scalar_lea.vmem %s7, %s2949
      $region60: #{u2gnn_forward.3} parent=47 // pred_fallthru
        _
    $region48: #{u2gnn_forward.3} parent=5 // pred_fallthru
      _
    %p2951 = scmp.le.s32.totalorder 2, %s13
    // Predicated region
    $region61: #{u2gnn_forward.3} parent=5 // pred_check
      %p2952 = pneg %p2951
    $region62: #{u2gnn_forward.3} parent=5 // pred_check_branch
      %2954 = sbr.rel (%p2952) target = $region64
    $region63: #{u2gnn_forward.3} parent=5 // pred_region
      %s2955 = ssub.s32 %s13, 2
    $region64: #{u2gnn_forward.3} parent=5 // pred_fallthru
      _
  $region6: #{u2gnn_forward.3} parent=0 // loop_footer
    %s17 = sadd.s32 1, %s13
  $region7: #{u2gnn_forward.3} parent=0 // loop_footer_branch
    %12 = sbr.rel target = $region3
  $region8: #{u2gnn_forward.3} parent=0 // loop_exit
    _

</llo_original>
